<compile_context>
chip_gen: v5e
topology: v5e:2x2
jax: 0.10.0
libtpu: 0.0.40
codegen_flags: <defaults>
</compile_context>

<pallas_src>
import jax
import jax.numpy as jnp
from jax.experimental import pallas as pl
from jax.experimental.pallas import tpu as pltpu

LN_EPS = 1e-5


def _vmem_limit_bytes():
    """Generation-aware scoped-VMEM limit (leave ~1/8 headroom)."""
    cap = 64 * 1024 * 1024  # conservative fallback (safe on every generation)
    try:
        cap = pltpu.get_tpu_info().vmem_capacity_bytes
    except Exception:
        pass
    return int(min(cap * 7 // 8, 112 * 1024 * 1024))


def _layer_norm(x, g, b):
    mu = jnp.mean(x, axis=-1, keepdims=True)
    var = jnp.mean(jnp.square(x - mu), axis=-1, keepdims=True)
    return (x - mu) * jax.lax.rsqrt(var + LN_EPS) * g + b


# ---------------------------------------------------------------------------
# Fused gMLP stack kernel: grid = (B // TB, num_layers)
# ---------------------------------------------------------------------------
def gmlp_stack_kernel(x_ref, ln1_g, ln1_b, w1, b1, ln2_g, ln2_b,
                      wsp, bsp, w2, b2, o_ref, act):
    """All gMLP blocks for TB batch rows; residual stream resident in `act`."""
    layer = pl.program_id(1)
    tb, l, d = x_ref.shape
    f = w1.shape[-1] // 2

    @pl.when(layer == 0)
    def _():
        # bf16 embedding in, f32 residual stream in VMEM scratch.
        act[...] = x_ref[...].reshape(tb * l, d).astype(jnp.float32)

    x = act[...]                                   # (TB*L, D) f32, VMEM-resident

    # pre-LayerNorm (f32 statistics)
    xn = _layer_norm(x, ln1_g[0], ln1_b[0])

    # fused channel_proj1 (u|v in one bf16 matmul) + tanh GELU (EUP)
    uv = jnp.dot(xn.astype(w1.dtype), w1[0],
                 preferred_element_type=jnp.float32) + b1[0]        # (TB*L, 2F)
    uv = jax.nn.gelu(uv, approximate=True)
    u, v = uv[:, :f], uv[:, f:]

    # SpatialGatingUnit: LN(v), bf16 (L, L) seq-proj per batch row, gate.
    vn = _layer_norm(v, ln2_g[0], ln2_b[0])
    g_parts = []
    for bi in range(tb):                           # short static loop, unrolled
        vn_b = vn[bi * l:(bi + 1) * l, :].astype(wsp.dtype)
        vs_b = jnp.dot(wsp[0], vn_b, preferred_element_type=jnp.float32) + bsp[0]
        g_parts.append(u[bi * l:(bi + 1) * l, :] * vs_b)
    g = g_parts[0] if tb == 1 else jnp.concatenate(g_parts, axis=0)

    # channel_proj2 + residual; carried to next layer through `act`.
    out = jnp.dot(g.astype(w2.dtype), w2[0],
                  preferred_element_type=jnp.float32) + b2[0]
    act[...] = x + out

    @pl.when(layer == pl.num_programs(1) - 1)
    def _():
        o_ref[...] = act[...].reshape(tb, l, d).astype(o_ref.dtype)


def gmlp_stack(x, p, tb=2):
    B, L, D = x.shape
    NL, _, F2 = p["w1"].shape
    F = F2 // 2
    tb = max(1, min(tb, B))
    while B % tb:
        tb -= 1
    # TODO(synk): at realistic D_FFN/seq_len on v7x (64 MiB VMEM) add an extra
    #             "arbitrary" F-tiling grid axis for w1/w2 with an f32 accumulator.

    xmap = lambda b, l: (b, 0, 0)
    wmap = lambda b, l: (l, 0, 0)

    in_specs = [
        pl.BlockSpec((tb, L, D), xmap),
        pl.BlockSpec((1, 1, D), wmap),     # ln1_g
        pl.BlockSpec((1, 1, D), wmap),     # ln1_b
        pl.BlockSpec((1, D, F2), wmap),    # w1 (fused u|v), bf16
        pl.BlockSpec((1, 1, F2), wmap),    # b1
        pl.BlockSpec((1, 1, F), wmap),     # ln2_g
        pl.BlockSpec((1, 1, F), wmap),     # ln2_b
        pl.BlockSpec((1, L, L), wmap),     # wsp (spatial proj), bf16
        pl.BlockSpec((1, L, 1), wmap),     # bsp
        pl.BlockSpec((1, F, D), wmap),     # w2, bf16
        pl.BlockSpec((1, 1, D), wmap),     # b2
    ]
    return pl.pallas_call(
        gmlp_stack_kernel,
        out_shape=jax.ShapeDtypeStruct((B, L, D), jnp.bfloat16),
        grid=(B // tb, NL),
        in_specs=in_specs,
        out_specs=pl.BlockSpec((tb, L, D), xmap),
        scratch_shapes=[pltpu.VMEM((tb * L, D), jnp.float32)],
        compiler_params=pltpu.CompilerParams(
            dimension_semantics=("parallel", "arbitrary"),
            vmem_limit_bytes=_vmem_limit_bytes()),
    )(x, p["ln1_g"], p["ln1_b"], p["w1"], p["b1"], p["ln2_g"], p["ln2_b"],
      p["wsp"], p["bsp"], p["w2"], p["b2"])


# ---------------------------------------------------------------------------
# NLU head: vocab-tiled linear + log-softmax.
# Pass 1: logits matmul -> bf16 logits + online logsumexp (single head_w read).
# Pass 2: elementwise subtract of lse, output aliased onto the logits buffer.
# ---------------------------------------------------------------------------
def head_logits_lse_kernel(x_ref, w_ref, b_ref, logits_ref, lse_ref, m_sc, s_sc):
    j = pl.program_id(1)
    tb, l, d = x_ref.shape
    tv = w_ref.shape[-1]

    @pl.when(j == 0)
    def _():
        m_sc[...] = jnp.full_like(m_sc, -jnp.inf)
        s_sc[...] = jnp.zeros_like(s_sc)

    x = x_ref[...].reshape(tb * l, d)                              # bf16
    logits = jnp.dot(x, w_ref[...],
                     preferred_element_type=jnp.float32) + b_ref[...]   # (TB*L, TV)
    logits_ref[...] = logits.reshape(tb, l, tv).astype(logits_ref.dtype)

    m_prev = m_sc[...]
    m_new = jnp.maximum(m_prev, jnp.max(logits, axis=-1, keepdims=True))
    s_sc[...] = (s_sc[...] * jnp.exp(m_prev - m_new)
                 + jnp.sum(jnp.exp(logits - m_new), axis=-1, keepdims=True))
    m_sc[...] = m_new

    @pl.when(j == pl.num_programs(1) - 1)
    def _():
        lse_ref[...] = (m_sc[...] + jnp.log(s_sc[...])).reshape(tb, l, 1)


def head_norm_kernel(logits_ref, lse_ref, o_ref):
    # NOTE: the torch forward applies LogSoftmax twice; the second pass is a
    # mathematical no-op on log-probs and is omitted.
    o_ref[...] = (logits_ref[...].astype(jnp.float32)
                  - lse_ref[...]).astype(o_ref.dtype)


def nlu_head(x, w, b, tb=2, tile_v=1024):
    B, L, D = x.shape
    V = w.shape[1]
    tile_v = min(tile_v, V)
    assert V % tile_v == 0 and tile_v % 128 == 0
    n_vt = V // tile_v
    tb = max(1, min(tb, B))
    while B % tb:
        tb -= 1
    vlim = _vmem_limit_bytes()

    x_spec = pl.BlockSpec((tb, L, D), lambda bi, j: (bi, 0, 0))
    w_spec = pl.BlockSpec((D, tile_v), lambda bi, j: (0, j))
    b_spec = pl.BlockSpec((1, tile_v), lambda bi, j: (0, j))
    logits_spec = pl.BlockSpec((tb, L, tile_v), lambda bi, j: (bi, 0, j))
    lse_spec = pl.BlockSpec((tb, L, 1), lambda bi, j: (bi, 0, 0))

    logits, lse = pl.pallas_call(
        head_logits_lse_kernel,
        out_shape=(jax.ShapeDtypeStruct((B, L, V), jnp.bfloat16),
                   jax.ShapeDtypeStruct((B, L, 1), jnp.float32)),
        grid=(B // tb, n_vt),
        in_specs=[x_spec, w_spec, b_spec],
        out_specs=(logits_spec, lse_spec),
        scratch_shapes=[pltpu.VMEM((tb * L, 1), jnp.float32),
                        pltpu.VMEM((tb * L, 1), jnp.float32)],
        compiler_params=pltpu.CompilerParams(
            dimension_semantics=("parallel", "arbitrary"),
            vmem_limit_bytes=vlim),
    )(x, w, b)

    return pl.pallas_call(
        head_norm_kernel,
        out_shape=jax.ShapeDtypeStruct((B, L, V), jnp.bfloat16),
        grid=(B // tb, n_vt),
        in_specs=[logits_spec, lse_spec],
        out_specs=logits_spec,
        input_output_aliases={0: 0},              # reuse the logits buffer in place
        compiler_params=pltpu.CompilerParams(
            dimension_semantics=("parallel", "parallel"),
            vmem_limit_bytes=vlim),
    )(logits, lse)


# ---------------------------------------------------------------------------
# Full model forward
# ---------------------------------------------------------------------------
def gmlp_language_model(tokens, params, tb=2, tile_v=1024):
    # TransformerEmbedding: token gather + learned positional embedding
    # (dropout 0.1 is identity at eval).  Emitted in bf16 to halve the
    # (B, L, D) HBM round trip into the stack; the residual stream inside the
    # stack is kept in f32 VMEM.
    # TODO(synk): fuse the embedding gather into the layer==0 init of the stack
    #             (scalar-prefetched token ids) to remove this HBM round trip.
    x = (jnp.take(params["tok_emb"], tokens, axis=0)
         + params["pos_emb"][None]).astype(jnp.bfloat16)
    x = gmlp_stack(x, params["layers"], tb=tb)
    # output_logits=True path: Linear + LogSoftmax (extra LogSoftmax dropped as no-op).
    return nlu_head(x, params["head_w"], params["head_b"], tb=tb, tile_v=tile_v)


# ---------------------------------------------------------------------------
# Deterministic synthetic parameters (no checkpoint load)
# ---------------------------------------------------------------------------
def init_params(key, vocab, d_model, d_ffn, seq_len, num_layers):
    # Alignment for lane-dense vregs: D/F/V multiples of 128, L multiple of 8.
    # (Prefer multiples of 256 for D/F/tile_v on v6e/v7x's 256x256 MXUs.)
    assert d_model % 128 == 0 and d_ffn % 128 == 0 and vocab % 128 == 0
    assert seq_len % 8 == 0
    ks = jax.random.split(key, 6)
    nrm = lambda k, shape, s=0.05: s * jax.random.normal(k, shape, jnp.float32)

    layers = {
        "ln1_g": jnp.ones((num_layers, 1, d_model), jnp.float32),
        "ln1_b": jnp.zeros((num_layers, 1, d_model), jnp.float32),
        # fused channel_proj1 weight: [u | v] chunks along the last axis (bf16 MXU operand)
        "w1": nrm(ks[2], (num_layers, d_model, 2 * d_ffn)).astype(jnp.bfloat16),
        "b1": jnp.zeros((num_layers, 1, 2 * d_ffn), jnp.float32),
        "ln2_g": jnp.ones((num_layers, 1, d_ffn), jnp.float32),
        "ln2_b": jnp.zeros((num_layers, 1, d_ffn), jnp.float32),
        # spatial projection: near-zero weight, bias 1.0 (canonical SGU init); bf16 MXU operand
        "wsp": nrm(ks[3], (num_layers, seq_len, seq_len), 0.01).astype(jnp.bfloat16),
        "bsp": jnp.ones((num_layers, seq_len, 1), jnp.float32),
        "w2": nrm(ks[4], (num_layers, d_ffn, d_model)).astype(jnp.bfloat16),
        "b2": jnp.zeros((num_layers, 1, d_model), jnp.float32),
    }
    return {
        "tok_emb": nrm(ks[0], (vocab, d_model), 0.1),
        "pos_emb": nrm(ks[1], (seq_len, d_model), 0.1),
        "head_w": nrm(ks[5], (d_model, vocab)).astype(jnp.bfloat16),
        "head_b": jnp.zeros((1, vocab), jnp.float32),
        "layers": layers,
    }


if __name__ == "__main__":
    # Small but vreg-aligned shapes.
    VOCAB, D_MODEL, D_FFN, SEQ_LEN, NUM_LAYERS, BATCH = 512, 256, 256, 32, 2, 4

    key = jax.random.PRNGKey(0)
    k_tok, k_param = jax.random.split(key)
    tokens = jax.random.randint(k_tok, (BATCH, SEQ_LEN), 0, VOCAB, dtype=jnp.int32)
    params = init_params(k_param, VOCAB, D_MODEL, D_FFN, SEQ_LEN, NUM_LAYERS)

    # tb=2 keeps the parallel batch axis at 2 grid steps (both v7x TensorCores busy);
    # tile_v=256 exercises the multi-tile online-logsumexp path at this toy vocab
    # (use 1024-2048 at realistic vocab sizes).
    fwd = jax.jit(lambda t, p: gmlp_language_model(t, p, tb=2, tile_v=256))
    out = jax.block_until_ready(fwd(tokens, params))

    assert out.shape == (BATCH, SEQ_LEN, VOCAB)
    out32 = out.astype(jnp.float32)
    assert bool(jnp.all(jnp.isfinite(out32)))
    # sanity: rows are valid log-probs -> logsumexp per row ~ 0 (bf16 output tolerance)
    m = jnp.max(out32, axis=-1, keepdims=True)
    row_lse = (m + jnp.log(jnp.sum(jnp.exp(out32 - m), axis=-1, keepdims=True)))[..., 0]
    assert float(jnp.max(jnp.abs(row_lse))) < 0.1
    print("KERNEL_OK")
</pallas_src>

<mosaic_0001>
module attributes {stable_mosaic.version = 11 : i64} {
  func.func @gmlp_stack_kernel(%arg0: i32, %arg1: i32, %arg2: memref<2x32x256xbf16, #tpu.memory_space<vmem>>, %arg3: memref<1x1x256xf32, #tpu.memory_space<vmem>>, %arg4: memref<1x1x256xf32, #tpu.memory_space<vmem>>, %arg5: memref<1x256x512xbf16, #tpu.memory_space<vmem>>, %arg6: memref<1x1x512xf32, #tpu.memory_space<vmem>>, %arg7: memref<1x1x256xf32, #tpu.memory_space<vmem>>, %arg8: memref<1x1x256xf32, #tpu.memory_space<vmem>>, %arg9: memref<1x32x32xbf16, #tpu.memory_space<vmem>>, %arg10: memref<1x32x1xf32, #tpu.memory_space<vmem>>, %arg11: memref<1x256x256xbf16, #tpu.memory_space<vmem>>, %arg12: memref<1x1x256xf32, #tpu.memory_space<vmem>>, %arg13: memref<2x32x256xbf16, #tpu.memory_space<vmem>>, %arg14: memref<64x256xf32, #tpu.memory_space<vmem>>) attributes {dimension_semantics = [#tpu.dimension_semantics<parallel>, #tpu.dimension_semantics<arbitrary>], iteration_bounds = array<i64: 2, 2>, scalar_prefetch = 0 : i64, scratch_operands = 1 : i64, tpu.core_type = #tpu.core_type<tc>, window_params = [{transform_indices = @transform_0, window_bounds = array<i64: 2, 32, 256>}, {transform_indices = @transform_1, window_bounds = array<i64: 1, 1, 256>}, {transform_indices = @transform_2, window_bounds = array<i64: 1, 1, 256>}, {transform_indices = @transform_3, window_bounds = array<i64: 1, 256, 512>}, {transform_indices = @transform_4, window_bounds = array<i64: 1, 1, 512>}, {transform_indices = @transform_5, window_bounds = array<i64: 1, 1, 256>}, {transform_indices = @transform_6, window_bounds = array<i64: 1, 1, 256>}, {transform_indices = @transform_7, window_bounds = array<i64: 1, 32, 32>}, {transform_indices = @transform_8, window_bounds = array<i64: 1, 32, 1>}, {transform_indices = @transform_9, window_bounds = array<i64: 1, 256, 256>}, {transform_indices = @transform_10, window_bounds = array<i64: 1, 1, 256>}, {transform_indices = @transform_11, window_bounds = array<i64: 2, 32, 256>}]} {
    %c0_i32 = arith.constant 0 : i32
    %0 = arith.cmpi eq, %arg1, %c0_i32 : i32
    %1 = arith.extui %0 : i1 to i32
    %c0_i32_0 = arith.constant 0 : i32
    %2 = arith.cmpi ne, %1, %c0_i32_0 : i32
    scf.if %2 {
      %c0_58 = arith.constant 0 : index
      %c0_59 = arith.constant 0 : index
      %c0_60 = arith.constant 0 : index
      %115 = vector.load %arg2[%c0_58, %c0_59, %c0_60] : memref<2x32x256xbf16, #tpu.memory_space<vmem>>, vector<2x32x256xbf16>
      %116 = vector.shape_cast %115 : vector<2x32x256xbf16> to vector<64x256xbf16>
      %117 = arith.extf %116 : vector<64x256xbf16> to vector<64x256xf32>
      %c0_61 = arith.constant 0 : index
      %c0_62 = arith.constant 0 : index
      %118 = vector.load %arg14[%c0_61, %c0_62] : memref<64x256xf32, #tpu.memory_space<vmem>>, vector<64x256xf32>
      tpu.vector_store %arg14[%c0_61, %c0_62], %117 {strides = array<i32>} : memref<64x256xf32, #tpu.memory_space<vmem>>, vector<64x256xf32>,
    } else {
    }
    %c0 = arith.constant 0 : index
    %c0_1 = arith.constant 0 : index
    %3 = vector.load %arg14[%c0, %c0_1] : memref<64x256xf32, #tpu.memory_space<vmem>>, vector<64x256xf32>
    %c0_2 = arith.constant 0 : index
    %c0_3 = arith.constant 0 : index
    %c0_4 = arith.constant 0 : index
    %4 = vector.load %arg3[%c0_2, %c0_3, %c0_4] : memref<1x1x256xf32, #tpu.memory_space<vmem>>, vector<1x1x256xf32>
    %5 = vector.shape_cast %4 : vector<1x1x256xf32> to vector<1x256xf32>
    %c0_5 = arith.constant 0 : index
    %c0_6 = arith.constant 0 : index
    %c0_7 = arith.constant 0 : index
    %6 = vector.load %arg4[%c0_5, %c0_6, %c0_7] : memref<1x1x256xf32, #tpu.memory_space<vmem>>, vector<1x1x256xf32>
    %7 = vector.shape_cast %6 : vector<1x1x256xf32> to vector<1x256xf32>
    %cst = arith.constant dense<0.000000e+00> : vector<64xf32>
    %8 = vector.multi_reduction <add>, %3, %cst [1] : vector<64x256xf32> to vector<64xf32>
    %9 = vector.shape_cast %8 : vector<64xf32> to vector<64x1xf32>
    %cst_8 = arith.constant 2.560000e+02 : f32
    %10 = vector.broadcast %cst_8 : f32 to vector<64x1xf32>
    %11 = arith.divf %9, %10 : vector<64x1xf32>
    %12 = vector.broadcast %11 : vector<64x1xf32> to vector<64x256xf32>
    %13 = arith.subf %3, %12 : vector<64x256xf32>
    %14 = arith.mulf %13, %13 : vector<64x256xf32>
    %cst_9 = arith.constant dense<0.000000e+00> : vector<64xf32>
    %15 = vector.multi_reduction <add>, %14, %cst_9 [1] : vector<64x256xf32> to vector<64xf32>
    %16 = vector.shape_cast %15 : vector<64xf32> to vector<64x1xf32>
    %cst_10 = arith.constant 2.560000e+02 : f32
    %17 = vector.broadcast %cst_10 : f32 to vector<64x1xf32>
    %18 = arith.divf %16, %17 : vector<64x1xf32>
    %19 = vector.broadcast %11 : vector<64x1xf32> to vector<64x256xf32>
    %20 = arith.subf %3, %19 : vector<64x256xf32>
    %cst_11 = arith.constant 9.99999974E-6 : f32
    %21 = vector.broadcast %cst_11 : f32 to vector<64x1xf32>
    %22 = arith.addf %18, %21 : vector<64x1xf32>
    %23 = math.rsqrt %22 : vector<64x1xf32>
    %24 = vector.broadcast %23 : vector<64x1xf32> to vector<64x256xf32>
    %25 = arith.mulf %20, %24 : vector<64x256xf32>
    %26 = vector.broadcast %5 : vector<1x256xf32> to vector<64x256xf32>
    %27 = arith.mulf %25, %26 : vector<64x256xf32>
    %28 = vector.broadcast %7 : vector<1x256xf32> to vector<64x256xf32>
    %29 = arith.addf %27, %28 : vector<64x256xf32>
    %30 = arith.truncf %29 : vector<64x256xf32> to vector<64x256xbf16>
    %c0_12 = arith.constant 0 : index
    %c0_13 = arith.constant 0 : index
    %c0_14 = arith.constant 0 : index
    %31 = vector.load %arg5[%c0_12, %c0_13, %c0_14] : memref<1x256x512xbf16, #tpu.memory_space<vmem>>, vector<1x256x512xbf16>
    %32 = vector.shape_cast %31 : vector<1x256x512xbf16> to vector<256x512xbf16>
    %cst_15 = arith.constant dense<0.000000e+00> : vector<64x512xf32>
    %33 = tpu.matmul %30, %32, %cst_15 {dimension_numbers = #tpu.dot_dimension_numbers<[1], [0], [0], [1], [0, 0, 1, 1], [], []>} : vector<64x256xbf16>, vector<256x512xbf16>, vector<64x512xf32> -> vector<64x512xf32>
    %c0_16 = arith.constant 0 : index
    %c0_17 = arith.constant 0 : index
    %c0_18 = arith.constant 0 : index
    %34 = vector.load %arg6[%c0_16, %c0_17, %c0_18] : memref<1x1x512xf32, #tpu.memory_space<vmem>>, vector<1x1x512xf32>
    %35 = vector.shape_cast %34 : vector<1x1x512xf32> to vector<1x512xf32>
    %36 = vector.broadcast %35 : vector<1x512xf32> to vector<64x512xf32>
    %37 = arith.addf %33, %36 : vector<64x512xf32>
    %38 = arith.mulf %37, %37 : vector<64x512xf32>
    %39 = arith.mulf %37, %38 : vector<64x512xf32>
    %cst_19 = arith.constant 4.471500e-02 : f32
    %40 = vector.broadcast %cst_19 : f32 to vector<64x512xf32>
    %41 = arith.mulf %40, %39 : vector<64x512xf32>
    %42 = arith.addf %37, %41 : vector<64x512xf32>
    %cst_20 = arith.constant 0.797884583 : f32
    %43 = vector.broadcast %cst_20 : f32 to vector<64x512xf32>
    %44 = arith.mulf %43, %42 : vector<64x512xf32>
    %45 = math.tanh %44 : vector<64x512xf32>
    %cst_21 = arith.constant 1.000000e+00 : f32
    %46 = vector.broadcast %cst_21 : f32 to vector<64x512xf32>
    %47 = arith.addf %46, %45 : vector<64x512xf32>
    %cst_22 = arith.constant 5.000000e-01 : f32
    %48 = vector.broadcast %cst_22 : f32 to vector<64x512xf32>
    %49 = arith.mulf %48, %47 : vector<64x512xf32>
    %50 = arith.mulf %37, %49 : vector<64x512xf32>
    %51 = vector.extract_strided_slice %50 {offsets = [0, 0], sizes = [64, 256], strides = [1, 1]} : vector<64x512xf32> to vector<64x256xf32>
    %52 = vector.extract_strided_slice %50 {offsets = [0, 256], sizes = [64, 256], strides = [1, 1]} : vector<64x512xf32> to vector<64x256xf32>
    %c0_23 = arith.constant 0 : index
    %c0_24 = arith.constant 0 : index
    %c0_25 = arith.constant 0 : index
    %53 = vector.load %arg7[%c0_23, %c0_24, %c0_25] : memref<1x1x256xf32, #tpu.memory_space<vmem>>, vector<1x1x256xf32>
    %54 = vector.shape_cast %53 : vector<1x1x256xf32> to vector<1x256xf32>
    %c0_26 = arith.constant 0 : index
    %c0_27 = arith.constant 0 : index
    %c0_28 = arith.constant 0 : index
    %55 = vector.load %arg8[%c0_26, %c0_27, %c0_28] : memref<1x1x256xf32, #tpu.memory_space<vmem>>, vector<1x1x256xf32>
    %56 = vector.shape_cast %55 : vector<1x1x256xf32> to vector<1x256xf32>
    %cst_29 = arith.constant dense<0.000000e+00> : vector<64xf32>
    %57 = vector.multi_reduction <add>, %52, %cst_29 [1] : vector<64x256xf32> to vector<64xf32>
    %58 = vector.shape_cast %57 : vector<64xf32> to vector<64x1xf32>
    %cst_30 = arith.constant 2.560000e+02 : f32
    %59 = vector.broadcast %cst_30 : f32 to vector<64x1xf32>
    %60 = arith.divf %58, %59 : vector<64x1xf32>
    %61 = vector.broadcast %60 : vector<64x1xf32> to vector<64x256xf32>
    %62 = arith.subf %52, %61 : vector<64x256xf32>
    %63 = arith.mulf %62, %62 : vector<64x256xf32>
    %cst_31 = arith.constant dense<0.000000e+00> : vector<64xf32>
    %64 = vector.multi_reduction <add>, %63, %cst_31 [1] : vector<64x256xf32> to vector<64xf32>
    %65 = vector.shape_cast %64 : vector<64xf32> to vector<64x1xf32>
    %cst_32 = arith.constant 2.560000e+02 : f32
    %66 = vector.broadcast %cst_32 : f32 to vector<64x1xf32>
    %67 = arith.divf %65, %66 : vector<64x1xf32>
    %68 = vector.broadcast %60 : vector<64x1xf32> to vector<64x256xf32>
    %69 = arith.subf %52, %68 : vector<64x256xf32>
    %cst_33 = arith.constant 9.99999974E-6 : f32
    %70 = vector.broadcast %cst_33 : f32 to vector<64x1xf32>
    %71 = arith.addf %67, %70 : vector<64x1xf32>
    %72 = math.rsqrt %71 : vector<64x1xf32>
    %73 = vector.broadcast %72 : vector<64x1xf32> to vector<64x256xf32>
    %74 = arith.mulf %69, %73 : vector<64x256xf32>
    %75 = vector.broadcast %54 : vector<1x256xf32> to vector<64x256xf32>
    %76 = arith.mulf %74, %75 : vector<64x256xf32>
    %77 = vector.broadcast %56 : vector<1x256xf32> to vector<64x256xf32>
    %78 = arith.addf %76, %77 : vector<64x256xf32>
    %79 = vector.extract_strided_slice %78 {offsets = [0, 0], sizes = [32, 256], strides = [1, 1]} : vector<64x256xf32> to vector<32x256xf32>
    %80 = arith.truncf %79 : vector<32x256xf32> to vector<32x256xbf16>
    %c0_34 = arith.constant 0 : index
    %c0_35 = arith.constant 0 : index
    %c0_36 = arith.constant 0 : index
    %81 = vector.load %arg9[%c0_34, %c0_35, %c0_36] : memref<1x32x32xbf16, #tpu.memory_space<vmem>>, vector<1x32x32xbf16>
    %82 = vector.shape_cast %81 : vector<1x32x32xbf16> to vector<32x32xbf16>
    %cst_37 = arith.constant dense<0.000000e+00> : vector<32x256xf32>
    %83 = tpu.matmul %82, %80, %cst_37 {dimension_numbers = #tpu.dot_dimension_numbers<[1], [0], [0], [1], [0, 0, 1, 1], [], []>} : vector<32x32xbf16>, vector<32x256xbf16>, vector<32x256xf32> -> vector<32x256xf32>
    %c0_38 = arith.constant 0 : index
    %c0_39 = arith.constant 0 : index
    %c0_40 = arith.constant 0 : index
    %84 = vector.load %arg10[%c0_38, %c0_39, %c0_40] : memref<1x32x1xf32, #tpu.memory_space<vmem>>, vector<1x32x1xf32>
    %85 = vector.shape_cast %84 : vector<1x32x1xf32> to vector<32x1xf32>
    %86 = vector.broadcast %85 : vector<32x1xf32> to vector<32x256xf32>
    %87 = arith.addf %83, %86 : vector<32x256xf32>
    %88 = vector.extract_strided_slice %51 {offsets = [0, 0], sizes = [32, 256], strides = [1, 1]} : vector<64x256xf32> to vector<32x256xf32>
    %89 = arith.mulf %88, %87 : vector<32x256xf32>
    %90 = vector.extract_strided_slice %78 {offsets = [32, 0], sizes = [32, 256], strides = [1, 1]} : vector<64x256xf32> to vector<32x256xf32>
    %91 = arith.truncf %90 : vector<32x256xf32> to vector<32x256xbf16>
    %c0_41 = arith.constant 0 : index
    %c0_42 = arith.constant 0 : index
    %c0_43 = arith.constant 0 : index
    %92 = vector.load %arg9[%c0_41, %c0_42, %c0_43] : memref<1x32x32xbf16, #tpu.memory_space<vmem>>, vector<1x32x32xbf16>
    %93 = vector.shape_cast %92 : vector<1x32x32xbf16> to vector<32x32xbf16>
    %cst_44 = arith.constant dense<0.000000e+00> : vector<32x256xf32>
    %94 = tpu.matmul %93, %91, %cst_44 {dimension_numbers = #tpu.dot_dimension_numbers<[1], [0], [0], [1], [0, 0, 1, 1], [], []>} : vector<32x32xbf16>, vector<32x256xbf16>, vector<32x256xf32> -> vector<32x256xf32>
    %c0_45 = arith.constant 0 : index
    %c0_46 = arith.constant 0 : index
    %c0_47 = arith.constant 0 : index
    %95 = vector.load %arg10[%c0_45, %c0_46, %c0_47] : memref<1x32x1xf32, #tpu.memory_space<vmem>>, vector<1x32x1xf32>
    %96 = vector.shape_cast %95 : vector<1x32x1xf32> to vector<32x1xf32>
    %97 = vector.broadcast %96 : vector<32x1xf32> to vector<32x256xf32>
    %98 = arith.addf %94, %97 : vector<32x256xf32>
    %99 = vector.extract_strided_slice %51 {offsets = [32, 0], sizes = [32, 256], strides = [1, 1]} : vector<64x256xf32> to vector<32x256xf32>
    %100 = arith.mulf %99, %98 : vector<32x256xf32>
    %101 = tpu.concatenate %89, %100 in 0 : vector<32x256xf32>, vector<32x256xf32> -> vector<64x256xf32>
    %102 = arith.truncf %101 : vector<64x256xf32> to vector<64x256xbf16>
    %c0_48 = arith.constant 0 : index
    %c0_49 = arith.constant 0 : index
    %c0_50 = arith.constant 0 : index
    %103 = vector.load %arg11[%c0_48, %c0_49, %c0_50] : memref<1x256x256xbf16, #tpu.memory_space<vmem>>, vector<1x256x256xbf16>
    %104 = vector.shape_cast %103 : vector<1x256x256xbf16> to vector<256x256xbf16>
    %cst_51 = arith.constant dense<0.000000e+00> : vector<64x256xf32>
    %105 = tpu.matmul %102, %104, %cst_51 {dimension_numbers = #tpu.dot_dimension_numbers<[1], [0], [0], [1], [0, 0, 1, 1], [], []>} : vector<64x256xbf16>, vector<256x256xbf16>, vector<64x256xf32> -> vector<64x256xf32>
    %c0_52 = arith.constant 0 : index
    %c0_53 = arith.constant 0 : index
    %c0_54 = arith.constant 0 : index
    %106 = vector.load %arg12[%c0_52, %c0_53, %c0_54] : memref<1x1x256xf32, #tpu.memory_space<vmem>>, vector<1x1x256xf32>
    %107 = vector.shape_cast %106 : vector<1x1x256xf32> to vector<1x256xf32>
    %108 = vector.broadcast %107 : vector<1x256xf32> to vector<64x256xf32>
    %109 = arith.addf %105, %108 : vector<64x256xf32>
    %110 = arith.addf %3, %109 : vector<64x256xf32>
    %c0_55 = arith.constant 0 : index
    %c0_56 = arith.constant 0 : index
    %111 = vector.load %arg14[%c0_55, %c0_56] : memref<64x256xf32, #tpu.memory_space<vmem>>, vector<64x256xf32>
    tpu.vector_store %arg14[%c0_55, %c0_56], %110 {strides = array<i32>} : memref<64x256xf32, #tpu.memory_space<vmem>>, vector<64x256xf32>,
    %c1_i32 = arith.constant 1 : i32
    %112 = arith.cmpi eq, %arg1, %c1_i32 : i32
    %113 = arith.extui %112 : i1 to i32
    %c0_i32_57 = arith.constant 0 : i32
    %114 = arith.cmpi ne, %113, %c0_i32_57 : i32
    scf.if %114 {
      %c0_58 = arith.constant 0 : index
      %c0_59 = arith.constant 0 : index
      %115 = vector.load %arg14[%c0_58, %c0_59] : memref<64x256xf32, #tpu.memory_space<vmem>>, vector<64x256xf32>
      %116 = vector.shape_cast %115 : vector<64x256xf32> to vector<2x32x256xf32>
      %117 = arith.truncf %116 : vector<2x32x256xf32> to vector<2x32x256xbf16>
      %c0_60 = arith.constant 0 : index
      %c0_61 = arith.constant 0 : index
      %c0_62 = arith.constant 0 : index
      %118 = vector.load %arg13[%c0_60, %c0_61, %c0_62] : memref<2x32x256xbf16, #tpu.memory_space<vmem>>, vector<2x32x256xbf16>
      tpu.vector_store %arg13[%c0_60, %c0_61, %c0_62], %117 {strides = array<i32>} : memref<2x32x256xbf16, #tpu.memory_space<vmem>>, vector<2x32x256xbf16>,
    } else {
    }
    return
  }
  func.func @transform_0(%arg0: i32, %arg1: i32) -> (i32, i32, i32) {
    %c0_i32 = arith.constant 0 : i32
    %c0_i32_0 = arith.constant 0 : i32
    %c0_i32_1 = arith.constant 0 : i32
    return %arg0, %c0_i32, %c0_i32_0 : i32, i32, i32
  }
  func.func @transform_1(%arg0: i32, %arg1: i32) -> (i32, i32, i32) {
    %c0_i32 = arith.constant 0 : i32
    %c0_i32_0 = arith.constant 0 : i32
    %c0_i32_1 = arith.constant 0 : i32
    return %arg1, %c0_i32, %c0_i32_0 : i32, i32, i32
  }
  func.func @transform_2(%arg0: i32, %arg1: i32) -> (i32, i32, i32) {
    %c0_i32 = arith.constant 0 : i32
    %c0_i32_0 = arith.constant 0 : i32
    %c0_i32_1 = arith.constant 0 : i32
    return %arg1, %c0_i32, %c0_i32_0 : i32, i32, i32
  }
  func.func @transform_3(%arg0: i32, %arg1: i32) -> (i32, i32, i32) {
    %c0_i32 = arith.constant 0 : i32
    %c0_i32_0 = arith.constant 0 : i32
    %c0_i32_1 = arith.constant 0 : i32
    return %arg1, %c0_i32, %c0_i32_0 : i32, i32, i32
  }
  func.func @transform_4(%arg0: i32, %arg1: i32) -> (i32, i32, i32) {
    %c0_i32 = arith.constant 0 : i32
    %c0_i32_0 = arith.constant 0 : i32
    %c0_i32_1 = arith.constant 0 : i32
    return %arg1, %c0_i32, %c0_i32_0 : i32, i32, i32
  }
  func.func @transform_5(%arg0: i32, %arg1: i32) -> (i32, i32, i32) {
    %c0_i32 = arith.constant 0 : i32
    %c0_i32_0 = arith.constant 0 : i32
    %c0_i32_1 = arith.constant 0 : i32
    return %arg1, %c0_i32, %c0_i32_0 : i32, i32, i32
  }
  func.func @transform_6(%arg0: i32, %arg1: i32) -> (i32, i32, i32) {
    %c0_i32 = arith.constant 0 : i32
    %c0_i32_0 = arith.constant 0 : i32
    %c0_i32_1 = arith.constant 0 : i32
    return %arg1, %c0_i32, %c0_i32_0 : i32, i32, i32
  }
  func.func @transform_7(%arg0: i32, %arg1: i32) -> (i32, i32, i32) {
    %c0_i32 = arith.constant 0 : i32
    %c0_i32_0 = arith.constant 0 : i32
    %c0_i32_1 = arith.constant 0 : i32
    return %arg1, %c0_i32, %c0_i32_0 : i32, i32, i32
  }
  func.func @transform_8(%arg0: i32, %arg1: i32) -> (i32, i32, i32) {
    %c0_i32 = arith.constant 0 : i32
    %c0_i32_0 = arith.constant 0 : i32
    %c0_i32_1 = arith.constant 0 : i32
    return %arg1, %c0_i32, %c0_i32_0 : i32, i32, i32
  }
  func.func @transform_9(%arg0: i32, %arg1: i32) -> (i32, i32, i32) {
    %c0_i32 = arith.constant 0 : i32
    %c0_i32_0 = arith.constant 0 : i32
    %c0_i32_1 = arith.constant 0 : i32
    return %arg1, %c0_i32, %c0_i32_0 : i32, i32, i32
  }
  func.func @transform_10(%arg0: i32, %arg1: i32) -> (i32, i32, i32) {
    %c0_i32 = arith.constant 0 : i32
    %c0_i32_0 = arith.constant 0 : i32
    %c0_i32_1 = arith.constant 0 : i32
    return %arg1, %c0_i32, %c0_i32_0 : i32, i32, i32
  }
  func.func @transform_11(%arg0: i32, %arg1: i32) -> (i32, i32, i32) {
    %c0_i32 = arith.constant 0 : i32
    %c0_i32_0 = arith.constant 0 : i32
    %c0_i32_1 = arith.constant 0 : i32
    return %arg0, %c0_i32, %c0_i32_0 : i32, i32, i32
  }
}

module attributes {stable_mosaic.version = 11 : i64} {
  func.func @head_logits_lse_kernel(%arg0: i32, %arg1: i32, %arg2: memref<2x32x256xbf16, #tpu.memory_space<vmem>>, %arg3: memref<256x256xbf16, #tpu.memory_space<vmem>>, %arg4: memref<1x256xf32, #tpu.memory_space<vmem>>, %arg5: memref<2x32x256xbf16, #tpu.memory_space<vmem>>, %arg6: memref<2x32x1xf32, #tpu.memory_space<vmem>>, %arg7: memref<64x1xf32, #tpu.memory_space<vmem>>, %arg8: memref<64x1xf32, #tpu.memory_space<vmem>>) attributes {dimension_semantics = [#tpu.dimension_semantics<parallel>, #tpu.dimension_semantics<arbitrary>], iteration_bounds = array<i64: 2, 2>, scalar_prefetch = 0 : i64, scratch_operands = 2 : i64, tpu.core_type = #tpu.core_type<tc>, window_params = [{transform_indices = @transform_0, window_bounds = array<i64: 2, 32, 256>}, {transform_indices = @transform_1, window_bounds = array<i64: 256, 256>}, {transform_indices = @transform_2, window_bounds = array<i64: 1, 256>}, {transform_indices = @transform_3, window_bounds = array<i64: 2, 32, 256>}, {transform_indices = @transform_4, window_bounds = array<i64: 2, 32, 1>}]} {
    %c0_i32 = arith.constant 0 : i32
    %0 = arith.cmpi eq, %arg1, %c0_i32 : i32
    %1 = arith.extui %0 : i1 to i32
    %c0_i32_0 = arith.constant 0 : i32
    %2 = arith.cmpi ne, %1, %c0_i32_0 : i32
    scf.if %2 {
      %cst_21 = arith.constant 0xFF800000 : f32
      %32 = vector.broadcast %cst_21 : f32 to vector<64x1xf32>
      %c0_22 = arith.constant 0 : index
      %c0_23 = arith.constant 0 : index
      %33 = vector.load %arg7[%c0_22, %c0_23] : memref<64x1xf32, #tpu.memory_space<vmem>>, vector<64x1xf32>
      tpu.vector_store %arg7[%c0_22, %c0_23], %32 {strides = array<i32>} : memref<64x1xf32, #tpu.memory_space<vmem>>, vector<64x1xf32>,
      %cst_24 = arith.constant 0.000000e+00 : f32
      %34 = vector.broadcast %cst_24 : f32 to vector<64x1xf32>
      %c0_25 = arith.constant 0 : index
      %c0_26 = arith.constant 0 : index
      %35 = vector.load %arg8[%c0_25, %c0_26] : memref<64x1xf32, #tpu.memory_space<vmem>>, vector<64x1xf32>
      tpu.vector_store %arg8[%c0_25, %c0_26], %34 {strides = array<i32>} : memref<64x1xf32, #tpu.memory_space<vmem>>, vector<64x1xf32>,
    } else {
    }
    %c0 = arith.constant 0 : index
    %c0_1 = arith.constant 0 : index
    %c0_2 = arith.constant 0 : index
    %3 = vector.load %arg2[%c0, %c0_1, %c0_2] : memref<2x32x256xbf16, #tpu.memory_space<vmem>>, vector<2x32x256xbf16>
    %4 = vector.shape_cast %3 : vector<2x32x256xbf16> to vector<64x256xbf16>
    %c0_3 = arith.constant 0 : index
    %c0_4 = arith.constant 0 : index
    %5 = vector.load %arg3[%c0_3, %c0_4] : memref<256x256xbf16, #tpu.memory_space<vmem>>, vector<256x256xbf16>
    %cst = arith.constant dense<0.000000e+00> : vector<64x256xf32>
    %6 = tpu.matmul %4, %5, %cst {dimension_numbers = #tpu.dot_dimension_numbers<[1], [0], [0], [1], [0, 0, 1, 1], [], []>} : vector<64x256xbf16>, vector<256x256xbf16>, vector<64x256xf32> -> vector<64x256xf32>
    %c0_5 = arith.constant 0 : index
    %c0_6 = arith.constant 0 : index
    %7 = vector.load %arg4[%c0_5, %c0_6] : memref<1x256xf32, #tpu.memory_space<vmem>>, vector<1x256xf32>
    %8 = vector.broadcast %7 : vector<1x256xf32> to vector<64x256xf32>
    %9 = arith.addf %6, %8 : vector<64x256xf32>
    %10 = vector.shape_cast %9 : vector<64x256xf32> to vector<2x32x256xf32>
    %11 = arith.truncf %10 : vector<2x32x256xf32> to vector<2x32x256xbf16>
    %c0_7 = arith.constant 0 : index
    %c0_8 = arith.constant 0 : index
    %c0_9 = arith.constant 0 : index
    %12 = vector.load %arg5[%c0_7, %c0_8, %c0_9] : memref<2x32x256xbf16, #tpu.memory_space<vmem>>, vector<2x32x256xbf16>
    tpu.vector_store %arg5[%c0_7, %c0_8, %c0_9], %11 {strides = array<i32>} : memref<2x32x256xbf16, #tpu.memory_space<vmem>>, vector<2x32x256xbf16>,
    %c0_10 = arith.constant 0 : index
    %c0_11 = arith.constant 0 : index
    %13 = vector.load %arg7[%c0_10, %c0_11] : memref<64x1xf32, #tpu.memory_space<vmem>>, vector<64x1xf32>
    %cst_12 = arith.constant dense<0xFF800000> : vector<64xf32>
    %14 = vector.multi_reduction <maximumf>, %9, %cst_12 [1] : vector<64x256xf32> to vector<64xf32>
    %15 = vector.shape_cast %14 : vector<64xf32> to vector<64x1xf32>
    %16 = arith.maximumf %13, %15 : vector<64x1xf32>
    %c0_13 = arith.constant 0 : index
    %c0_14 = arith.constant 0 : index
    %17 = vector.load %arg8[%c0_13, %c0_14] : memref<64x1xf32, #tpu.memory_space<vmem>>, vector<64x1xf32>
    %18 = arith.subf %13, %16 : vector<64x1xf32>
    %19 = math.exp %18 : vector<64x1xf32>
    %20 = arith.mulf %17, %19 : vector<64x1xf32>
    %21 = vector.broadcast %16 : vector<64x1xf32> to vector<64x256xf32>
    %22 = arith.subf %9, %21 : vector<64x256xf32>
    %23 = math.exp %22 : vector<64x256xf32>
    %cst_15 = arith.constant dense<0.000000e+00> : vector<64xf32>
    %24 = vector.multi_reduction <add>, %23, %cst_15 [1] : vector<64x256xf32> to vector<64xf32>
    %25 = vector.shape_cast %24 : vector<64xf32> to vector<64x1xf32>
    %26 = arith.addf %20, %25 : vector<64x1xf32>
    %c0_16 = arith.constant 0 : index
    %c0_17 = arith.constant 0 : index
    %27 = vector.load %arg8[%c0_16, %c0_17] : memref<64x1xf32, #tpu.memory_space<vmem>>, vector<64x1xf32>
    tpu.vector_store %arg8[%c0_16, %c0_17], %26 {strides = array<i32>} : memref<64x1xf32, #tpu.memory_space<vmem>>, vector<64x1xf32>,
    %c0_18 = arith.constant 0 : index
    %c0_19 = arith.constant 0 : index
    %28 = vector.load %arg7[%c0_18, %c0_19] : memref<64x1xf32, #tpu.memory_space<vmem>>, vector<64x1xf32>
    tpu.vector_store %arg7[%c0_18, %c0_19], %16 {strides = array<i32>} : memref<64x1xf32, #tpu.memory_space<vmem>>, vector<64x1xf32>,
    %c1_i32 = arith.constant 1 : i32
    %29 = arith.cmpi eq, %arg1, %c1_i32 : i32
    %30 = arith.extui %29 : i1 to i32
    %c0_i32_20 = arith.constant 0 : i32
    %31 = arith.cmpi ne, %30, %c0_i32_20 : i32
    scf.if %31 {
      %c0_21 = arith.constant 0 : index
      %c0_22 = arith.constant 0 : index
      %32 = vector.load %arg7[%c0_21, %c0_22] : memref<64x1xf32, #tpu.memory_space<vmem>>, vector<64x1xf32>
      %c0_23 = arith.constant 0 : index
      %c0_24 = arith.constant 0 : index
      %33 = vector.load %arg8[%c0_23, %c0_24] : memref<64x1xf32, #tpu.memory_space<vmem>>, vector<64x1xf32>
      %34 = math.log %33 : vector<64x1xf32>
      %35 = arith.addf %32, %34 : vector<64x1xf32>
      %36 = vector.shape_cast %35 : vector<64x1xf32> to vector<2x32x1xf32>
      %c0_25 = arith.constant 0 : index
      %c0_26 = arith.constant 0 : index
      %c0_27 = arith.constant 0 : index
      %37 = vector.load %arg6[%c0_25, %c0_26, %c0_27] : memref<2x32x1xf32, #tpu.memory_space<vmem>>, vector<2x32x1xf32>
      tpu.vector_store %arg6[%c0_25, %c0_26, %c0_27], %36 {strides = array<i32>} : memref<2x32x1xf32, #tpu.memory_space<vmem>>, vector<2x32x1xf32>,
    } else {
    }
    return
  }
  func.func @transform_0(%arg0: i32, %arg1: i32) -> (i32, i32, i32) {
    %c0_i32 = arith.constant 0 : i32
    %c0_i32_0 = arith.constant 0 : i32
    %c0_i32_1 = arith.constant 0 : i32
    return %arg0, %c0_i32, %c0_i32_0 : i32, i32, i32
  }
  func.func @transform_1(%arg0: i32, %arg1: i32) -> (i32, i32) {
    %c0_i32 = arith.constant 0 : i32
    %c0_i32_0 = arith.constant 0 : i32
    return %c0_i32, %arg1 : i32, i32
  }
  func.func @transform_2(%arg0: i32, %arg1: i32) -> (i32, i32) {
    %c0_i32 = arith.constant 0 : i32
    %c0_i32_0 = arith.constant 0 : i32
    return %c0_i32, %arg1 : i32, i32
  }
  func.func @transform_3(%arg0: i32, %arg1: i32) -> (i32, i32, i32) {
    %c0_i32 = arith.constant 0 : i32
    %c0_i32_0 = arith.constant 0 : i32
    return %arg0, %c0_i32, %arg1 : i32, i32, i32
  }
  func.func @transform_4(%arg0: i32, %arg1: i32) -> (i32, i32, i32) {
    %c0_i32 = arith.constant 0 : i32
    %c0_i32_0 = arith.constant 0 : i32
    %c0_i32_1 = arith.constant 0 : i32
    return %arg0, %c0_i32, %c0_i32_0 : i32, i32, i32
  }
}

module attributes {stable_mosaic.version = 11 : i64} {
  func.func @head_norm_kernel(%arg0: i32, %arg1: i32, %arg2: memref<2x32x256xbf16, #tpu.memory_space<vmem>>, %arg3: memref<2x32x1xf32, #tpu.memory_space<vmem>>, %arg4: memref<2x32x256xbf16, #tpu.memory_space<vmem>>) attributes {dimension_semantics = [#tpu.dimension_semantics<parallel>, #tpu.dimension_semantics<parallel>], iteration_bounds = array<i64: 2, 2>, scalar_prefetch = 0 : i64, scratch_operands = 0 : i64, tpu.core_type = #tpu.core_type<tc>, window_params = [{transform_indices = @transform_0, window_bounds = array<i64: 2, 32, 256>}, {transform_indices = @transform_1, window_bounds = array<i64: 2, 32, 1>}, {transform_indices = @transform_2, window_bounds = array<i64: 2, 32, 256>}]} {
    %c0 = arith.constant 0 : index
    %c0_0 = arith.constant 0 : index
    %c0_1 = arith.constant 0 : index
    %0 = vector.load %arg2[%c0, %c0_0, %c0_1] : memref<2x32x256xbf16, #tpu.memory_space<vmem>>, vector<2x32x256xbf16>
    %1 = arith.extf %0 : vector<2x32x256xbf16> to vector<2x32x256xf32>
    %c0_2 = arith.constant 0 : index
    %c0_3 = arith.constant 0 : index
    %c0_4 = arith.constant 0 : index
    %2 = vector.load %arg3[%c0_2, %c0_3, %c0_4] : memref<2x32x1xf32, #tpu.memory_space<vmem>>, vector<2x32x1xf32>
    %3 = vector.broadcast %2 : vector<2x32x1xf32> to vector<2x32x256xf32>
    %4 = arith.subf %1, %3 : vector<2x32x256xf32>
    %5 = arith.truncf %4 : vector<2x32x256xf32> to vector<2x32x256xbf16>
    %c0_5 = arith.constant 0 : index
    %c0_6 = arith.constant 0 : index
    %c0_7 = arith.constant 0 : index
    %6 = vector.load %arg4[%c0_5, %c0_6, %c0_7] : memref<2x32x256xbf16, #tpu.memory_space<vmem>>, vector<2x32x256xbf16>
    tpu.vector_store %arg4[%c0_5, %c0_6, %c0_7], %5 {strides = array<i32>} : memref<2x32x256xbf16, #tpu.memory_space<vmem>>, vector<2x32x256xbf16>,
    return
  }
  func.func @transform_0(%arg0: i32, %arg1: i32) -> (i32, i32, i32) {
    %c0_i32 = arith.constant 0 : i32
    %c0_i32_0 = arith.constant 0 : i32
    return %arg0, %c0_i32, %arg1 : i32, i32, i32
  }
  func.func @transform_1(%arg0: i32, %arg1: i32) -> (i32, i32, i32) {
    %c0_i32 = arith.constant 0 : i32
    %c0_i32_0 = arith.constant 0 : i32
    %c0_i32_1 = arith.constant 0 : i32
    return %arg0, %c0_i32, %c0_i32_0 : i32, i32, i32
  }
  func.func @transform_2(%arg0: i32, %arg1: i32) -> (i32, i32, i32) {
    %c0_i32 = arith.constant 0 : i32
    %c0_i32_0 = arith.constant 0 : i32
    return %arg0, %c0_i32, %arg1 : i32, i32, i32
  }
}

</mosaic_0001>

<llo_original>
// kernel: _lambda_.5
$region0: #{_lambda_.5}
  #allocation0 [shape = 'u32[]', space=smem, size = 0x4, offset = 0x4, fixed_abs, tag = 'smem constant byte address 0x4 - core index']
  #allocation1 [shape = 'u32[72,128]{1,0:T(1,128)}', space=vmem, size = 0x9000, scoped, tag = 'internal scratch']
  %s0 = inlined_call_operand.hbm [shape: bf16[4,32,512], index: 0, kind: input, shape index: {}, may-alias: {0,2}]
  %s1 = inlined_call_operand.vmem [shape: f32[4,32,1], index: 1, kind: input, shape index: {}]
  %s2 = inlined_call_operand.hbm [shape: bf16[4,32,512], index: 2, kind: output, shape index: {}, may-alias: {0,2}]
  %s3 = sld [smem:[#allocation0]]
  $region45: #{_lambda_.5} parent=0
    _
  %s5 = ssub.s32 1, %s3
  %s6 = scalar_select 0, %s5, %s3
  $region1: #{_lambda_.5} parent=0
    #allocation2 [shape = 'u8[65536]{0}', space=vmem, size = 0x10000, scoped, tag = 'input window, operand 0']
    #allocation3 [shape = 's32[2]{0}', space=sflag, size = 0x8, scoped, tag = 'scoped memory for _lambda_.5']
    #allocation4 [shape = 's32[2]{0}', space=sflag, size = 0x8, scoped, tag = 'scoped memory for _lambda_.5']
    #allocation5 [shape = 'u8[65536]{0}', space=vmem, size = 0x10000, scoped, tag = 'output window, operand 0']
    %7 = vsyncpa [#allocation3], 0
    %s8 = scalar_lea.sflag [#allocation3], 1
    %9 = vsyncpa %s8, 0
    %10 = vsyncpa [#allocation4], 0
    %s11 = scalar_lea.sflag [#allocation4], 1
    %12 = vsyncpa %s11, 0
    loop: start=0, step=1, limit=6
    $region2: #{_lambda_.5} parent=1 // loop_pre_header
      _
    $region3: #{_lambda_.5} parent=1 // loop_header
      %s14 = sphi 0, %s18
      %p15 = scmp.ge.s32.totalorder %s14, 6
      %s21 = sphi 0, %s33
      %s22 = sphi 0, %s29
      %s23 = sphi 0, %s21
      %s24 = sphi 0, %s22
      %s25 = sphi 0, %s23
      %s26 = sphi 0, %s24
      %s38 = sphi 0, %s40
      %s41 = sphi 0, %s38
      %s42 = sphi 0, %s41
      %s58 = sphi 0, %s42
      %s64 = sphi 0, %s66
      %s67 = sphi 0, %s64
      %s68 = sphi 0, %s67
      %s84 = sphi 0, %s68
      %s92 = sphi 0, %s94
      %s95 = sphi 0, %s92
      %s96 = sphi 0, %s95
      %s112 = sphi 0, %s96
    $region4: #{_lambda_.5} parent=1 // loop_header_branch
      %17 = sbr.rel (%p15) target = $region8
    $region5: #{_lambda_.5} parent=1 // loop_body
      %s19 = ssub.s32 %s14, 1
      %s20 = ssub.s32 %s14, 2
      %s27 = sadd.s32 1, %s22
      %p28 = scmp.ge.s32.totalorder %s27, 2
      %s29 = scalar_select %p28, 0, %s27
      %s30 = sadd.s32 1, %s21
      %s31 = scalar_select %p28, %s30, %s21
      %p32 = scmp.ge.s32.totalorder %s31, 2
      %s33 = scalar_select %p32, 0, %s31
      %s34 = ssub.s32 %s21, %s33
      %s35 = ssub.s32 %s22, %s29
      %s36 = sor.u32 %s34, %s35
      %p37 = scmp.eq.s32.totalorder %s36, 0
      %s39 = sadd.s32 %s38, 1
      %s40 = scalar_select %p37, %s38, %s39
      %p43 = pneg %p37
      %p44 = scmp.eq.s32.totalorder %s14, 3
      %p45 = por %p43, %p44
      %p46 = scmp.ne.s32.totalorder %s38, %s41
      %p47 = scmp.eq.s32.totalorder %s14, 0
      %p48 = por %p46, %p47
      %p49 = scmp.ne.s32.totalorder %s38, %s41
      %p50 = scmp.eq.s32.totalorder %s19, 3
      %p51 = por %p49, %p50
      %p52 = scmp.ne.s32.totalorder %s41, %s42
      %p53 = scmp.eq.s32.totalorder %s19, 0
      %p54 = por %p52, %p53
      %p55 = scmp.ne.s32.totalorder %s41, %s42
      %p56 = scmp.eq.s32.totalorder %s20, 3
      %p57 = por %p55, %p56
      %p59 = scmp.ne.s32.totalorder %s42, %s58
      %p60 = scmp.eq.s32.totalorder %s20, 0
      %p61 = por %p59, %p60
      %s62 = ssub.s32 %s21, %s33
      %p63 = scmp.eq.s32.totalorder %s62, 0
      %s65 = sadd.s32 %s64, 1
      %s66 = scalar_select %p63, %s64, %s65
      %p69 = pneg %p63
      %p70 = scmp.eq.s32.totalorder %s14, 3
      %p71 = por %p69, %p70
      %p72 = scmp.ne.s32.totalorder %s64, %s67
      %p73 = scmp.eq.s32.totalorder %s14, 0
      %p74 = por %p72, %p73
      %p75 = scmp.ne.s32.totalorder %s64, %s67
      %p76 = scmp.eq.s32.totalorder %s19, 3
      %p77 = por %p75, %p76
      %p78 = scmp.ne.s32.totalorder %s67, %s68
      %p79 = scmp.eq.s32.totalorder %s19, 0
      %p80 = por %p78, %p79
      %p81 = scmp.ne.s32.totalorder %s67, %s68
      %p82 = scmp.eq.s32.totalorder %s20, 3
      %p83 = por %p81, %p82
      %p85 = scmp.ne.s32.totalorder %s68, %s84
      %p86 = scmp.eq.s32.totalorder %s20, 0
      %p87 = por %p85, %p86
      %s88 = ssub.s32 %s21, %s33
      %s89 = ssub.s32 %s22, %s29
      %s90 = sor.u32 %s88, %s89
      %p91 = scmp.eq.s32.totalorder %s90, 0
      %s93 = sadd.s32 %s92, 1
      %s94 = scalar_select %p91, %s92, %s93
      %p97 = pneg %p91
      %p98 = scmp.eq.s32.totalorder %s14, 3
      %p99 = por %p97, %p98
      %p100 = scmp.ne.s32.totalorder %s92, %s95
      %p101 = scmp.eq.s32.totalorder %s14, 0
      %p102 = por %p100, %p101
      %p103 = scmp.ne.s32.totalorder %s92, %s95
      %p104 = scmp.eq.s32.totalorder %s19, 3
      %p105 = por %p103, %p104
      %p106 = scmp.ne.s32.totalorder %s95, %s96
      %p107 = scmp.eq.s32.totalorder %s19, 0
      %p108 = por %p106, %p107
      %p109 = scmp.ne.s32.totalorder %s95, %s96
      %p110 = scmp.eq.s32.totalorder %s20, 3
      %p111 = por %p109, %p110
      %p113 = scmp.ne.s32.totalorder %s96, %s112
      %p114 = scmp.eq.s32.totalorder %s20, 0
      %p115 = por %p113, %p114
      %p116 = scmp.le.s32.totalorder 1, %s14
      %p117 = scmp.lt.s32.totalorder %s14, 5
      %p118 = pnand %p116, %p117
      %p119 = pneg %p118
      // Predicated region
      $region9: #{_lambda_.5} parent=5 // pred_check
        _
      $region10: #{_lambda_.5} parent=5 // pred_check_branch
        %121 = sbr.rel (%p118) target = $region12
      $region11: #{_lambda_.5} parent=5 // pred_region
        %s122 = ssub.s32 %s14, 1
      $region12: #{_lambda_.5} parent=5 // pred_fallthru
        _
      %p123 = scmp.lt.s32.totalorder %s14, 4
      // Predicated region
      $region13: #{_lambda_.5} parent=5 // pred_check
        %p124 = pneg %p123
      $region14: #{_lambda_.5} parent=5 // pred_check_branch
        %126 = sbr.rel (%p124) target = $region16
      $region15: #{_lambda_.5} parent=5 // pred_region
        // Predicated region
        $region17: #{_lambda_.5} parent=15 // pred_check
          %p127 = pneg %p48
        $region18: #{_lambda_.5} parent=15 // pred_check_branch
          %129 = sbr.rel (%p127) target = $region20
        $region19: #{_lambda_.5} parent=15 // pred_region
          %s130 = sand.u32 %s38, 1
          %s131 = scalar_lea.sflag [#allocation3], %s130
          %s132 = sand.u32 %s38, 1
          %s133 = smul.addr %s132, 64
          %s134 = scalar_lea.vmem [#allocation2], %s133
          %s135 = smul.u32 2, %s21
          %s136 = smul.u32 2, %s22
          %138 = vsyncadd %s131, 0
          %s139 = smul.addr %s135, 16
          %s140 = sadd.s32 %s136, %s139
          %s141 = smul.addr %s140, 4
          %s142 = scalar_lea.hbm %s0, %s141
          %s143 = sshll.u32 %s142, 4
          %s144 = int_to_ptr.hbm [resolvable:$true] %s143
          %s145 = sshll.u32 %s134, 4
          %s146 = int_to_ptr.vmem [resolvable:$true] %s145
          %151 = dma.hbm_to_vmem [thread:$0]  %s144, 1024, %s146, %s131, 256, 128, 8
        $region20: #{_lambda_.5} parent=15 // pred_fallthru
          _
        // Predicated region
        $region21: #{_lambda_.5} parent=15 // pred_check
          %p152 = pneg %p74
        $region22: #{_lambda_.5} parent=15 // pred_check_branch
          %154 = sbr.rel (%p152) target = $region24
        $region23: #{_lambda_.5} parent=15 // pred_region
          %s155 = smul.u32 2, %s21
          %p156 = scmp.lt.s32.totalorder %s155, 3
          %s157 = scalar_select %p156, %s155, 3
          %s158 = smul.addr %s157, 4
          %s159 = smul.addr %s158, 8
          %s160 = scalar_lea.vmem %s1, %s159
          %s161 = smul.u32 2, %s21
        $region24: #{_lambda_.5} parent=15 // pred_fallthru
          _
      $region16: #{_lambda_.5} parent=5 // pred_fallthru
        _
      %p162 = scmp.le.s32.totalorder 1, %s14
      %p163 = scmp.lt.s32.totalorder %s14, 5
      %p164 = pnand %p162, %p163
      %p165 = pneg %p164
      // Predicated region
      $region25: #{_lambda_.5} parent=5 // pred_check
        _
      $region26: #{_lambda_.5} parent=5 // pred_check_branch
        %167 = sbr.rel (%p164) target = $region28
      $region27: #{_lambda_.5} parent=5 // pred_region
        %s168 = ssub.s32 %s14, 1
        %s169 = sand.u32 %s41, 1
        %s170 = scalar_lea.sflag [#allocation3], %s169
        %s171 = sand.u32 %s41, 1
        %s172 = smul.addr %s171, 64
        %s173 = scalar_lea.vmem [#allocation2], %s172
        // Predicated region
        $region29: #{_lambda_.5} parent=27 // pred_check
          %p174 = pneg %p54
        $region30: #{_lambda_.5} parent=27 // pred_check_branch
          %176 = sbr.rel (%p174) target = $region32
        $region31: #{_lambda_.5} parent=27 // pred_region
          %178 = dma.done %s170, 1024
        $region32: #{_lambda_.5} parent=27 // pred_fallthru
          _
        %s179 = sand.u32 %s41, 1
        %s180 = scalar_lea.sflag [#allocation3], %s179
        %s181 = sand.u32 %s41, 1
        %s182 = smul.addr %s181, 64
        %s183 = scalar_lea.vmem [#allocation2], %s182
        %p184 = pneg %p54
        %p185 = pneg %p51
        %s186 = smul.u32 2, %s23
        %p187 = scmp.lt.s32.totalorder %s186, 3
        %s188 = scalar_select %p187, %s186, 3
        %s189 = smul.addr %s188, 4
        %s190 = smul.addr %s189, 8
        %s191 = scalar_lea.vmem %s1, %s190
        %p192 = pneg %p80
        %p193 = pneg %p77
        %p194 = pneg %p108
        %p195 = pneg %p105
        %s196 = sand.u32 %s95, 1
        %s197 = scalar_lea.sflag [#allocation4], %s196
        %s198 = sand.u32 %s95, 1
        %s199 = smul.addr %s198, 64
        %s200 = scalar_lea.vmem [#allocation5], %s199
        %s201 = smul.u32 2, %s23
        %s202 = smul.u32 2, %s24
        %s203 = smul.u32 2, %s23
        %p204 = scmp.lt.s32.totalorder %s203, 3
        %s205 = scalar_select %p204, %s203, 3
        %s206 = smul.addr %s205, 4
        %s207 = smul.addr %s206, 8
        %s208 = scalar_lea.vmem %s1, %s207
        %s209 = smul.u32 2, %s23
        %s210 = smul.u32 2, %s23
        %s211 = smul.u32 2, %s24
        %v212 = vld [vmem:[%s173] sm:$0xff]
        %v213 = vld [vmem:[%s173 + $0x8] sm:$0xff]
        %v214 = vld [vmem:[%s173 + $0x10] sm:$0xff]
        %v215 = vld [vmem:[%s173 + $0x18] sm:$0xff]
        %v216 = vld [vmem:[%s173 + $0x20] sm:$0xff]
        %v217 = vld [vmem:[%s173 + $0x28] sm:$0xff]
        %v218 = vld [vmem:[%s173 + $0x30] sm:$0xff]
        %v219 = vld [vmem:[%s173 + $0x38] sm:$0xff]
        %v220 = vunpack.c.l.bf16 %v212
        %v221 = vunpack.c.h.bf16 %v212
        %v222 = vunpack.c.l.bf16 %v213
        %v223 = vunpack.c.h.bf16 %v213
        %v224 = vunpack.c.l.bf16 %v214
        %v225 = vunpack.c.h.bf16 %v214
        %v226 = vunpack.c.l.bf16 %v215
        %v227 = vunpack.c.h.bf16 %v215
        %v228 = vunpack.c.l.bf16 %v216
        %v229 = vunpack.c.h.bf16 %v216
        %v230 = vunpack.c.l.bf16 %v217
        %v231 = vunpack.c.h.bf16 %v217
        %v232 = vunpack.c.l.bf16 %v218
        %v233 = vunpack.c.h.bf16 %v218
        %v234 = vunpack.c.l.bf16 %v219
        %v235 = vunpack.c.h.bf16 %v219
        %v236 = vld [vmem:[%s208] sm:$0xff]
        %v237 = vld [vmem:[%s208 + $0x8] sm:$0xff]
        %v238 = vld [vmem:[%s208 + $0x10] sm:$0xff]
        %v239 = vld [vmem:[%s208 + $0x18] sm:$0xff]
        %v240 = vld [vmem:[%s208 + $0x20] sm:$0xff]
        %v241 = vld [vmem:[%s208 + $0x28] sm:$0xff]
        %v242 = vld [vmem:[%s208 + $0x30] sm:$0xff]
        %v243 = vld [vmem:[%s208 + $0x38] sm:$0xff]
        %245 = vset.pattern.permute.xlu0 0
        %246 = vperm.xlu0 %245, %v236
        %v247 = vpop.permute.xlu0 %246
        %250 = vset.pattern.permute.xlu0 0
        %251 = vperm.xlu0 %250, %v237
        %v252 = vpop.permute.xlu0 %251
        %255 = vset.pattern.permute.xlu0 0
        %256 = vperm.xlu0 %255, %v238
        %v257 = vpop.permute.xlu0 %256
        %260 = vset.pattern.permute.xlu0 0
        %261 = vperm.xlu0 %260, %v239
        %v262 = vpop.permute.xlu0 %261
        %265 = vset.pattern.permute.xlu0 0
        %266 = vperm.xlu0 %265, %v240
        %v267 = vpop.permute.xlu0 %266
        %270 = vset.pattern.permute.xlu0 0
        %271 = vperm.xlu0 %270, %v241
        %v272 = vpop.permute.xlu0 %271
        %275 = vset.pattern.permute.xlu0 0
        %276 = vperm.xlu0 %275, %v242
        %v277 = vpop.permute.xlu0 %276
        %280 = vset.pattern.permute.xlu0 0
        %281 = vperm.xlu0 %280, %v243
        %v282 = vpop.permute.xlu0 %281
        %v284 = vsub.f32 %v220, %v247
        %v285 = vsub.f32 %v221, %v247
        %v286 = vsub.f32 %v222, %v252
        %v287 = vsub.f32 %v223, %v252
        %v288 = vsub.f32 %v224, %v257
        %v289 = vsub.f32 %v225, %v257
        %v290 = vsub.f32 %v226, %v262
        %v291 = vsub.f32 %v227, %v262
        %v292 = vsub.f32 %v228, %v267
        %v293 = vsub.f32 %v229, %v267
        %v294 = vsub.f32 %v230, %v272
        %v295 = vsub.f32 %v231, %v272
        %v296 = vsub.f32 %v232, %v277
        %v297 = vsub.f32 %v233, %v277
        %v298 = vsub.f32 %v234, %v282
        %v299 = vsub.f32 %v235, %v282
        %v300 = vpack.c.bf16 %v285, %v284
        %v301 = vpack.c.bf16 %v287, %v286
        %v302 = vpack.c.bf16 %v289, %v288
        %v303 = vpack.c.bf16 %v291, %v290
        %v304 = vpack.c.bf16 %v293, %v292
        %v305 = vpack.c.bf16 %v295, %v294
        %v306 = vpack.c.bf16 %v297, %v296
        %v307 = vpack.c.bf16 %v299, %v298
        %308 = vst [vmem:[%s200] sm:$0xff] %v300
        %309 = vst [vmem:[%s200 + $0x8] sm:$0xff] %v301
        %310 = vst [vmem:[%s200 + $0x10] sm:$0xff] %v302
        %311 = vst [vmem:[%s200 + $0x18] sm:$0xff] %v303
        %312 = vst [vmem:[%s200 + $0x20] sm:$0xff] %v304
        %313 = vst [vmem:[%s200 + $0x28] sm:$0xff] %v305
        %314 = vst [vmem:[%s200 + $0x30] sm:$0xff] %v306
        %315 = vst [vmem:[%s200 + $0x38] sm:$0xff] %v307
        %s316 = sand.u32 %s95, 1
        %s317 = scalar_lea.sflag [#allocation4], %s316
        %s318 = sand.u32 %s95, 1
        %s319 = smul.addr %s318, 64
        %s320 = scalar_lea.vmem [#allocation5], %s319
        // Predicated region
        $region33: #{_lambda_.5} parent=27 // pred_check
          %p321 = pneg %p105
        $region34: #{_lambda_.5} parent=27 // pred_check_branch
          %323 = sbr.rel (%p321) target = $region36
        $region35: #{_lambda_.5} parent=27 // pred_region
          %s324 = smul.u32 2, %s23
          %s325 = smul.u32 2, %s24
          %327 = vsyncadd %s317, 0
          %s328 = smul.addr %s324, 16
          %s329 = sadd.s32 %s325, %s328
          %s330 = smul.addr %s329, 4
          %s331 = scalar_lea.hbm %s2, %s330
          %s332 = sshll.u32 %s320, 4
          %s333 = int_to_ptr.vmem [resolvable:$true] %s332
          %s334 = sshll.u32 %s331, 4
          %s335 = int_to_ptr.hbm [resolvable:$true] %s334
          %340 = dma.vmem_to_hbm [thread:$0]  %s333, 1024, %s335, %s317, 128, 256, 8
        $region36: #{_lambda_.5} parent=27 // pred_fallthru
          _
      $region28: #{_lambda_.5} parent=5 // pred_fallthru
        _
      %p341 = scmp.le.s32.totalorder 2, %s14
      // Predicated region
      $region37: #{_lambda_.5} parent=5 // pred_check
        %p342 = pneg %p341
      $region38: #{_lambda_.5} parent=5 // pred_check_branch
        %344 = sbr.rel (%p342) target = $region40
      $region39: #{_lambda_.5} parent=5 // pred_region
        %s345 = ssub.s32 %s14, 2
        // Predicated region
        $region41: #{_lambda_.5} parent=39 // pred_check
          %p346 = pneg %p111
        $region42: #{_lambda_.5} parent=39 // pred_check_branch
          %348 = sbr.rel (%p346) target = $region44
        $region43: #{_lambda_.5} parent=39 // pred_region
          %s349 = sand.u32 %s96, 1
          %s350 = scalar_lea.sflag [#allocation4], %s349
          %s351 = sand.u32 %s96, 1
          %s352 = smul.addr %s351, 64
          %s353 = scalar_lea.vmem [#allocation5], %s352
          %355 = dma.done %s350, 1024
        $region44: #{_lambda_.5} parent=39 // pred_fallthru
          _
      $region40: #{_lambda_.5} parent=5 // pred_fallthru
        _
    $region6: #{_lambda_.5} parent=1 // loop_footer
      %s18 = sadd.s32 1, %s14
    $region7: #{_lambda_.5} parent=1 // loop_footer_branch
      %13 = sbr.rel target = $region3
    $region8: #{_lambda_.5} parent=1 // loop_exit
      _
    %356 = vsyncpa [#allocation3], 1
    %s357 = scalar_lea.sflag [#allocation3], 1
    %358 = vsyncpa %s357, 1
    %359 = vsyncpa [#allocation4], 1
    %s360 = scalar_lea.sflag [#allocation4], 1
    %361 = vsyncpa %s360, 1

// kernel: _lambda_.4
$region0: #{_lambda_.4}
  #allocation0 [shape = 'u32[]', space=smem, size = 0x4, offset = 0x4, fixed_abs, tag = 'smem constant byte address 0x4 - core index']
  #allocation1 [shape = 'u32[72,128]{1,0:T(1,128)}', space=vmem, size = 0x9000, scoped, tag = 'internal scratch']
  #allocation2 [shape = 'f32[64,1]{1,0:T(8,128)}', space=vmem, size = 0x8000, scoped, tag = 'scratch operand']
  #allocation3 [shape = 'f32[64,1]{1,0:T(8,128)}', space=vmem, size = 0x8000, scoped, tag = 'scratch operand']
  %s0 = inlined_call_operand.vmem [shape: bf16[4,32,256], index: 0, kind: input, shape index: {}]
  %s1 = inlined_call_operand.vmem [shape: bf16[256,512], index: 1, kind: input, shape index: {}]
  %s2 = inlined_call_operand.vmem [shape: f32[1,512], index: 2, kind: input, shape index: {}]
  %s3 = inlined_call_operand.hbm [shape: bf16[4,32,512], index: 3, kind: output, shape index: {0}]
  %s4 = inlined_call_operand.vmem [shape: f32[4,32,1], index: 4, kind: output, shape index: {1}]
  %5 = xla_tuple %s3, %s4
  %s6 = sld [smem:[#allocation0]]
  $region99: #{_lambda_.4} parent=0
    _
  %s8 = ssub.s32 1, %s6
  %s9 = scalar_select 0, %s8, %s6
  $region1: #{_lambda_.4} parent=0
    #allocation4 [shape = 'u8[262144]{0}', space=vmem, size = 0x40000, scoped, tag = 'input window, operand 1']
    #allocation5 [shape = 'u8[65536]{0}', space=vmem, size = 0x10000, scoped, tag = 'output window, operand 0']
    #allocation6 [shape = 's32[2]{0}', space=sflag, size = 0x8, scoped, tag = 'scoped memory for _lambda_.4']
    %10 = vsyncpa [#allocation6], 0
    %s11 = scalar_lea.sflag [#allocation6], 1
    %12 = vsyncpa %s11, 0
    loop: start=0, step=1, limit=6
    $region2: #{_lambda_.4} parent=1 // loop_pre_header
      _
    $region3: #{_lambda_.4} parent=1 // loop_header
      %s14 = sphi 0, %s18
      %p15 = scmp.ge.s32.totalorder %s14, 6
      %s21 = sphi 0, %s33
      %s22 = sphi 0, %s29
      %s23 = sphi 0, %s21
      %s24 = sphi 0, %s22
      %s25 = sphi 0, %s23
      %s26 = sphi 0, %s24
      %s36 = sphi 0, %s38
      %s39 = sphi 0, %s36
      %s40 = sphi 0, %s39
      %s56 = sphi 0, %s40
      %s62 = sphi 0, %s64
      %s65 = sphi 0, %s62
      %s66 = sphi 0, %s65
      %s82 = sphi 0, %s66
      %s88 = sphi 0, %s90
      %s91 = sphi 0, %s88
      %s92 = sphi 0, %s91
      %s108 = sphi 0, %s92
      %s116 = sphi 0, %s118
      %s119 = sphi 0, %s116
      %s120 = sphi 0, %s119
      %s136 = sphi 0, %s120
      %s142 = sphi 0, %s144
      %s145 = sphi 0, %s142
      %s146 = sphi 0, %s145
      %s162 = sphi 0, %s146
    $region4: #{_lambda_.4} parent=1 // loop_header_branch
      %17 = sbr.rel (%p15) target = $region8
    $region5: #{_lambda_.4} parent=1 // loop_body
      %s19 = ssub.s32 %s14, 1
      %s20 = ssub.s32 %s14, 2
      %s27 = sadd.s32 1, %s22
      %p28 = scmp.ge.s32.totalorder %s27, 2
      %s29 = scalar_select %p28, 0, %s27
      %s30 = sadd.s32 1, %s21
      %s31 = scalar_select %p28, %s30, %s21
      %p32 = scmp.ge.s32.totalorder %s31, 2
      %s33 = scalar_select %p32, 0, %s31
      %s34 = ssub.s32 %s21, %s33
      %p35 = scmp.eq.s32.totalorder %s34, 0
      %s37 = sadd.s32 %s36, 1
      %s38 = scalar_select %p35, %s36, %s37
      %p41 = pneg %p35
      %p42 = scmp.eq.s32.totalorder %s14, 3
      %p43 = por %p41, %p42
      %p44 = scmp.ne.s32.totalorder %s36, %s39
      %p45 = scmp.eq.s32.totalorder %s14, 0
      %p46 = por %p44, %p45
      %p47 = scmp.ne.s32.totalorder %s36, %s39
      %p48 = scmp.eq.s32.totalorder %s19, 3
      %p49 = por %p47, %p48
      %p50 = scmp.ne.s32.totalorder %s39, %s40
      %p51 = scmp.eq.s32.totalorder %s19, 0
      %p52 = por %p50, %p51
      %p53 = scmp.ne.s32.totalorder %s39, %s40
      %p54 = scmp.eq.s32.totalorder %s20, 3
      %p55 = por %p53, %p54
      %p57 = scmp.ne.s32.totalorder %s40, %s56
      %p58 = scmp.eq.s32.totalorder %s20, 0
      %p59 = por %p57, %p58
      %s60 = ssub.s32 %s22, %s29
      %p61 = scmp.eq.s32.totalorder %s60, 0
      %s63 = sadd.s32 %s62, 1
      %s64 = scalar_select %p61, %s62, %s63
      %p67 = pneg %p61
      %p68 = scmp.eq.s32.totalorder %s14, 3
      %p69 = por %p67, %p68
      %p70 = scmp.ne.s32.totalorder %s62, %s65
      %p71 = scmp.eq.s32.totalorder %s14, 0
      %p72 = por %p70, %p71
      %p73 = scmp.ne.s32.totalorder %s62, %s65
      %p74 = scmp.eq.s32.totalorder %s19, 3
      %p75 = por %p73, %p74
      %p76 = scmp.ne.s32.totalorder %s65, %s66
      %p77 = scmp.eq.s32.totalorder %s19, 0
      %p78 = por %p76, %p77
      %p79 = scmp.ne.s32.totalorder %s65, %s66
      %p80 = scmp.eq.s32.totalorder %s20, 3
      %p81 = por %p79, %p80
      %p83 = scmp.ne.s32.totalorder %s66, %s82
      %p84 = scmp.eq.s32.totalorder %s20, 0
      %p85 = por %p83, %p84
      %s86 = ssub.s32 %s22, %s29
      %p87 = scmp.eq.s32.totalorder %s86, 0
      %s89 = sadd.s32 %s88, 1
      %s90 = scalar_select %p87, %s88, %s89
      %p93 = pneg %p87
      %p94 = scmp.eq.s32.totalorder %s14, 3
      %p95 = por %p93, %p94
      %p96 = scmp.ne.s32.totalorder %s88, %s91
      %p97 = scmp.eq.s32.totalorder %s14, 0
      %p98 = por %p96, %p97
      %p99 = scmp.ne.s32.totalorder %s88, %s91
      %p100 = scmp.eq.s32.totalorder %s19, 3
      %p101 = por %p99, %p100
      %p102 = scmp.ne.s32.totalorder %s91, %s92
      %p103 = scmp.eq.s32.totalorder %s19, 0
      %p104 = por %p102, %p103
      %p105 = scmp.ne.s32.totalorder %s91, %s92
      %p106 = scmp.eq.s32.totalorder %s20, 3
      %p107 = por %p105, %p106
      %p109 = scmp.ne.s32.totalorder %s92, %s108
      %p110 = scmp.eq.s32.totalorder %s20, 0
      %p111 = por %p109, %p110
      %s112 = ssub.s32 %s21, %s33
      %s113 = ssub.s32 %s22, %s29
      %s114 = sor.u32 %s112, %s113
      %p115 = scmp.eq.s32.totalorder %s114, 0
      %s117 = sadd.s32 %s116, 1
      %s118 = scalar_select %p115, %s116, %s117
      %p121 = pneg %p115
      %p122 = scmp.eq.s32.totalorder %s14, 3
      %p123 = por %p121, %p122
      %p124 = scmp.ne.s32.totalorder %s116, %s119
      %p125 = scmp.eq.s32.totalorder %s14, 0
      %p126 = por %p124, %p125
      %p127 = scmp.ne.s32.totalorder %s116, %s119
      %p128 = scmp.eq.s32.totalorder %s19, 3
      %p129 = por %p127, %p128
      %p130 = scmp.ne.s32.totalorder %s119, %s120
      %p131 = scmp.eq.s32.totalorder %s19, 0
      %p132 = por %p130, %p131
      %p133 = scmp.ne.s32.totalorder %s119, %s120
      %p134 = scmp.eq.s32.totalorder %s20, 3
      %p135 = por %p133, %p134
      %p137 = scmp.ne.s32.totalorder %s120, %s136
      %p138 = scmp.eq.s32.totalorder %s20, 0
      %p139 = por %p137, %p138
      %s140 = ssub.s32 %s21, %s33
      %p141 = scmp.eq.s32.totalorder %s140, 0
      %s143 = sadd.s32 %s142, 1
      %s144 = scalar_select %p141, %s142, %s143
      %p147 = pneg %p141
      %p148 = scmp.eq.s32.totalorder %s14, 3
      %p149 = por %p147, %p148
      %p150 = scmp.ne.s32.totalorder %s142, %s145
      %p151 = scmp.eq.s32.totalorder %s14, 0
      %p152 = por %p150, %p151
      %p153 = scmp.ne.s32.totalorder %s142, %s145
      %p154 = scmp.eq.s32.totalorder %s19, 3
      %p155 = por %p153, %p154
      %p156 = scmp.ne.s32.totalorder %s145, %s146
      %p157 = scmp.eq.s32.totalorder %s19, 0
      %p158 = por %p156, %p157
      %p159 = scmp.ne.s32.totalorder %s145, %s146
      %p160 = scmp.eq.s32.totalorder %s20, 3
      %p161 = por %p159, %p160
      %p163 = scmp.ne.s32.totalorder %s146, %s162
      %p164 = scmp.eq.s32.totalorder %s20, 0
      %p165 = por %p163, %p164
      %p166 = scmp.le.s32.totalorder 1, %s14
      %p167 = scmp.lt.s32.totalorder %s14, 5
      %p168 = pnand %p166, %p167
      %p169 = pneg %p168
      // Predicated region
      $region9: #{_lambda_.4} parent=5 // pred_check
        _
      $region10: #{_lambda_.4} parent=5 // pred_check_branch
        %171 = sbr.rel (%p168) target = $region12
      $region11: #{_lambda_.4} parent=5 // pred_region
        %s172 = ssub.s32 %s14, 1
      $region12: #{_lambda_.4} parent=5 // pred_fallthru
        _
      %p173 = scmp.lt.s32.totalorder %s14, 4
      // Predicated region
      $region13: #{_lambda_.4} parent=5 // pred_check
        %p174 = pneg %p173
      $region14: #{_lambda_.4} parent=5 // pred_check_branch
        %176 = sbr.rel (%p174) target = $region16
      $region15: #{_lambda_.4} parent=5 // pred_region
        // Predicated region
        $region17: #{_lambda_.4} parent=15 // pred_check
          %p177 = pneg %p46
        $region18: #{_lambda_.4} parent=15 // pred_check_branch
          %179 = sbr.rel (%p177) target = $region20
        $region19: #{_lambda_.4} parent=15 // pred_region
          %s180 = smul.u32 2, %s21
          %p181 = scmp.lt.s32.totalorder %s180, 3
          %s182 = scalar_select %p181, %s180, 3
          %s183 = smul.addr %s182, 8
          %s184 = smul.addr %s183, 4
          %s185 = scalar_lea.vmem %s0, %s184
          %s186 = smul.u32 2, %s21
        $region20: #{_lambda_.4} parent=15 // pred_fallthru
          _
        // Predicated region
        $region21: #{_lambda_.4} parent=15 // pred_check
          %p187 = pneg %p72
        $region22: #{_lambda_.4} parent=15 // pred_check_branch
          %189 = sbr.rel (%p187) target = $region24
        $region23: #{_lambda_.4} parent=15 // pred_region
          %s190 = sand.u32 %s62, 1
          %s191 = sand.u32 %s62, 1
          %s192 = smul.addr %s191, 256
          %s193 = scalar_lea.vmem [#allocation4], %s192
          %s194 = smul.u32 2, %s22
          %s195 = smul.addr %s194, 4
          %s196 = scalar_lea.vmem %s1, %s195
          // Predicated region
          $region25: #{_lambda_.4} parent=23 // pred_check
            _
          $region26: #{_lambda_.4} parent=23 // pred_check_branch
            %198 = sbr.rel (0) target = $region28
          $region27: #{_lambda_.4} parent=23 // pred_region
            // Predicated region
            $region29: #{_lambda_.4} parent=27 // pred_check
              _
            $region30: #{_lambda_.4} parent=27 // pred_check_branch
              %200 = sbr.rel (0) target = $region32
            $region31: #{_lambda_.4} parent=27 // pred_region
              // Predicated region
              $region44: #{_lambda_.4} parent=31 // pred_check
                _
              $region45: #{_lambda_.4} parent=31 // pred_check_branch
                %278 = sbr.rel (0) target = $region47
              $region46: #{_lambda_.4} parent=31 // pred_region
                loop: start=0, step=1, limit=1
                $region48: #{_lambda_.4} parent=46 // loop_pre_header
                  _
                $region49: #{_lambda_.4} parent=46 // loop_header
                  %s280 = sphi 0, %s284
                  %p281 = scmp.ge.s32.totalorder %s280, 1
                  %s285 = sphi %s196, %s196
                  %s286 = sphi %s193, %s193
                $region50: #{_lambda_.4} parent=46 // loop_header_branch
                  %283 = sbr.rel (%p281) target = $region54
                $region51: #{_lambda_.4} parent=46 // loop_body
                  %v287 = vld [vmem:[%s285] sm:$0xff]
                  %288 = vst [vmem:[%s286] sm:$0xff] %v287
                  %v289 = vld [vmem:[%s285 + $0x10] sm:$0xff]
                  %290 = vst [vmem:[%s286 + $0x8] sm:$0xff] %v289
                  %v291 = vld [vmem:[%s285 + $0x20] sm:$0xff]
                  %292 = vst [vmem:[%s286 + $0x10] sm:$0xff] %v291
                  %v293 = vld [vmem:[%s285 + $0x30] sm:$0xff]
                  %294 = vst [vmem:[%s286 + $0x18] sm:$0xff] %v293
                  %v295 = vld [vmem:[%s285 + $0x40] sm:$0xff]
                  %296 = vst [vmem:[%s286 + $0x20] sm:$0xff] %v295
                  %v297 = vld [vmem:[%s285 + $0x50] sm:$0xff]
                  %298 = vst [vmem:[%s286 + $0x28] sm:$0xff] %v297
                  %v299 = vld [vmem:[%s285 + $0x60] sm:$0xff]
                  %300 = vst [vmem:[%s286 + $0x30] sm:$0xff] %v299
                  %v301 = vld [vmem:[%s285 + $0x70] sm:$0xff]
                  %302 = vst [vmem:[%s286 + $0x38] sm:$0xff] %v301
                  %v303 = vld [vmem:[%s285 + $0x80] sm:$0xff]
                  %304 = vst [vmem:[%s286 + $0x40] sm:$0xff] %v303
                  %v305 = vld [vmem:[%s285 + $0x90] sm:$0xff]
                  %306 = vst [vmem:[%s286 + $0x48] sm:$0xff] %v305
                  %v307 = vld [vmem:[%s285 + $0xa0] sm:$0xff]
                  %308 = vst [vmem:[%s286 + $0x50] sm:$0xff] %v307
                  %v309 = vld [vmem:[%s285 + $0xb0] sm:$0xff]
                  %310 = vst [vmem:[%s286 + $0x58] sm:$0xff] %v309
                  %v311 = vld [vmem:[%s285 + $0xc0] sm:$0xff]
                  %312 = vst [vmem:[%s286 + $0x60] sm:$0xff] %v311
                  %v313 = vld [vmem:[%s285 + $0xd0] sm:$0xff]
                  %314 = vst [vmem:[%s286 + $0x68] sm:$0xff] %v313
                  %v315 = vld [vmem:[%s285 + $0xe0] sm:$0xff]
                  %316 = vst [vmem:[%s286 + $0x70] sm:$0xff] %v315
                  %v317 = vld [vmem:[%s285 + $0xf0] sm:$0xff]
                  %318 = vst [vmem:[%s286 + $0x78] sm:$0xff] %v317
                  %v319 = vld [vmem:[%s285 + $0x100] sm:$0xff]
                  %320 = vst [vmem:[%s286 + $0x80] sm:$0xff] %v319
                  %v321 = vld [vmem:[%s285 + $0x110] sm:$0xff]
                  %322 = vst [vmem:[%s286 + $0x88] sm:$0xff] %v321
                  %v323 = vld [vmem:[%s285 + $0x120] sm:$0xff]
                  %324 = vst [vmem:[%s286 + $0x90] sm:$0xff] %v323
                  %v325 = vld [vmem:[%s285 + $0x130] sm:$0xff]
                  %326 = vst [vmem:[%s286 + $0x98] sm:$0xff] %v325
                  %v327 = vld [vmem:[%s285 + $0x140] sm:$0xff]
                  %328 = vst [vmem:[%s286 + $0xa0] sm:$0xff] %v327
                  %v329 = vld [vmem:[%s285 + $0x150] sm:$0xff]
                  %330 = vst [vmem:[%s286 + $0xa8] sm:$0xff] %v329
                  %v331 = vld [vmem:[%s285 + $0x160] sm:$0xff]
                  %332 = vst [vmem:[%s286 + $0xb0] sm:$0xff] %v331
                  %v333 = vld [vmem:[%s285 + $0x170] sm:$0xff]
                  %334 = vst [vmem:[%s286 + $0xb8] sm:$0xff] %v333
                  %v335 = vld [vmem:[%s285 + $0x180] sm:$0xff]
                  %336 = vst [vmem:[%s286 + $0xc0] sm:$0xff] %v335
                  %v337 = vld [vmem:[%s285 + $0x190] sm:$0xff]
                  %338 = vst [vmem:[%s286 + $0xc8] sm:$0xff] %v337
                  %v339 = vld [vmem:[%s285 + $0x1a0] sm:$0xff]
                  %340 = vst [vmem:[%s286 + $0xd0] sm:$0xff] %v339
                  %v341 = vld [vmem:[%s285 + $0x1b0] sm:$0xff]
                  %342 = vst [vmem:[%s286 + $0xd8] sm:$0xff] %v341
                  %v343 = vld [vmem:[%s285 + $0x1c0] sm:$0xff]
                  %344 = vst [vmem:[%s286 + $0xe0] sm:$0xff] %v343
                  %v345 = vld [vmem:[%s285 + $0x1d0] sm:$0xff]
                  %346 = vst [vmem:[%s286 + $0xe8] sm:$0xff] %v345
                  %v347 = vld [vmem:[%s285 + $0x1e0] sm:$0xff]
                  %348 = vst [vmem:[%s286 + $0xf0] sm:$0xff] %v347
                  %v349 = vld [vmem:[%s285 + $0x1f0] sm:$0xff]
                  %350 = vst [vmem:[%s286 + $0xf8] sm:$0xff] %v349
                $region52: #{_lambda_.4} parent=46 // loop_footer
                  %s284 = sadd.s32 1, %s280
                $region53: #{_lambda_.4} parent=46 // loop_footer_branch
                  %279 = sbr.rel target = $region49
                $region54: #{_lambda_.4} parent=46 // loop_exit
                  _
              $region47: #{_lambda_.4} parent=31 // pred_fallthru
                _
              // Predicated region
              $region55: #{_lambda_.4} parent=31 // pred_check
                _
              $region56: #{_lambda_.4} parent=31 // pred_check_branch
                %352 = sbr.rel target = $region58
              $region57: #{_lambda_.4} parent=31 // pred_region
                _
              $region58: #{_lambda_.4} parent=31 // pred_fallthru
                _
            $region32: #{_lambda_.4} parent=27 // pred_fallthru
              _
            // Predicated region
            $region33: #{_lambda_.4} parent=27 // pred_check
              _
            $region34: #{_lambda_.4} parent=27 // pred_check_branch
              %202 = sbr.rel target = $region36
            $region35: #{_lambda_.4} parent=27 // pred_region
              %s204 = ssub.s32 256, 1
              loop: start=0, step=1, limit=1
              $region37: #{_lambda_.4} parent=35 // loop_pre_header
                _
              $region38: #{_lambda_.4} parent=35 // loop_header
                %s206 = sphi 0, %s210
                %p207 = scmp.ge.s32.totalorder %s206, 1
                %s211 = sphi %s196, %s196
                %s212 = sphi %s193, %s193
              $region39: #{_lambda_.4} parent=35 // loop_header_branch
                %209 = sbr.rel (%p207) target = $region43
              $region40: #{_lambda_.4} parent=35 // loop_body
                %v213 = vld [vmem:[%s211] sm:%s204]
                %214 = vst [vmem:[%s212] sm:%s204] %v213
                %v215 = vld [vmem:[%s211 + $0x10] sm:%s204]
                %216 = vst [vmem:[%s212 + $0x8] sm:%s204] %v215
                %v217 = vld [vmem:[%s211 + $0x20] sm:%s204]
                %218 = vst [vmem:[%s212 + $0x10] sm:%s204] %v217
                %v219 = vld [vmem:[%s211 + $0x30] sm:%s204]
                %220 = vst [vmem:[%s212 + $0x18] sm:%s204] %v219
                %v221 = vld [vmem:[%s211 + $0x40] sm:%s204]
                %222 = vst [vmem:[%s212 + $0x20] sm:%s204] %v221
                %v223 = vld [vmem:[%s211 + $0x50] sm:%s204]
                %224 = vst [vmem:[%s212 + $0x28] sm:%s204] %v223
                %v225 = vld [vmem:[%s211 + $0x60] sm:%s204]
                %226 = vst [vmem:[%s212 + $0x30] sm:%s204] %v225
                %v227 = vld [vmem:[%s211 + $0x70] sm:%s204]
                %228 = vst [vmem:[%s212 + $0x38] sm:%s204] %v227
                %v229 = vld [vmem:[%s211 + $0x80] sm:%s204]
                %230 = vst [vmem:[%s212 + $0x40] sm:%s204] %v229
                %v231 = vld [vmem:[%s211 + $0x90] sm:%s204]
                %232 = vst [vmem:[%s212 + $0x48] sm:%s204] %v231
                %v233 = vld [vmem:[%s211 + $0xa0] sm:%s204]
                %234 = vst [vmem:[%s212 + $0x50] sm:%s204] %v233
                %v235 = vld [vmem:[%s211 + $0xb0] sm:%s204]
                %236 = vst [vmem:[%s212 + $0x58] sm:%s204] %v235
                %v237 = vld [vmem:[%s211 + $0xc0] sm:%s204]
                %238 = vst [vmem:[%s212 + $0x60] sm:%s204] %v237
                %v239 = vld [vmem:[%s211 + $0xd0] sm:%s204]
                %240 = vst [vmem:[%s212 + $0x68] sm:%s204] %v239
                %v241 = vld [vmem:[%s211 + $0xe0] sm:%s204]
                %242 = vst [vmem:[%s212 + $0x70] sm:%s204] %v241
                %v243 = vld [vmem:[%s211 + $0xf0] sm:%s204]
                %244 = vst [vmem:[%s212 + $0x78] sm:%s204] %v243
                %v245 = vld [vmem:[%s211 + $0x100] sm:%s204]
                %246 = vst [vmem:[%s212 + $0x80] sm:%s204] %v245
                %v247 = vld [vmem:[%s211 + $0x110] sm:%s204]
                %248 = vst [vmem:[%s212 + $0x88] sm:%s204] %v247
                %v249 = vld [vmem:[%s211 + $0x120] sm:%s204]
                %250 = vst [vmem:[%s212 + $0x90] sm:%s204] %v249
                %v251 = vld [vmem:[%s211 + $0x130] sm:%s204]
                %252 = vst [vmem:[%s212 + $0x98] sm:%s204] %v251
                %v253 = vld [vmem:[%s211 + $0x140] sm:%s204]
                %254 = vst [vmem:[%s212 + $0xa0] sm:%s204] %v253
                %v255 = vld [vmem:[%s211 + $0x150] sm:%s204]
                %256 = vst [vmem:[%s212 + $0xa8] sm:%s204] %v255
                %v257 = vld [vmem:[%s211 + $0x160] sm:%s204]
                %258 = vst [vmem:[%s212 + $0xb0] sm:%s204] %v257
                %v259 = vld [vmem:[%s211 + $0x170] sm:%s204]
                %260 = vst [vmem:[%s212 + $0xb8] sm:%s204] %v259
                %v261 = vld [vmem:[%s211 + $0x180] sm:%s204]
                %262 = vst [vmem:[%s212 + $0xc0] sm:%s204] %v261
                %v263 = vld [vmem:[%s211 + $0x190] sm:%s204]
                %264 = vst [vmem:[%s212 + $0xc8] sm:%s204] %v263
                %v265 = vld [vmem:[%s211 + $0x1a0] sm:%s204]
                %266 = vst [vmem:[%s212 + $0xd0] sm:%s204] %v265
                %v267 = vld [vmem:[%s211 + $0x1b0] sm:%s204]
                %268 = vst [vmem:[%s212 + $0xd8] sm:%s204] %v267
                %v269 = vld [vmem:[%s211 + $0x1c0] sm:%s204]
                %270 = vst [vmem:[%s212 + $0xe0] sm:%s204] %v269
                %v271 = vld [vmem:[%s211 + $0x1d0] sm:%s204]
                %272 = vst [vmem:[%s212 + $0xe8] sm:%s204] %v271
                %v273 = vld [vmem:[%s211 + $0x1e0] sm:%s204]
                %274 = vst [vmem:[%s212 + $0xf0] sm:%s204] %v273
                %v275 = vld [vmem:[%s211 + $0x1f0] sm:%s204]
                %276 = vst [vmem:[%s212 + $0xf8] sm:%s204] %v275
              $region41: #{_lambda_.4} parent=35 // loop_footer
                %s210 = sadd.s32 1, %s206
              $region42: #{_lambda_.4} parent=35 // loop_footer_branch
                %205 = sbr.rel target = $region38
              $region43: #{_lambda_.4} parent=35 // loop_exit
                _
            $region36: #{_lambda_.4} parent=27 // pred_fallthru
              _
          $region28: #{_lambda_.4} parent=23 // pred_fallthru
            _
          %353 = vnop
        $region24: #{_lambda_.4} parent=15 // pred_fallthru
          _
        // Predicated region
        $region59: #{_lambda_.4} parent=15 // pred_check
          %p354 = pneg %p98
        $region60: #{_lambda_.4} parent=15 // pred_check_branch
          %356 = sbr.rel (%p354) target = $region62
        $region61: #{_lambda_.4} parent=15 // pred_region
          %s357 = smul.u32 2, %s22
          %p358 = scmp.lt.s32.totalorder %s357, 3
          %s359 = scalar_select %p358, %s357, 3
          %s360 = scalar_lea.vmem %s2, %s359
          %s361 = smul.u32 2, %s22
        $region62: #{_lambda_.4} parent=15 // pred_fallthru
          _
      $region16: #{_lambda_.4} parent=5 // pred_fallthru
        _
      %p362 = scmp.le.s32.totalorder 1, %s14
      %p363 = scmp.lt.s32.totalorder %s14, 5
      %p364 = pnand %p362, %p363
      %p365 = pneg %p364
      // Predicated region
      $region63: #{_lambda_.4} parent=5 // pred_check
        _
      $region64: #{_lambda_.4} parent=5 // pred_check_branch
        %367 = sbr.rel (%p364) target = $region66
      $region65: #{_lambda_.4} parent=5 // pred_region
        %s368 = ssub.s32 %s14, 1
        %s369 = sand.u32 %s65, 1
        %s370 = sand.u32 %s65, 1
        %s371 = smul.addr %s370, 256
        %s372 = scalar_lea.vmem [#allocation4], %s371
        // Predicated region
        $region67: #{_lambda_.4} parent=65 // pred_check
          %p373 = pneg %p78
        $region68: #{_lambda_.4} parent=65 // pred_check_branch
          %375 = sbr.rel (%p373) target = $region70
        $region69: #{_lambda_.4} parent=65 // pred_region
          _
        $region70: #{_lambda_.4} parent=65 // pred_fallthru
          _
        %s376 = smul.u32 2, %s23
        %p377 = scmp.lt.s32.totalorder %s376, 3
        %s378 = scalar_select %p377, %s376, 3
        %s379 = smul.addr %s378, 8
        %s380 = smul.addr %s379, 4
        %s381 = scalar_lea.vmem %s0, %s380
        %p382 = pneg %p52
        %p383 = pneg %p49
        %s384 = sand.u32 %s65, 1
        %s385 = sand.u32 %s65, 1
        %s386 = smul.addr %s385, 256
        %s387 = scalar_lea.vmem [#allocation4], %s386
        %p388 = pneg %p78
        %p389 = pneg %p75
        %s390 = smul.u32 2, %s24
        %p391 = scmp.lt.s32.totalorder %s390, 3
        %s392 = scalar_select %p391, %s390, 3
        %s393 = scalar_lea.vmem %s2, %s392
        %p394 = pneg %p104
        %p395 = pneg %p101
        %p396 = pneg %p132
        %p397 = pneg %p129
        %s398 = sand.u32 %s119, 1
        %s399 = scalar_lea.sflag [#allocation6], %s398
        %s400 = sand.u32 %s119, 1
        %s401 = smul.addr %s400, 64
        %s402 = scalar_lea.vmem [#allocation5], %s401
        %p403 = pneg %p158
        %p404 = pneg %p155
        %s405 = smul.u32 2, %s23
        %p406 = scmp.lt.s32.totalorder %s405, 3
        %s407 = scalar_select %p406, %s405, 3
        %s408 = smul.addr %s407, 4
        %s409 = smul.addr %s408, 8
        %s410 = scalar_lea.vmem %s4, %s409
        %s411 = smul.u32 2, %s23
        %p412 = scmp.lt.s32.totalorder %s411, 3
        %s413 = scalar_select %p412, %s411, 3
        %s414 = smul.addr %s413, 8
        %s415 = smul.addr %s414, 4
        %s416 = scalar_lea.vmem %s0, %s415
        %s417 = smul.u32 2, %s23
        %s418 = smul.u32 2, %s24
        %s419 = smul.u32 2, %s24
        %p420 = scmp.lt.s32.totalorder %s419, 3
        %s421 = scalar_select %p420, %s419, 3
        %s422 = scalar_lea.vmem %s2, %s421
        %s423 = smul.u32 2, %s24
        %s424 = smul.u32 2, %s23
        %s425 = smul.u32 2, %s24
        %s426 = smul.u32 2, %s23
        %p427 = scmp.lt.s32.totalorder %s426, 3
        %s428 = scalar_select %p427, %s426, 3
        %s429 = smul.addr %s428, 4
        %s430 = smul.addr %s429, 8
        %s431 = scalar_lea.vmem %s4, %s430
        %s432 = smul.u32 2, %s23
        %p433 = scmp.eq.s32.totalorder %s24, 0
        // Predicated region
        $region71: #{_lambda_.4} parent=65 // pred_check
          %p434 = pneg %p433
        $region72: #{_lambda_.4} parent=65 // pred_check_branch
          %436 = sbr.rel (%p434) target = $region74
        $region73: #{_lambda_.4} parent=65 // pred_region
          %vm437 = vcmask 7168
          %438 = vst.msk [vmem:[#allocation2] sm:$0xff] %vm437, -inf
          %439 = vst.msk [vmem:[#allocation2 + $0x8] sm:$0xff] %vm437, -inf
          %440 = vst.msk [vmem:[#allocation2 + $0x10] sm:$0xff] %vm437, -inf
          %441 = vst.msk [vmem:[#allocation2 + $0x18] sm:$0xff] %vm437, -inf
          %442 = vst.msk [vmem:[#allocation2 + $0x20] sm:$0xff] %vm437, -inf
          %443 = vst.msk [vmem:[#allocation2 + $0x28] sm:$0xff] %vm437, -inf
          %444 = vst.msk [vmem:[#allocation2 + $0x30] sm:$0xff] %vm437, -inf
          %445 = vst.msk [vmem:[#allocation2 + $0x38] sm:$0xff] %vm437, -inf
          %446 = vst.msk [vmem:[#allocation3] sm:$0xff] %vm437, 0.0
          %447 = vst.msk [vmem:[#allocation3 + $0x8] sm:$0xff] %vm437, 0.0
          %448 = vst.msk [vmem:[#allocation3 + $0x10] sm:$0xff] %vm437, 0.0
          %449 = vst.msk [vmem:[#allocation3 + $0x18] sm:$0xff] %vm437, 0.0
          %450 = vst.msk [vmem:[#allocation3 + $0x20] sm:$0xff] %vm437, 0.0
          %451 = vst.msk [vmem:[#allocation3 + $0x28] sm:$0xff] %vm437, 0.0
          %452 = vst.msk [vmem:[#allocation3 + $0x30] sm:$0xff] %vm437, 0.0
          %453 = vst.msk [vmem:[#allocation3 + $0x38] sm:$0xff] %vm437, 0.0
        $region74: #{_lambda_.4} parent=65 // pred_fallthru
          _
        %v454 = vld [vmem:[%s416] sm:$0xff]
        %v455 = vld [vmem:[%s416 + $0x8] sm:$0xff]
        %v456 = vld [vmem:[%s416 + $0x10] sm:$0xff]
        %v457 = vld [vmem:[%s416 + $0x18] sm:$0xff]
        %v458 = vld [vmem:[%s416 + $0x20] sm:$0xff]
        %v459 = vld [vmem:[%s416 + $0x28] sm:$0xff]
        %v460 = vld [vmem:[%s416 + $0x30] sm:$0xff]
        %v461 = vld [vmem:[%s416 + $0x38] sm:$0xff]
        %v462 = vld [vmem:[%s372] sm:$0xff]
        %v463 = vld [vmem:[%s372 + $0x8] sm:$0xff]
        %v464 = vld [vmem:[%s372 + $0x10] sm:$0xff]
        %v465 = vld [vmem:[%s372 + $0x18] sm:$0xff]
        %v466 = vld [vmem:[%s372 + $0x20] sm:$0xff]
        %v467 = vld [vmem:[%s372 + $0x28] sm:$0xff]
        %v468 = vld [vmem:[%s372 + $0x30] sm:$0xff]
        %v469 = vld [vmem:[%s372 + $0x38] sm:$0xff]
        %v470 = vld [vmem:[%s372 + $0x40] sm:$0xff]
        %v471 = vld [vmem:[%s372 + $0x48] sm:$0xff]
        %v472 = vld [vmem:[%s372 + $0x50] sm:$0xff]
        %v473 = vld [vmem:[%s372 + $0x58] sm:$0xff]
        %v474 = vld [vmem:[%s372 + $0x60] sm:$0xff]
        %v475 = vld [vmem:[%s372 + $0x68] sm:$0xff]
        %v476 = vld [vmem:[%s372 + $0x70] sm:$0xff]
        %v477 = vld [vmem:[%s372 + $0x78] sm:$0xff]
        %v478 = vld [vmem:[%s372 + $0x80] sm:$0xff]
        %v479 = vld [vmem:[%s372 + $0x88] sm:$0xff]
        %v480 = vld [vmem:[%s372 + $0x90] sm:$0xff]
        %v481 = vld [vmem:[%s372 + $0x98] sm:$0xff]
        %v482 = vld [vmem:[%s372 + $0xa0] sm:$0xff]
        %v483 = vld [vmem:[%s372 + $0xa8] sm:$0xff]
        %v484 = vld [vmem:[%s372 + $0xb0] sm:$0xff]
        %v485 = vld [vmem:[%s372 + $0xb8] sm:$0xff]
        %v486 = vld [vmem:[%s372 + $0xc0] sm:$0xff]
        %v487 = vld [vmem:[%s372 + $0xc8] sm:$0xff]
        %v488 = vld [vmem:[%s372 + $0xd0] sm:$0xff]
        %v489 = vld [vmem:[%s372 + $0xd8] sm:$0xff]
        %v490 = vld [vmem:[%s372 + $0xe0] sm:$0xff]
        %v491 = vld [vmem:[%s372 + $0xe8] sm:$0xff]
        %v492 = vld [vmem:[%s372 + $0xf0] sm:$0xff]
        %v493 = vld [vmem:[%s372 + $0xf8] sm:$0xff]
        %v494 = vld [vmem:[%s422] sm:$0x3]
        %v496 = vperm.slane %v494, 0
        %v497 = vperm.slane %v494, 1
        %v508 = vunpack.c.l.b16 %v454
        %v509 = vunpack.c.h.b16 %v454
        %v510 = vunpack.c.l.b16 %v455
        %v511 = vunpack.c.h.b16 %v455
        %v512 = vunpack.c.l.b16 %v456
        %v513 = vunpack.c.h.b16 %v456
        %v514 = vunpack.c.l.b16 %v457
        %v515 = vunpack.c.h.b16 %v457
        %v516 = vunpack.c.l.b16 %v458
        %v517 = vunpack.c.h.b16 %v458
        %v518 = vunpack.c.l.b16 %v459
        %v519 = vunpack.c.h.b16 %v459
        %v520 = vunpack.c.l.b16 %v460
        %v521 = vunpack.c.h.b16 %v460
        %v522 = vunpack.c.l.b16 %v461
        %v523 = vunpack.c.h.b16 %v461
        %v524 = vpack.c.b16 %v510, %v508
        %v525 = vpack.c.b16 %v511, %v509
        %v526 = vpack.c.b16 %v514, %v512
        %v527 = vpack.c.b16 %v515, %v513
        %v528 = vpack.c.b16 %v518, %v516
        %v529 = vpack.c.b16 %v519, %v517
        %v530 = vpack.c.b16 %v522, %v520
        %v531 = vpack.c.b16 %v523, %v521
        %v572 = vunpack.c.l.b16 %v462
        %v573 = vunpack.c.h.b16 %v462
        %v574 = vunpack.c.l.b16 %v463
        %v575 = vunpack.c.h.b16 %v463
        %v576 = vunpack.c.l.b16 %v464
        %v577 = vunpack.c.h.b16 %v464
        %v578 = vunpack.c.l.b16 %v465
        %v579 = vunpack.c.h.b16 %v465
        %v580 = vunpack.c.l.b16 %v466
        %v581 = vunpack.c.h.b16 %v466
        %v582 = vunpack.c.l.b16 %v467
        %v583 = vunpack.c.h.b16 %v467
        %v584 = vunpack.c.l.b16 %v468
        %v585 = vunpack.c.h.b16 %v468
        %v586 = vunpack.c.l.b16 %v469
        %v587 = vunpack.c.h.b16 %v469
        %v588 = vunpack.c.l.b16 %v470
        %v589 = vunpack.c.h.b16 %v470
        %v590 = vunpack.c.l.b16 %v471
        %v591 = vunpack.c.h.b16 %v471
        %v592 = vunpack.c.l.b16 %v472
        %v593 = vunpack.c.h.b16 %v472
        %v594 = vunpack.c.l.b16 %v473
        %v595 = vunpack.c.h.b16 %v473
        %v596 = vunpack.c.l.b16 %v474
        %v597 = vunpack.c.h.b16 %v474
        %v598 = vunpack.c.l.b16 %v475
        %v599 = vunpack.c.h.b16 %v475
        %v600 = vunpack.c.l.b16 %v476
        %v601 = vunpack.c.h.b16 %v476
        %v602 = vunpack.c.l.b16 %v477
        %v603 = vunpack.c.h.b16 %v477
        %v604 = vunpack.c.l.b16 %v478
        %v605 = vunpack.c.h.b16 %v478
        %v606 = vunpack.c.l.b16 %v479
        %v607 = vunpack.c.h.b16 %v479
        %v608 = vunpack.c.l.b16 %v480
        %v609 = vunpack.c.h.b16 %v480
        %v610 = vunpack.c.l.b16 %v481
        %v611 = vunpack.c.h.b16 %v481
        %v612 = vunpack.c.l.b16 %v482
        %v613 = vunpack.c.h.b16 %v482
        %v614 = vunpack.c.l.b16 %v483
        %v615 = vunpack.c.h.b16 %v483
        %v616 = vunpack.c.l.b16 %v484
        %v617 = vunpack.c.h.b16 %v484
        %v618 = vunpack.c.l.b16 %v485
        %v619 = vunpack.c.h.b16 %v485
        %v620 = vunpack.c.l.b16 %v486
        %v621 = vunpack.c.h.b16 %v486
        %v622 = vunpack.c.l.b16 %v487
        %v623 = vunpack.c.h.b16 %v487
        %v624 = vunpack.c.l.b16 %v488
        %v625 = vunpack.c.h.b16 %v488
        %v626 = vunpack.c.l.b16 %v489
        %v627 = vunpack.c.h.b16 %v489
        %v628 = vunpack.c.l.b16 %v490
        %v629 = vunpack.c.h.b16 %v490
        %v630 = vunpack.c.l.b16 %v491
        %v631 = vunpack.c.h.b16 %v491
        %v632 = vunpack.c.l.b16 %v492
        %v633 = vunpack.c.h.b16 %v492
        %v634 = vunpack.c.l.b16 %v493
        %v635 = vunpack.c.h.b16 %v493
        %v636 = vpack.c.b16 %v574, %v572
        %v637 = vpack.c.b16 %v575, %v573
        %v638 = vpack.c.b16 %v578, %v576
        %v639 = vpack.c.b16 %v579, %v577
        %v640 = vpack.c.b16 %v582, %v580
        %v641 = vpack.c.b16 %v583, %v581
        %v642 = vpack.c.b16 %v586, %v584
        %v643 = vpack.c.b16 %v587, %v585
        %v644 = vpack.c.b16 %v590, %v588
        %v645 = vpack.c.b16 %v591, %v589
        %v646 = vpack.c.b16 %v594, %v592
        %v647 = vpack.c.b16 %v595, %v593
        %v648 = vpack.c.b16 %v598, %v596
        %v649 = vpack.c.b16 %v599, %v597
        %v650 = vpack.c.b16 %v602, %v600
        %v651 = vpack.c.b16 %v603, %v601
        %v652 = vpack.c.b16 %v606, %v604
        %v653 = vpack.c.b16 %v607, %v605
        %v654 = vpack.c.b16 %v610, %v608
        %v655 = vpack.c.b16 %v611, %v609
        %v656 = vpack.c.b16 %v614, %v612
        %v657 = vpack.c.b16 %v615, %v613
        %v658 = vpack.c.b16 %v618, %v616
        %v659 = vpack.c.b16 %v619, %v617
        %v660 = vpack.c.b16 %v622, %v620
        %v661 = vpack.c.b16 %v623, %v621
        %v662 = vpack.c.b16 %v626, %v624
        %v663 = vpack.c.b16 %v627, %v625
        %v664 = vpack.c.b16 %v630, %v628
        %v665 = vpack.c.b16 %v631, %v629
        %v666 = vpack.c.b16 %v634, %v632
        %v667 = vpack.c.b16 %v635, %v633
        %700 = vmatpush.bf16.msra.mxu0 %v650
        %701 = vmatpush.bf16.msra.mxu0 %v648
        %702 = vmatpush.bf16.msra.mxu0 %v646
        %703 = vmatpush.bf16.msra.mxu0 %v644
        %704 = vmatpush.bf16.msra.mxu0 %v642
        %705 = vmatpush.bf16.msra.mxu0 %v640
        %706 = vmatpush.bf16.msra.mxu0 %v638
        %707 = vmatpush.bf16.msra.mxu0 %v636
        %708 = vmatmul.bf16.gmra.mxu0 %v524
        %v709 = vpop.f32.mrf.mxu0
        %v710 = vadd.f32 %v496, %v709
        %v711 = vpop.f32.mrf.mxu0
        %v712 = vadd.f32 %v496, %v711
        %713 = vmatmul.bf16.gmra.mxu0 %v526
        %v714 = vpop.f32.mrf.mxu0
        %v715 = vadd.f32 %v496, %v714
        %v716 = vpop.f32.mrf.mxu0
        %v717 = vadd.f32 %v496, %v716
        %718 = vmatmul.bf16.gmra.mxu0 %v528
        %v719 = vpop.f32.mrf.mxu0
        %v720 = vadd.f32 %v496, %v719
        %v721 = vpop.f32.mrf.mxu0
        %v722 = vadd.f32 %v496, %v721
        %723 = vmatmul.bf16.gmra.mxu0 %v530
        %v724 = vpop.f32.mrf.mxu0
        %v725 = vadd.f32 %v496, %v724
        %v726 = vpop.f32.mrf.mxu0
        %v727 = vadd.f32 %v496, %v726
        %728 = vdwg.mxu0
        %729 = vmatpush.bf16.msra.mxu0 %v666
        %730 = vmatpush.bf16.msra.mxu0 %v664
        %731 = vmatpush.bf16.msra.mxu0 %v662
        %732 = vmatpush.bf16.msra.mxu0 %v660
        %733 = vmatpush.bf16.msra.mxu0 %v658
        %734 = vmatpush.bf16.msra.mxu0 %v656
        %735 = vmatpush.bf16.msra.mxu0 %v654
        %736 = vmatpush.bf16.msra.mxu0 %v652
        %737 = vmatmul.bf16.gmra.mxu0 %v525
        %v738 = vpop.f32.mrf.mxu0
        %v739 = vadd.f32 %v710, %v738
        %v740 = vpop.f32.mrf.mxu0
        %v741 = vadd.f32 %v712, %v740
        %742 = vmatmul.bf16.gmra.mxu0 %v527
        %v743 = vpop.f32.mrf.mxu0
        %v744 = vadd.f32 %v715, %v743
        %v745 = vpop.f32.mrf.mxu0
        %v746 = vadd.f32 %v717, %v745
        %747 = vmatmul.bf16.gmra.mxu0 %v529
        %v748 = vpop.f32.mrf.mxu0
        %v749 = vadd.f32 %v720, %v748
        %v750 = vpop.f32.mrf.mxu0
        %v751 = vadd.f32 %v722, %v750
        %752 = vmatmul.bf16.gmra.mxu0 %v531
        %v753 = vpop.f32.mrf.mxu0
        %v754 = vadd.f32 %v725, %v753
        %v755 = vpop.f32.mrf.mxu0
        %v756 = vadd.f32 %v727, %v755
        %757 = vdwg.mxu0
        %758 = vmatpush.bf16.msra.mxu0 %v651
        %759 = vmatpush.bf16.msra.mxu0 %v649
        %760 = vmatpush.bf16.msra.mxu0 %v647
        %761 = vmatpush.bf16.msra.mxu0 %v645
        %762 = vmatpush.bf16.msra.mxu0 %v643
        %763 = vmatpush.bf16.msra.mxu0 %v641
        %764 = vmatpush.bf16.msra.mxu0 %v639
        %765 = vmatpush.bf16.msra.mxu0 %v637
        %766 = vmatmul.bf16.gmra.mxu0 %v524
        %v767 = vpop.f32.mrf.mxu0
        %v768 = vadd.f32 %v497, %v767
        %v769 = vpop.f32.mrf.mxu0
        %v770 = vadd.f32 %v497, %v769
        %771 = vmatmul.bf16.gmra.mxu0 %v526
        %v772 = vpop.f32.mrf.mxu0
        %v773 = vadd.f32 %v497, %v772
        %v774 = vpop.f32.mrf.mxu0
        %v775 = vadd.f32 %v497, %v774
        %776 = vmatmul.bf16.gmra.mxu0 %v528
        %v777 = vpop.f32.mrf.mxu0
        %v778 = vadd.f32 %v497, %v777
        %v779 = vpop.f32.mrf.mxu0
        %v780 = vadd.f32 %v497, %v779
        %781 = vmatmul.bf16.gmra.mxu0 %v530
        %v782 = vpop.f32.mrf.mxu0
        %v783 = vadd.f32 %v497, %v782
        %v784 = vpop.f32.mrf.mxu0
        %v785 = vadd.f32 %v497, %v784
        %786 = vdwg.mxu0
        %787 = vmatpush.bf16.msra.mxu0 %v667
        %788 = vmatpush.bf16.msra.mxu0 %v665
        %789 = vmatpush.bf16.msra.mxu0 %v663
        %790 = vmatpush.bf16.msra.mxu0 %v661
        %791 = vmatpush.bf16.msra.mxu0 %v659
        %792 = vmatpush.bf16.msra.mxu0 %v657
        %793 = vmatpush.bf16.msra.mxu0 %v655
        %794 = vmatpush.bf16.msra.mxu0 %v653
        %795 = vmatmul.bf16.gmra.mxu0 %v525
        %v796 = vpop.f32.mrf.mxu0
        %v797 = vadd.f32 %v768, %v796
        %v798 = vpop.f32.mrf.mxu0
        %v799 = vadd.f32 %v770, %v798
        %800 = vmatmul.bf16.gmra.mxu0 %v527
        %v801 = vpop.f32.mrf.mxu0
        %v802 = vadd.f32 %v773, %v801
        %v803 = vpop.f32.mrf.mxu0
        %v804 = vadd.f32 %v775, %v803
        %805 = vmatmul.bf16.gmra.mxu0 %v529
        %v806 = vpop.f32.mrf.mxu0
        %v807 = vadd.f32 %v778, %v806
        %v808 = vpop.f32.mrf.mxu0
        %v809 = vadd.f32 %v780, %v808
        %810 = vmatmul.bf16.gmra.mxu0 %v531
        %v811 = vpop.f32.mrf.mxu0
        %v812 = vadd.f32 %v783, %v811
        %v813 = vpop.f32.mrf.mxu0
        %v814 = vadd.f32 %v785, %v813
        %815 = vdwg.mxu0
        %v816 = vpack.c.bf16 %v797, %v739
        %v817 = vpack.c.bf16 %v799, %v741
        %v818 = vpack.c.bf16 %v802, %v744
        %v819 = vpack.c.bf16 %v804, %v746
        %v820 = vpack.c.bf16 %v807, %v749
        %v821 = vpack.c.bf16 %v809, %v751
        %v822 = vpack.c.bf16 %v812, %v754
        %v823 = vpack.c.bf16 %v814, %v756
        %824 = vst [vmem:[%s402] sm:$0xff] %v816
        %825 = vst [vmem:[%s402 + $0x8] sm:$0xff] %v817
        %826 = vst [vmem:[%s402 + $0x10] sm:$0xff] %v818
        %827 = vst [vmem:[%s402 + $0x18] sm:$0xff] %v819
        %828 = vst [vmem:[%s402 + $0x20] sm:$0xff] %v820
        %829 = vst [vmem:[%s402 + $0x28] sm:$0xff] %v821
        %830 = vst [vmem:[%s402 + $0x30] sm:$0xff] %v822
        %831 = vst [vmem:[%s402 + $0x38] sm:$0xff] %v823
        %v832 = vld [vmem:[#allocation2] sm:$0xff]
        %v833 = vld [vmem:[#allocation2 + $0x8] sm:$0xff]
        %v834 = vld [vmem:[#allocation2 + $0x10] sm:$0xff]
        %v835 = vld [vmem:[#allocation2 + $0x18] sm:$0xff]
        %v836 = vld [vmem:[#allocation2 + $0x20] sm:$0xff]
        %v837 = vld [vmem:[#allocation2 + $0x28] sm:$0xff]
        %v838 = vld [vmem:[#allocation2 + $0x30] sm:$0xff]
        %v839 = vld [vmem:[#allocation2 + $0x38] sm:$0xff]
        %v840 = vmax.f32 %v739, %v797
        %841 = vmax.xlane.f32.xlu0 %v840
        %v842 = vpop.xlane.xlu0 %841
        %v843 = vmax.f32 %v741, %v799
        %844 = vmax.xlane.f32.xlu0 %v843
        %v845 = vpop.xlane.xlu0 %844
        %v846 = vmax.f32 %v744, %v802
        %847 = vmax.xlane.f32.xlu0 %v846
        %v848 = vpop.xlane.xlu0 %847
        %v849 = vmax.f32 %v746, %v804
        %850 = vmax.xlane.f32.xlu0 %v849
        %v851 = vpop.xlane.xlu0 %850
        %v852 = vmax.f32 %v749, %v807
        %853 = vmax.xlane.f32.xlu0 %v852
        %v854 = vpop.xlane.xlu0 %853
        %v855 = vmax.f32 %v751, %v809
        %856 = vmax.xlane.f32.xlu0 %v855
        %v857 = vpop.xlane.xlu0 %856
        %v858 = vmax.f32 %v754, %v812
        %859 = vmax.xlane.f32.xlu0 %v858
        %v860 = vpop.xlane.xlu0 %859
        %v861 = vmax.f32 %v756, %v814
        %862 = vmax.xlane.f32.xlu0 %v861
        %v863 = vpop.xlane.xlu0 %862
        %v864 = vmax.f32 %v832, %v842
        %v865 = vmax.f32 %v833, %v845
        %v866 = vmax.f32 %v834, %v848
        %v867 = vmax.f32 %v835, %v851
        %v868 = vmax.f32 %v836, %v854
        %v869 = vmax.f32 %v837, %v857
        %v870 = vmax.f32 %v838, %v860
        %v871 = vmax.f32 %v839, %v863
        %v872 = vld [vmem:[#allocation3] sm:$0xff]
        %v873 = vld [vmem:[#allocation3 + $0x8] sm:$0xff]
        %v874 = vld [vmem:[#allocation3 + $0x10] sm:$0xff]
        %v875 = vld [vmem:[#allocation3 + $0x18] sm:$0xff]
        %v876 = vld [vmem:[#allocation3 + $0x20] sm:$0xff]
        %v877 = vld [vmem:[#allocation3 + $0x28] sm:$0xff]
        %v878 = vld [vmem:[#allocation3 + $0x30] sm:$0xff]
        %v879 = vld [vmem:[#allocation3 + $0x38] sm:$0xff]
        %v880 = vsub.f32 %v832, %v864
        %v881 = vsub.f32 %v833, %v865
        %v882 = vsub.f32 %v834, %v866
        %v883 = vsub.f32 %v835, %v867
        %v884 = vsub.f32 %v836, %v868
        %v885 = vsub.f32 %v837, %v869
        %v886 = vsub.f32 %v838, %v870
        %v887 = vsub.f32 %v839, %v871
        %v888 = vmul.f32 %v880, 1.442695
        %v889 = vpow.pop %v888
        %v890 = vmul.f32 %v881, 1.442695
        %v891 = vpow.pop %v890
        %v892 = vmul.f32 %v882, 1.442695
        %v893 = vpow.pop %v892
        %v894 = vmul.f32 %v883, 1.442695
        %v895 = vpow.pop %v894
        %v896 = vmul.f32 %v884, 1.442695
        %v897 = vpow.pop %v896
        %v898 = vmul.f32 %v885, 1.442695
        %v899 = vpow.pop %v898
        %v900 = vmul.f32 %v886, 1.442695
        %v901 = vpow.pop %v900
        %v902 = vmul.f32 %v887, 1.442695
        %v903 = vpow.pop %v902
        %v904 = vmul.f32 %v872, %v889
        %v905 = vmul.f32 %v873, %v891
        %v906 = vmul.f32 %v874, %v893
        %v907 = vmul.f32 %v875, %v895
        %v908 = vmul.f32 %v876, %v897
        %v909 = vmul.f32 %v877, %v899
        %v910 = vmul.f32 %v878, %v901
        %v911 = vmul.f32 %v879, %v903
        %913 = vset.pattern.permute.xlu0 0
        %914 = vperm.xlu0 %913, %v864
        %v915 = vpop.permute.xlu0 %914
        %918 = vset.pattern.permute.xlu0 0
        %919 = vperm.xlu0 %918, %v865
        %v920 = vpop.permute.xlu0 %919
        %923 = vset.pattern.permute.xlu0 0
        %924 = vperm.xlu0 %923, %v866
        %v925 = vpop.permute.xlu0 %924
        %928 = vset.pattern.permute.xlu0 0
        %929 = vperm.xlu0 %928, %v867
        %v930 = vpop.permute.xlu0 %929
        %933 = vset.pattern.permute.xlu0 0
        %934 = vperm.xlu0 %933, %v868
        %v935 = vpop.permute.xlu0 %934
        %938 = vset.pattern.permute.xlu0 0
        %939 = vperm.xlu0 %938, %v869
        %v940 = vpop.permute.xlu0 %939
        %943 = vset.pattern.permute.xlu0 0
        %944 = vperm.xlu0 %943, %v870
        %v945 = vpop.permute.xlu0 %944
        %948 = vset.pattern.permute.xlu0 0
        %949 = vperm.xlu0 %948, %v871
        %v950 = vpop.permute.xlu0 %949
        %v952 = vsub.f32 %v739, %v915
        %v953 = vsub.f32 %v797, %v915
        %v954 = vsub.f32 %v741, %v920
        %v955 = vsub.f32 %v799, %v920
        %v956 = vsub.f32 %v744, %v925
        %v957 = vsub.f32 %v802, %v925
        %v958 = vsub.f32 %v746, %v930
        %v959 = vsub.f32 %v804, %v930
        %v960 = vsub.f32 %v749, %v935
        %v961 = vsub.f32 %v807, %v935
        %v962 = vsub.f32 %v751, %v940
        %v963 = vsub.f32 %v809, %v940
        %v964 = vsub.f32 %v754, %v945
        %v965 = vsub.f32 %v812, %v945
        %v966 = vsub.f32 %v756, %v950
        %v967 = vsub.f32 %v814, %v950
        %v968 = vmul.f32 %v952, 1.442695
        %v969 = vpow.pop %v968
        %v970 = vmul.f32 %v953, 1.442695
        %v971 = vpow.pop %v970
        %v972 = vmul.f32 %v954, 1.442695
        %v973 = vpow.pop %v972
        %v974 = vmul.f32 %v955, 1.442695
        %v975 = vpow.pop %v974
        %v976 = vmul.f32 %v956, 1.442695
        %v977 = vpow.pop %v976
        %v978 = vmul.f32 %v957, 1.442695
        %v979 = vpow.pop %v978
        %v980 = vmul.f32 %v958, 1.442695
        %v981 = vpow.pop %v980
        %v982 = vmul.f32 %v959, 1.442695
        %v983 = vpow.pop %v982
        %v984 = vmul.f32 %v960, 1.442695
        %v985 = vpow.pop %v984
        %v986 = vmul.f32 %v961, 1.442695
        %v987 = vpow.pop %v986
        %v988 = vmul.f32 %v962, 1.442695
        %v989 = vpow.pop %v988
        %v990 = vmul.f32 %v963, 1.442695
        %v991 = vpow.pop %v990
        %v992 = vmul.f32 %v964, 1.442695
        %v993 = vpow.pop %v992
        %v994 = vmul.f32 %v965, 1.442695
        %v995 = vpow.pop %v994
        %v996 = vmul.f32 %v966, 1.442695
        %v997 = vpow.pop %v996
        %v998 = vmul.f32 %v967, 1.442695
        %v999 = vpow.pop %v998
        %v1000 = vadd.f32 %v969, %v971
        %1001 = vadd.xlane.f32.xlu0 %v1000
        %v1002 = vpop.xlane.xlu0 %1001
        %v1003 = vadd.f32 %v973, %v975
        %1004 = vadd.xlane.f32.xlu0 %v1003
        %v1005 = vpop.xlane.xlu0 %1004
        %v1006 = vadd.f32 %v977, %v979
        %1007 = vadd.xlane.f32.xlu0 %v1006
        %v1008 = vpop.xlane.xlu0 %1007
        %v1009 = vadd.f32 %v981, %v983
        %1010 = vadd.xlane.f32.xlu0 %v1009
        %v1011 = vpop.xlane.xlu0 %1010
        %v1012 = vadd.f32 %v985, %v987
        %1013 = vadd.xlane.f32.xlu0 %v1012
        %v1014 = vpop.xlane.xlu0 %1013
        %v1015 = vadd.f32 %v989, %v991
        %1016 = vadd.xlane.f32.xlu0 %v1015
        %v1017 = vpop.xlane.xlu0 %1016
        %v1018 = vadd.f32 %v993, %v995
        %1019 = vadd.xlane.f32.xlu0 %v1018
        %v1020 = vpop.xlane.xlu0 %1019
        %v1021 = vadd.f32 %v997, %v999
        %1022 = vadd.xlane.f32.xlu0 %v1021
        %v1023 = vpop.xlane.xlu0 %1022
        %v1024 = vadd.f32 %v904, %v1002
        %v1025 = vadd.f32 %v905, %v1005
        %v1026 = vadd.f32 %v906, %v1008
        %v1027 = vadd.f32 %v907, %v1011
        %v1028 = vadd.f32 %v908, %v1014
        %v1029 = vadd.f32 %v909, %v1017
        %v1030 = vadd.f32 %v910, %v1020
        %v1031 = vadd.f32 %v911, %v1023
        %vm1032 = vcmask 7168
        %1033 = vst.msk [vmem:[#allocation3] sm:$0xff] %vm1032, %v1024
        %1034 = vst.msk [vmem:[#allocation3 + $0x8] sm:$0xff] %vm1032, %v1025
        %1035 = vst.msk [vmem:[#allocation3 + $0x10] sm:$0xff] %vm1032, %v1026
        %1036 = vst.msk [vmem:[#allocation3 + $0x18] sm:$0xff] %vm1032, %v1027
        %1037 = vst.msk [vmem:[#allocation3 + $0x20] sm:$0xff] %vm1032, %v1028
        %1038 = vst.msk [vmem:[#allocation3 + $0x28] sm:$0xff] %vm1032, %v1029
        %1039 = vst.msk [vmem:[#allocation3 + $0x30] sm:$0xff] %vm1032, %v1030
        %1040 = vst.msk [vmem:[#allocation3 + $0x38] sm:$0xff] %vm1032, %v1031
        %1041 = vst.msk [vmem:[#allocation2] sm:$0xff] %vm1032, %v864
        %1042 = vst.msk [vmem:[#allocation2 + $0x8] sm:$0xff] %vm1032, %v865
        %1043 = vst.msk [vmem:[#allocation2 + $0x10] sm:$0xff] %vm1032, %v866
        %1044 = vst.msk [vmem:[#allocation2 + $0x18] sm:$0xff] %vm1032, %v867
        %1045 = vst.msk [vmem:[#allocation2 + $0x20] sm:$0xff] %vm1032, %v868
        %1046 = vst.msk [vmem:[#allocation2 + $0x28] sm:$0xff] %vm1032, %v869
        %1047 = vst.msk [vmem:[#allocation2 + $0x30] sm:$0xff] %vm1032, %v870
        %1048 = vst.msk [vmem:[#allocation2 + $0x38] sm:$0xff] %vm1032, %v871
        %p1049 = scmp.eq.s32.totalorder %s24, 1
        // Predicated region
        $region75: #{_lambda_.4} parent=65 // pred_check
          %p1050 = pneg %p1049
        $region76: #{_lambda_.4} parent=65 // pred_check_branch
          %1052 = sbr.rel (%p1050) target = $region78
        $region77: #{_lambda_.4} parent=65 // pred_region
          %v1053 = vld [vmem:[#allocation2] sm:$0xff]
          %v1054 = vld [vmem:[#allocation2 + $0x8] sm:$0xff]
          %v1055 = vld [vmem:[#allocation2 + $0x10] sm:$0xff]
          %v1056 = vld [vmem:[#allocation2 + $0x18] sm:$0xff]
          %v1057 = vld [vmem:[#allocation2 + $0x20] sm:$0xff]
          %v1058 = vld [vmem:[#allocation2 + $0x28] sm:$0xff]
          %v1059 = vld [vmem:[#allocation2 + $0x30] sm:$0xff]
          %v1060 = vld [vmem:[#allocation2 + $0x38] sm:$0xff]
          %v1061 = vld [vmem:[#allocation3] sm:$0xff]
          %v1062 = vld [vmem:[#allocation3 + $0x8] sm:$0xff]
          %v1063 = vld [vmem:[#allocation3 + $0x10] sm:$0xff]
          %v1064 = vld [vmem:[#allocation3 + $0x18] sm:$0xff]
          %v1065 = vld [vmem:[#allocation3 + $0x20] sm:$0xff]
          %v1066 = vld [vmem:[#allocation3 + $0x28] sm:$0xff]
          %v1067 = vld [vmem:[#allocation3 + $0x30] sm:$0xff]
          %v1068 = vld [vmem:[#allocation3 + $0x38] sm:$0xff]
          %v1069 = vlog2.pop %v1061
          %v1070 = vmul.f32 %v1069, 0.6931472
          %v1071 = vlog2.pop %v1062
          %v1072 = vmul.f32 %v1071, 0.6931472
          %v1073 = vlog2.pop %v1063
          %v1074 = vmul.f32 %v1073, 0.6931472
          %v1075 = vlog2.pop %v1064
          %v1076 = vmul.f32 %v1075, 0.6931472
          %v1077 = vlog2.pop %v1065
          %v1078 = vmul.f32 %v1077, 0.6931472
          %v1079 = vlog2.pop %v1066
          %v1080 = vmul.f32 %v1079, 0.6931472
          %v1081 = vlog2.pop %v1067
          %v1082 = vmul.f32 %v1081, 0.6931472
          %v1083 = vlog2.pop %v1068
          %v1084 = vmul.f32 %v1083, 0.6931472
          %v1085 = vadd.f32 %v1053, %v1070
          %v1086 = vadd.f32 %v1054, %v1072
          %v1087 = vadd.f32 %v1055, %v1074
          %v1088 = vadd.f32 %v1056, %v1076
          %v1089 = vadd.f32 %v1057, %v1078
          %v1090 = vadd.f32 %v1058, %v1080
          %v1091 = vadd.f32 %v1059, %v1082
          %v1092 = vadd.f32 %v1060, %v1084
          %1093 = vst.msk [vmem:[%s431] sm:$0xff] %vm1032, %v1085
          %1094 = vst.msk [vmem:[%s431 + $0x8] sm:$0xff] %vm1032, %v1086
          %1095 = vst.msk [vmem:[%s431 + $0x10] sm:$0xff] %vm1032, %v1087
          %1096 = vst.msk [vmem:[%s431 + $0x18] sm:$0xff] %vm1032, %v1088
          %1097 = vst.msk [vmem:[%s431 + $0x20] sm:$0xff] %vm1032, %v1089
          %1098 = vst.msk [vmem:[%s431 + $0x28] sm:$0xff] %vm1032, %v1090
          %1099 = vst.msk [vmem:[%s431 + $0x30] sm:$0xff] %vm1032, %v1091
          %1100 = vst.msk [vmem:[%s431 + $0x38] sm:$0xff] %vm1032, %v1092
        $region78: #{_lambda_.4} parent=65 // pred_fallthru
          _
        %s1101 = sand.u32 %s119, 1
        %s1102 = scalar_lea.sflag [#allocation6], %s1101
        %s1103 = sand.u32 %s119, 1
        %s1104 = smul.addr %s1103, 64
        %s1105 = scalar_lea.vmem [#allocation5], %s1104
        %s1106 = smul.u32 2, %s23
        %p1107 = scmp.lt.s32.totalorder %s1106, 3
        %s1108 = scalar_select %p1107, %s1106, 3
        %s1109 = smul.addr %s1108, 4
        %s1110 = smul.addr %s1109, 8
        %s1111 = scalar_lea.vmem %s4, %s1110
        // Predicated region
        $region79: #{_lambda_.4} parent=65 // pred_check
          %p1112 = pneg %p129
        $region80: #{_lambda_.4} parent=65 // pred_check_branch
          %1114 = sbr.rel (%p1112) target = $region82
        $region81: #{_lambda_.4} parent=65 // pred_region
          %s1115 = smul.u32 2, %s23
          %s1116 = smul.u32 2, %s24
          %1118 = vsyncadd %s1102, 0
          %s1119 = smul.addr %s1115, 16
          %s1120 = sadd.s32 %s1116, %s1119
          %s1121 = smul.addr %s1120, 4
          %s1122 = scalar_lea.hbm %s3, %s1121
          %s1123 = sshll.u32 %s1105, 4
          %s1124 = int_to_ptr.vmem [resolvable:$true] %s1123
          %s1125 = sshll.u32 %s1122, 4
          %s1126 = int_to_ptr.hbm [resolvable:$true] %s1125
          %1131 = dma.vmem_to_hbm [thread:$0]  %s1124, 1024, %s1126, %s1102, 128, 256, 8
        $region82: #{_lambda_.4} parent=65 // pred_fallthru
          _
        // Predicated region
        $region83: #{_lambda_.4} parent=65 // pred_check
          %p1132 = pneg %p155
        $region84: #{_lambda_.4} parent=65 // pred_check_branch
          %1134 = sbr.rel (%p1132) target = $region86
        $region85: #{_lambda_.4} parent=65 // pred_region
          %s1135 = smul.u32 2, %s23
        $region86: #{_lambda_.4} parent=65 // pred_fallthru
          _
      $region66: #{_lambda_.4} parent=5 // pred_fallthru
        _
      %p1136 = scmp.le.s32.totalorder 2, %s14
      // Predicated region
      $region87: #{_lambda_.4} parent=5 // pred_check
        %p1137 = pneg %p1136
      $region88: #{_lambda_.4} parent=5 // pred_check_branch
        %1139 = sbr.rel (%p1137) target = $region90
      $region89: #{_lambda_.4} parent=5 // pred_region
        %s1140 = ssub.s32 %s14, 2
        // Predicated region
        $region91: #{_lambda_.4} parent=89 // pred_check
          %p1141 = pneg %p135
        $region92: #{_lambda_.4} parent=89 // pred_check_branch
          %1143 = sbr.rel (%p1141) target = $region94
        $region93: #{_lambda_.4} parent=89 // pred_region
          %s1144 = sand.u32 %s120, 1
          %s1145 = scalar_lea.sflag [#allocation6], %s1144
          %s1146 = sand.u32 %s120, 1
          %s1147 = smul.addr %s1146, 64
          %s1148 = scalar_lea.vmem [#allocation5], %s1147
          %1150 = dma.done %s1145, 1024
        $region94: #{_lambda_.4} parent=89 // pred_fallthru
          _
        // Predicated region
        $region95: #{_lambda_.4} parent=89 // pred_check
          %p1151 = pneg %p161
        $region96: #{_lambda_.4} parent=89 // pred_check_branch
          %1153 = sbr.rel (%p1151) target = $region98
        $region97: #{_lambda_.4} parent=89 // pred_region
          %s1154 = smul.u32 2, %s25
          %p1155 = scmp.lt.s32.totalorder %s1154, 3
          %s1156 = scalar_select %p1155, %s1154, 3
          %s1157 = smul.addr %s1156, 4
          %s1158 = smul.addr %s1157, 8
          %s1159 = scalar_lea.vmem %s4, %s1158
        $region98: #{_lambda_.4} parent=89 // pred_fallthru
          _
      $region90: #{_lambda_.4} parent=5 // pred_fallthru
        _
    $region6: #{_lambda_.4} parent=1 // loop_footer
      %s18 = sadd.s32 1, %s14
    $region7: #{_lambda_.4} parent=1 // loop_footer_branch
      %13 = sbr.rel target = $region3
    $region8: #{_lambda_.4} parent=1 // loop_exit
      _
    %1160 = vsyncpa [#allocation6], 1
    %s1161 = scalar_lea.sflag [#allocation6], 1
    %1162 = vsyncpa %s1161, 1

// kernel: _lambda_.3
$region0: #{_lambda_.3}
  #allocation0 [shape = 'u32[]', space=smem, size = 0x4, offset = 0x4, fixed_abs, tag = 'smem constant byte address 0x4 - core index']
  #allocation1 [shape = 'u32[72,128]{1,0:T(1,128)}', space=vmem, size = 0x9000, scoped, tag = 'internal scratch']
  #allocation2 [shape = 'f32[64,256]{1,0:T(8,128)}', space=vmem, size = 0x10000, scoped, tag = 'scratch operand']
  %s0 = inlined_call_operand.vmem [shape: bf16[4,32,256], index: 0, kind: input, shape index: {}]
  %s1 = inlined_call_operand.vmem [shape: f32[2,1,256], index: 1, kind: input, shape index: {}]
  %s2 = inlined_call_operand.vmem [shape: f32[2,1,256], index: 2, kind: input, shape index: {}]
  %s3 = inlined_call_operand.vmem [shape: bf16[2,256,512], index: 3, kind: input, shape index: {}]
  %s4 = inlined_call_operand.vmem [shape: f32[2,1,512], index: 4, kind: input, shape index: {}]
  %s5 = inlined_call_operand.vmem [shape: f32[2,1,256], index: 5, kind: input, shape index: {}]
  %s6 = inlined_call_operand.vmem [shape: f32[2,1,256], index: 6, kind: input, shape index: {}]
  %s7 = inlined_call_operand.vmem [shape: bf16[2,32,32], index: 7, kind: input, shape index: {}]
  %s8 = inlined_call_operand.vmem [shape: f32[2,32,1], index: 8, kind: input, shape index: {}]
  %s9 = inlined_call_operand.vmem [shape: bf16[2,256,256], index: 9, kind: input, shape index: {}]
  %s10 = inlined_call_operand.vmem [shape: f32[2,1,256], index: 10, kind: input, shape index: {}]
  %s11 = inlined_call_operand.vmem [shape: bf16[4,32,256], index: 11, kind: output, shape index: {}]
  %s12 = sld [smem:[#allocation0]]
  $region85: #{_lambda_.3} parent=0
    _
  %s14 = ssub.s32 1, %s12
  %s15 = scalar_select 0, %s14, %s12
  loop: start=0, step=1, limit=6
  $region2: #{_lambda_.3} parent=0 // loop_pre_header
    _
  $region3: #{_lambda_.3} parent=0 // loop_header
    %s17 = sphi 0, %s21
    %p18 = scmp.ge.s32.totalorder %s17, 6
    %s24 = sphi 0, %s36
    %s25 = sphi 0, %s32
    %s26 = sphi 0, %s24
    %s27 = sphi 0, %s25
    %s28 = sphi 0, %s26
    %s29 = sphi 0, %s27
    %s39 = sphi 0, %s41
    %s42 = sphi 0, %s39
    %s43 = sphi 0, %s42
    %s59 = sphi 0, %s43
    %s65 = sphi 0, %s67
    %s68 = sphi 0, %s65
    %s69 = sphi 0, %s68
    %s85 = sphi 0, %s69
    %s91 = sphi 0, %s93
    %s94 = sphi 0, %s91
    %s95 = sphi 0, %s94
    %s111 = sphi 0, %s95
    %s117 = sphi 0, %s119
    %s120 = sphi 0, %s117
    %s121 = sphi 0, %s120
    %s137 = sphi 0, %s121
    %s143 = sphi 0, %s145
    %s146 = sphi 0, %s143
    %s147 = sphi 0, %s146
    %s163 = sphi 0, %s147
    %s169 = sphi 0, %s171
    %s172 = sphi 0, %s169
    %s173 = sphi 0, %s172
    %s189 = sphi 0, %s173
    %s195 = sphi 0, %s197
    %s198 = sphi 0, %s195
    %s199 = sphi 0, %s198
    %s215 = sphi 0, %s199
    %s221 = sphi 0, %s223
    %s224 = sphi 0, %s221
    %s225 = sphi 0, %s224
    %s241 = sphi 0, %s225
    %s247 = sphi 0, %s249
    %s250 = sphi 0, %s247
    %s251 = sphi 0, %s250
    %s267 = sphi 0, %s251
    %s273 = sphi 0, %s275
    %s276 = sphi 0, %s273
    %s277 = sphi 0, %s276
    %s293 = sphi 0, %s277
    %s299 = sphi 0, %s301
    %s302 = sphi 0, %s299
    %s303 = sphi 0, %s302
    %s319 = sphi 0, %s303
    %s325 = sphi 0, %s327
    %s328 = sphi 0, %s325
    %s329 = sphi 0, %s328
    %s345 = sphi 0, %s329
  $region4: #{_lambda_.3} parent=0 // loop_header_branch
    %20 = sbr.rel (%p18) target = $region8
  $region5: #{_lambda_.3} parent=0 // loop_body
    %s22 = ssub.s32 %s17, 1
    %s23 = ssub.s32 %s17, 2
    %s30 = sadd.s32 1, %s25
    %p31 = scmp.ge.s32.totalorder %s30, 2
    %s32 = scalar_select %p31, 0, %s30
    %s33 = sadd.s32 1, %s24
    %s34 = scalar_select %p31, %s33, %s24
    %p35 = scmp.ge.s32.totalorder %s34, 2
    %s36 = scalar_select %p35, 0, %s34
    %s37 = ssub.s32 %s24, %s36
    %p38 = scmp.eq.s32.totalorder %s37, 0
    %s40 = sadd.s32 %s39, 1
    %s41 = scalar_select %p38, %s39, %s40
    %p44 = pneg %p38
    %p45 = scmp.eq.s32.totalorder %s17, 3
    %p46 = por %p44, %p45
    %p47 = scmp.ne.s32.totalorder %s39, %s42
    %p48 = scmp.eq.s32.totalorder %s17, 0
    %p49 = por %p47, %p48
    %p50 = scmp.ne.s32.totalorder %s39, %s42
    %p51 = scmp.eq.s32.totalorder %s22, 3
    %p52 = por %p50, %p51
    %p53 = scmp.ne.s32.totalorder %s42, %s43
    %p54 = scmp.eq.s32.totalorder %s22, 0
    %p55 = por %p53, %p54
    %p56 = scmp.ne.s32.totalorder %s42, %s43
    %p57 = scmp.eq.s32.totalorder %s23, 3
    %p58 = por %p56, %p57
    %p60 = scmp.ne.s32.totalorder %s43, %s59
    %p61 = scmp.eq.s32.totalorder %s23, 0
    %p62 = por %p60, %p61
    %s63 = ssub.s32 %s25, %s32
    %p64 = scmp.eq.s32.totalorder %s63, 0
    %s66 = sadd.s32 %s65, 1
    %s67 = scalar_select %p64, %s65, %s66
    %p70 = pneg %p64
    %p71 = scmp.eq.s32.totalorder %s17, 3
    %p72 = por %p70, %p71
    %p73 = scmp.ne.s32.totalorder %s65, %s68
    %p74 = scmp.eq.s32.totalorder %s17, 0
    %p75 = por %p73, %p74
    %p76 = scmp.ne.s32.totalorder %s65, %s68
    %p77 = scmp.eq.s32.totalorder %s22, 3
    %p78 = por %p76, %p77
    %p79 = scmp.ne.s32.totalorder %s68, %s69
    %p80 = scmp.eq.s32.totalorder %s22, 0
    %p81 = por %p79, %p80
    %p82 = scmp.ne.s32.totalorder %s68, %s69
    %p83 = scmp.eq.s32.totalorder %s23, 3
    %p84 = por %p82, %p83
    %p86 = scmp.ne.s32.totalorder %s69, %s85
    %p87 = scmp.eq.s32.totalorder %s23, 0
    %p88 = por %p86, %p87
    %s89 = ssub.s32 %s25, %s32
    %p90 = scmp.eq.s32.totalorder %s89, 0
    %s92 = sadd.s32 %s91, 1
    %s93 = scalar_select %p90, %s91, %s92
    %p96 = pneg %p90
    %p97 = scmp.eq.s32.totalorder %s17, 3
    %p98 = por %p96, %p97
    %p99 = scmp.ne.s32.totalorder %s91, %s94
    %p100 = scmp.eq.s32.totalorder %s17, 0
    %p101 = por %p99, %p100
    %p102 = scmp.ne.s32.totalorder %s91, %s94
    %p103 = scmp.eq.s32.totalorder %s22, 3
    %p104 = por %p102, %p103
    %p105 = scmp.ne.s32.totalorder %s94, %s95
    %p106 = scmp.eq.s32.totalorder %s22, 0
    %p107 = por %p105, %p106
    %p108 = scmp.ne.s32.totalorder %s94, %s95
    %p109 = scmp.eq.s32.totalorder %s23, 3
    %p110 = por %p108, %p109
    %p112 = scmp.ne.s32.totalorder %s95, %s111
    %p113 = scmp.eq.s32.totalorder %s23, 0
    %p114 = por %p112, %p113
    %s115 = ssub.s32 %s25, %s32
    %p116 = scmp.eq.s32.totalorder %s115, 0
    %s118 = sadd.s32 %s117, 1
    %s119 = scalar_select %p116, %s117, %s118
    %p122 = pneg %p116
    %p123 = scmp.eq.s32.totalorder %s17, 3
    %p124 = por %p122, %p123
    %p125 = scmp.ne.s32.totalorder %s117, %s120
    %p126 = scmp.eq.s32.totalorder %s17, 0
    %p127 = por %p125, %p126
    %p128 = scmp.ne.s32.totalorder %s117, %s120
    %p129 = scmp.eq.s32.totalorder %s22, 3
    %p130 = por %p128, %p129
    %p131 = scmp.ne.s32.totalorder %s120, %s121
    %p132 = scmp.eq.s32.totalorder %s22, 0
    %p133 = por %p131, %p132
    %p134 = scmp.ne.s32.totalorder %s120, %s121
    %p135 = scmp.eq.s32.totalorder %s23, 3
    %p136 = por %p134, %p135
    %p138 = scmp.ne.s32.totalorder %s121, %s137
    %p139 = scmp.eq.s32.totalorder %s23, 0
    %p140 = por %p138, %p139
    %s141 = ssub.s32 %s25, %s32
    %p142 = scmp.eq.s32.totalorder %s141, 0
    %s144 = sadd.s32 %s143, 1
    %s145 = scalar_select %p142, %s143, %s144
    %p148 = pneg %p142
    %p149 = scmp.eq.s32.totalorder %s17, 3
    %p150 = por %p148, %p149
    %p151 = scmp.ne.s32.totalorder %s143, %s146
    %p152 = scmp.eq.s32.totalorder %s17, 0
    %p153 = por %p151, %p152
    %p154 = scmp.ne.s32.totalorder %s143, %s146
    %p155 = scmp.eq.s32.totalorder %s22, 3
    %p156 = por %p154, %p155
    %p157 = scmp.ne.s32.totalorder %s146, %s147
    %p158 = scmp.eq.s32.totalorder %s22, 0
    %p159 = por %p157, %p158
    %p160 = scmp.ne.s32.totalorder %s146, %s147
    %p161 = scmp.eq.s32.totalorder %s23, 3
    %p162 = por %p160, %p161
    %p164 = scmp.ne.s32.totalorder %s147, %s163
    %p165 = scmp.eq.s32.totalorder %s23, 0
    %p166 = por %p164, %p165
    %s167 = ssub.s32 %s25, %s32
    %p168 = scmp.eq.s32.totalorder %s167, 0
    %s170 = sadd.s32 %s169, 1
    %s171 = scalar_select %p168, %s169, %s170
    %p174 = pneg %p168
    %p175 = scmp.eq.s32.totalorder %s17, 3
    %p176 = por %p174, %p175
    %p177 = scmp.ne.s32.totalorder %s169, %s172
    %p178 = scmp.eq.s32.totalorder %s17, 0
    %p179 = por %p177, %p178
    %p180 = scmp.ne.s32.totalorder %s169, %s172
    %p181 = scmp.eq.s32.totalorder %s22, 3
    %p182 = por %p180, %p181
    %p183 = scmp.ne.s32.totalorder %s172, %s173
    %p184 = scmp.eq.s32.totalorder %s22, 0
    %p185 = por %p183, %p184
    %p186 = scmp.ne.s32.totalorder %s172, %s173
    %p187 = scmp.eq.s32.totalorder %s23, 3
    %p188 = por %p186, %p187
    %p190 = scmp.ne.s32.totalorder %s173, %s189
    %p191 = scmp.eq.s32.totalorder %s23, 0
    %p192 = por %p190, %p191
    %s193 = ssub.s32 %s25, %s32
    %p194 = scmp.eq.s32.totalorder %s193, 0
    %s196 = sadd.s32 %s195, 1
    %s197 = scalar_select %p194, %s195, %s196
    %p200 = pneg %p194
    %p201 = scmp.eq.s32.totalorder %s17, 3
    %p202 = por %p200, %p201
    %p203 = scmp.ne.s32.totalorder %s195, %s198
    %p204 = scmp.eq.s32.totalorder %s17, 0
    %p205 = por %p203, %p204
    %p206 = scmp.ne.s32.totalorder %s195, %s198
    %p207 = scmp.eq.s32.totalorder %s22, 3
    %p208 = por %p206, %p207
    %p209 = scmp.ne.s32.totalorder %s198, %s199
    %p210 = scmp.eq.s32.totalorder %s22, 0
    %p211 = por %p209, %p210
    %p212 = scmp.ne.s32.totalorder %s198, %s199
    %p213 = scmp.eq.s32.totalorder %s23, 3
    %p214 = por %p212, %p213
    %p216 = scmp.ne.s32.totalorder %s199, %s215
    %p217 = scmp.eq.s32.totalorder %s23, 0
    %p218 = por %p216, %p217
    %s219 = ssub.s32 %s25, %s32
    %p220 = scmp.eq.s32.totalorder %s219, 0
    %s222 = sadd.s32 %s221, 1
    %s223 = scalar_select %p220, %s221, %s222
    %p226 = pneg %p220
    %p227 = scmp.eq.s32.totalorder %s17, 3
    %p228 = por %p226, %p227
    %p229 = scmp.ne.s32.totalorder %s221, %s224
    %p230 = scmp.eq.s32.totalorder %s17, 0
    %p231 = por %p229, %p230
    %p232 = scmp.ne.s32.totalorder %s221, %s224
    %p233 = scmp.eq.s32.totalorder %s22, 3
    %p234 = por %p232, %p233
    %p235 = scmp.ne.s32.totalorder %s224, %s225
    %p236 = scmp.eq.s32.totalorder %s22, 0
    %p237 = por %p235, %p236
    %p238 = scmp.ne.s32.totalorder %s224, %s225
    %p239 = scmp.eq.s32.totalorder %s23, 3
    %p240 = por %p238, %p239
    %p242 = scmp.ne.s32.totalorder %s225, %s241
    %p243 = scmp.eq.s32.totalorder %s23, 0
    %p244 = por %p242, %p243
    %s245 = ssub.s32 %s25, %s32
    %p246 = scmp.eq.s32.totalorder %s245, 0
    %s248 = sadd.s32 %s247, 1
    %s249 = scalar_select %p246, %s247, %s248
    %p252 = pneg %p246
    %p253 = scmp.eq.s32.totalorder %s17, 3
    %p254 = por %p252, %p253
    %p255 = scmp.ne.s32.totalorder %s247, %s250
    %p256 = scmp.eq.s32.totalorder %s17, 0
    %p257 = por %p255, %p256
    %p258 = scmp.ne.s32.totalorder %s247, %s250
    %p259 = scmp.eq.s32.totalorder %s22, 3
    %p260 = por %p258, %p259
    %p261 = scmp.ne.s32.totalorder %s250, %s251
    %p262 = scmp.eq.s32.totalorder %s22, 0
    %p263 = por %p261, %p262
    %p264 = scmp.ne.s32.totalorder %s250, %s251
    %p265 = scmp.eq.s32.totalorder %s23, 3
    %p266 = por %p264, %p265
    %p268 = scmp.ne.s32.totalorder %s251, %s267
    %p269 = scmp.eq.s32.totalorder %s23, 0
    %p270 = por %p268, %p269
    %s271 = ssub.s32 %s25, %s32
    %p272 = scmp.eq.s32.totalorder %s271, 0
    %s274 = sadd.s32 %s273, 1
    %s275 = scalar_select %p272, %s273, %s274
    %p278 = pneg %p272
    %p279 = scmp.eq.s32.totalorder %s17, 3
    %p280 = por %p278, %p279
    %p281 = scmp.ne.s32.totalorder %s273, %s276
    %p282 = scmp.eq.s32.totalorder %s17, 0
    %p283 = por %p281, %p282
    %p284 = scmp.ne.s32.totalorder %s273, %s276
    %p285 = scmp.eq.s32.totalorder %s22, 3
    %p286 = por %p284, %p285
    %p287 = scmp.ne.s32.totalorder %s276, %s277
    %p288 = scmp.eq.s32.totalorder %s22, 0
    %p289 = por %p287, %p288
    %p290 = scmp.ne.s32.totalorder %s276, %s277
    %p291 = scmp.eq.s32.totalorder %s23, 3
    %p292 = por %p290, %p291
    %p294 = scmp.ne.s32.totalorder %s277, %s293
    %p295 = scmp.eq.s32.totalorder %s23, 0
    %p296 = por %p294, %p295
    %s297 = ssub.s32 %s25, %s32
    %p298 = scmp.eq.s32.totalorder %s297, 0
    %s300 = sadd.s32 %s299, 1
    %s301 = scalar_select %p298, %s299, %s300
    %p304 = pneg %p298
    %p305 = scmp.eq.s32.totalorder %s17, 3
    %p306 = por %p304, %p305
    %p307 = scmp.ne.s32.totalorder %s299, %s302
    %p308 = scmp.eq.s32.totalorder %s17, 0
    %p309 = por %p307, %p308
    %p310 = scmp.ne.s32.totalorder %s299, %s302
    %p311 = scmp.eq.s32.totalorder %s22, 3
    %p312 = por %p310, %p311
    %p313 = scmp.ne.s32.totalorder %s302, %s303
    %p314 = scmp.eq.s32.totalorder %s22, 0
    %p315 = por %p313, %p314
    %p316 = scmp.ne.s32.totalorder %s302, %s303
    %p317 = scmp.eq.s32.totalorder %s23, 3
    %p318 = por %p316, %p317
    %p320 = scmp.ne.s32.totalorder %s303, %s319
    %p321 = scmp.eq.s32.totalorder %s23, 0
    %p322 = por %p320, %p321
    %s323 = ssub.s32 %s24, %s36
    %p324 = scmp.eq.s32.totalorder %s323, 0
    %s326 = sadd.s32 %s325, 1
    %s327 = scalar_select %p324, %s325, %s326
    %p330 = pneg %p324
    %p331 = scmp.eq.s32.totalorder %s17, 3
    %p332 = por %p330, %p331
    %p333 = scmp.ne.s32.totalorder %s325, %s328
    %p334 = scmp.eq.s32.totalorder %s17, 0
    %p335 = por %p333, %p334
    %p336 = scmp.ne.s32.totalorder %s325, %s328
    %p337 = scmp.eq.s32.totalorder %s22, 3
    %p338 = por %p336, %p337
    %p339 = scmp.ne.s32.totalorder %s328, %s329
    %p340 = scmp.eq.s32.totalorder %s22, 0
    %p341 = por %p339, %p340
    %p342 = scmp.ne.s32.totalorder %s328, %s329
    %p343 = scmp.eq.s32.totalorder %s23, 3
    %p344 = por %p342, %p343
    %p346 = scmp.ne.s32.totalorder %s329, %s345
    %p347 = scmp.eq.s32.totalorder %s23, 0
    %p348 = por %p346, %p347
    %p349 = scmp.le.s32.totalorder 1, %s17
    %p350 = scmp.lt.s32.totalorder %s17, 5
    %p351 = pnand %p349, %p350
    %p352 = pneg %p351
    // Predicated region
    $region9: #{_lambda_.3} parent=5 // pred_check
      _
    $region10: #{_lambda_.3} parent=5 // pred_check_branch
      %354 = sbr.rel (%p351) target = $region12
    $region11: #{_lambda_.3} parent=5 // pred_region
      %s355 = ssub.s32 %s17, 1
    $region12: #{_lambda_.3} parent=5 // pred_fallthru
      _
    %p356 = scmp.lt.s32.totalorder %s17, 4
    // Predicated region
    $region13: #{_lambda_.3} parent=5 // pred_check
      %p357 = pneg %p356
    $region14: #{_lambda_.3} parent=5 // pred_check_branch
      %359 = sbr.rel (%p357) target = $region16
    $region15: #{_lambda_.3} parent=5 // pred_region
      // Predicated region
      $region17: #{_lambda_.3} parent=15 // pred_check
        %p360 = pneg %p49
      $region18: #{_lambda_.3} parent=15 // pred_check_branch
        %362 = sbr.rel (%p360) target = $region20
      $region19: #{_lambda_.3} parent=15 // pred_region
        %s363 = smul.u32 2, %s24
        %p364 = scmp.lt.s32.totalorder %s363, 3
        %s365 = scalar_select %p364, %s363, 3
        %s366 = smul.addr %s365, 8
        %s367 = smul.addr %s366, 4
        %s368 = scalar_lea.vmem %s0, %s367
        %s369 = smul.u32 2, %s24
      $region20: #{_lambda_.3} parent=15 // pred_fallthru
        _
      // Predicated region
      $region21: #{_lambda_.3} parent=15 // pred_check
        %p370 = pneg %p75
      $region22: #{_lambda_.3} parent=15 // pred_check_branch
        %372 = sbr.rel (%p370) target = $region24
      $region23: #{_lambda_.3} parent=15 // pred_region
        %p373 = scmp.lt.s32.totalorder %s25, 1
        %s374 = scalar_select %p373, %s25, 1
        %s375 = smul.addr %s374, 2
        %s376 = scalar_lea.vmem %s1, %s375
      $region24: #{_lambda_.3} parent=15 // pred_fallthru
        _
      // Predicated region
      $region25: #{_lambda_.3} parent=15 // pred_check
        %p377 = pneg %p101
      $region26: #{_lambda_.3} parent=15 // pred_check_branch
        %379 = sbr.rel (%p377) target = $region28
      $region27: #{_lambda_.3} parent=15 // pred_region
        %p380 = scmp.lt.s32.totalorder %s25, 1
        %s381 = scalar_select %p380, %s25, 1
        %s382 = smul.addr %s381, 2
        %s383 = scalar_lea.vmem %s2, %s382
      $region28: #{_lambda_.3} parent=15 // pred_fallthru
        _
      // Predicated region
      $region29: #{_lambda_.3} parent=15 // pred_check
        %p384 = pneg %p127
      $region30: #{_lambda_.3} parent=15 // pred_check_branch
        %386 = sbr.rel (%p384) target = $region32
      $region31: #{_lambda_.3} parent=15 // pred_region
        %p387 = scmp.lt.s32.totalorder %s25, 1
        %s388 = scalar_select %p387, %s25, 1
        %s389 = smul.addr %s388, 128
        %s390 = smul.addr %s389, 4
        %s391 = scalar_lea.vmem %s3, %s390
      $region32: #{_lambda_.3} parent=15 // pred_fallthru
        _
      // Predicated region
      $region33: #{_lambda_.3} parent=15 // pred_check
        %p392 = pneg %p153
      $region34: #{_lambda_.3} parent=15 // pred_check_branch
        %394 = sbr.rel (%p392) target = $region36
      $region35: #{_lambda_.3} parent=15 // pred_region
        %p395 = scmp.lt.s32.totalorder %s25, 1
        %s396 = scalar_select %p395, %s25, 1
        %s397 = smul.addr %s396, 4
        %s398 = scalar_lea.vmem %s4, %s397
      $region36: #{_lambda_.3} parent=15 // pred_fallthru
        _
      // Predicated region
      $region37: #{_lambda_.3} parent=15 // pred_check
        %p399 = pneg %p179
      $region38: #{_lambda_.3} parent=15 // pred_check_branch
        %401 = sbr.rel (%p399) target = $region40
      $region39: #{_lambda_.3} parent=15 // pred_region
        %p402 = scmp.lt.s32.totalorder %s25, 1
        %s403 = scalar_select %p402, %s25, 1
        %s404 = smul.addr %s403, 2
        %s405 = scalar_lea.vmem %s5, %s404
      $region40: #{_lambda_.3} parent=15 // pred_fallthru
        _
      // Predicated region
      $region41: #{_lambda_.3} parent=15 // pred_check
        %p406 = pneg %p205
      $region42: #{_lambda_.3} parent=15 // pred_check_branch
        %408 = sbr.rel (%p406) target = $region44
      $region43: #{_lambda_.3} parent=15 // pred_region
        %p409 = scmp.lt.s32.totalorder %s25, 1
        %s410 = scalar_select %p409, %s25, 1
        %s411 = smul.addr %s410, 2
        %s412 = scalar_lea.vmem %s6, %s411
      $region44: #{_lambda_.3} parent=15 // pred_fallthru
        _
      // Predicated region
      $region45: #{_lambda_.3} parent=15 // pred_check
        %p413 = pneg %p231
      $region46: #{_lambda_.3} parent=15 // pred_check_branch
        %415 = sbr.rel (%p413) target = $region48
      $region47: #{_lambda_.3} parent=15 // pred_region
        %p416 = scmp.lt.s32.totalorder %s25, 1
        %s417 = scalar_select %p416, %s25, 1
        %s418 = smul.addr %s417, 4
        %s419 = smul.addr %s418, 4
        %s420 = scalar_lea.vmem %s7, %s419
      $region48: #{_lambda_.3} parent=15 // pred_fallthru
        _
      // Predicated region
      $region49: #{_lambda_.3} parent=15 // pred_check
        %p421 = pneg %p257
      $region50: #{_lambda_.3} parent=15 // pred_check_branch
        %423 = sbr.rel (%p421) target = $region52
      $region51: #{_lambda_.3} parent=15 // pred_region
        %p424 = scmp.lt.s32.totalorder %s25, 1
        %s425 = scalar_select %p424, %s25, 1
        %s426 = smul.addr %s425, 4
        %s427 = smul.addr %s426, 8
        %s428 = scalar_lea.vmem %s8, %s427
      $region52: #{_lambda_.3} parent=15 // pred_fallthru
        _
      // Predicated region
      $region53: #{_lambda_.3} parent=15 // pred_check
        %p429 = pneg %p283
      $region54: #{_lambda_.3} parent=15 // pred_check_branch
        %431 = sbr.rel (%p429) target = $region56
      $region55: #{_lambda_.3} parent=15 // pred_region
        %p432 = scmp.lt.s32.totalorder %s25, 1
        %s433 = scalar_select %p432, %s25, 1
        %s434 = smul.addr %s433, 64
        %s435 = smul.addr %s434, 4
        %s436 = scalar_lea.vmem %s9, %s435
      $region56: #{_lambda_.3} parent=15 // pred_fallthru
        _
      // Predicated region
      $region57: #{_lambda_.3} parent=15 // pred_check
        %p437 = pneg %p309
      $region58: #{_lambda_.3} parent=15 // pred_check_branch
        %439 = sbr.rel (%p437) target = $region60
      $region59: #{_lambda_.3} parent=15 // pred_region
        %p440 = scmp.lt.s32.totalorder %s25, 1
        %s441 = scalar_select %p440, %s25, 1
        %s442 = smul.addr %s441, 2
        %s443 = scalar_lea.vmem %s10, %s442
      $region60: #{_lambda_.3} parent=15 // pred_fallthru
        _
    $region16: #{_lambda_.3} parent=5 // pred_fallthru
      _
    %p444 = scmp.le.s32.totalorder 1, %s17
    %p445 = scmp.lt.s32.totalorder %s17, 5
    %p446 = pnand %p444, %p445
    %p447 = pneg %p446
    // Predicated region
    $region61: #{_lambda_.3} parent=5 // pred_check
      _
    $region62: #{_lambda_.3} parent=5 // pred_check_branch
      %449 = sbr.rel (%p446) target = $region64
    $region63: #{_lambda_.3} parent=5 // pred_region
      %s450 = ssub.s32 %s17, 1
      %s451 = smul.u32 2, %s26
      %p452 = scmp.lt.s32.totalorder %s451, 3
      %s453 = scalar_select %p452, %s451, 3
      %s454 = smul.addr %s453, 8
      %s455 = smul.addr %s454, 4
      %s456 = scalar_lea.vmem %s0, %s455
      %p457 = pneg %p55
      %p458 = pneg %p52
      %p459 = scmp.lt.s32.totalorder %s27, 1
      %s460 = scalar_select %p459, %s27, 1
      %s461 = smul.addr %s460, 2
      %s462 = scalar_lea.vmem %s1, %s461
      %p463 = pneg %p81
      %p464 = pneg %p78
      %p465 = scmp.lt.s32.totalorder %s27, 1
      %s466 = scalar_select %p465, %s27, 1
      %s467 = smul.addr %s466, 2
      %s468 = scalar_lea.vmem %s2, %s467
      %p469 = pneg %p107
      %p470 = pneg %p104
      %p471 = scmp.lt.s32.totalorder %s27, 1
      %s472 = scalar_select %p471, %s27, 1
      %s473 = smul.addr %s472, 128
      %s474 = smul.addr %s473, 4
      %s475 = scalar_lea.vmem %s3, %s474
      %p476 = pneg %p133
      %p477 = pneg %p130
      %p478 = scmp.lt.s32.totalorder %s27, 1
      %s479 = scalar_select %p478, %s27, 1
      %s480 = smul.addr %s479, 4
      %s481 = scalar_lea.vmem %s4, %s480
      %p482 = pneg %p159
      %p483 = pneg %p156
      %p484 = scmp.lt.s32.totalorder %s27, 1
      %s485 = scalar_select %p484, %s27, 1
      %s486 = smul.addr %s485, 2
      %s487 = scalar_lea.vmem %s5, %s486
      %p488 = pneg %p185
      %p489 = pneg %p182
      %p490 = scmp.lt.s32.totalorder %s27, 1
      %s491 = scalar_select %p490, %s27, 1
      %s492 = smul.addr %s491, 2
      %s493 = scalar_lea.vmem %s6, %s492
      %p494 = pneg %p211
      %p495 = pneg %p208
      %p496 = scmp.lt.s32.totalorder %s27, 1
      %s497 = scalar_select %p496, %s27, 1
      %s498 = smul.addr %s497, 4
      %s499 = smul.addr %s498, 4
      %s500 = scalar_lea.vmem %s7, %s499
      %p501 = pneg %p237
      %p502 = pneg %p234
      %p503 = scmp.lt.s32.totalorder %s27, 1
      %s504 = scalar_select %p503, %s27, 1
      %s505 = smul.addr %s504, 4
      %s506 = smul.addr %s505, 8
      %s507 = scalar_lea.vmem %s8, %s506
      %p508 = pneg %p263
      %p509 = pneg %p260
      %p510 = scmp.lt.s32.totalorder %s27, 1
      %s511 = scalar_select %p510, %s27, 1
      %s512 = smul.addr %s511, 64
      %s513 = smul.addr %s512, 4
      %s514 = scalar_lea.vmem %s9, %s513
      %p515 = pneg %p289
      %p516 = pneg %p286
      %p517 = scmp.lt.s32.totalorder %s27, 1
      %s518 = scalar_select %p517, %s27, 1
      %s519 = smul.addr %s518, 2
      %s520 = scalar_lea.vmem %s10, %s519
      %p521 = pneg %p315
      %p522 = pneg %p312
      %p523 = pneg %p341
      %p524 = pneg %p338
      %s525 = smul.u32 2, %s26
      %p526 = scmp.lt.s32.totalorder %s525, 3
      %s527 = scalar_select %p526, %s525, 3
      %s528 = smul.addr %s527, 8
      %s529 = smul.addr %s528, 4
      %s530 = scalar_lea.vmem %s11, %s529
      %s531 = smul.u32 2, %s26
      %p532 = scmp.lt.s32.totalorder %s531, 3
      %s533 = scalar_select %p532, %s531, 3
      %s534 = smul.addr %s533, 8
      %s535 = smul.addr %s534, 4
      %s536 = scalar_lea.vmem %s0, %s535
      %s537 = smul.u32 2, %s26
      %p538 = scmp.lt.s32.totalorder %s27, 1
      %s539 = scalar_select %p538, %s27, 1
      %s540 = smul.addr %s539, 2
      %s541 = scalar_lea.vmem %s1, %s540
      %p542 = scmp.lt.s32.totalorder %s27, 1
      %s543 = scalar_select %p542, %s27, 1
      %s544 = smul.addr %s543, 2
      %s545 = scalar_lea.vmem %s2, %s544
      %p546 = scmp.lt.s32.totalorder %s27, 1
      %s547 = scalar_select %p546, %s27, 1
      %s548 = smul.addr %s547, 128
      %s549 = smul.addr %s548, 4
      %s550 = scalar_lea.vmem %s3, %s549
      %p551 = scmp.lt.s32.totalorder %s27, 1
      %s552 = scalar_select %p551, %s27, 1
      %s553 = smul.addr %s552, 4
      %s554 = scalar_lea.vmem %s4, %s553
      %p555 = scmp.lt.s32.totalorder %s27, 1
      %s556 = scalar_select %p555, %s27, 1
      %s557 = smul.addr %s556, 2
      %s558 = scalar_lea.vmem %s5, %s557
      %p559 = scmp.lt.s32.totalorder %s27, 1
      %s560 = scalar_select %p559, %s27, 1
      %s561 = smul.addr %s560, 2
      %s562 = scalar_lea.vmem %s6, %s561
      %p563 = scmp.lt.s32.totalorder %s27, 1
      %s564 = scalar_select %p563, %s27, 1
      %s565 = smul.addr %s564, 4
      %s566 = smul.addr %s565, 4
      %s567 = scalar_lea.vmem %s7, %s566
      %p568 = scmp.lt.s32.totalorder %s27, 1
      %s569 = scalar_select %p568, %s27, 1
      %s570 = smul.addr %s569, 4
      %s571 = smul.addr %s570, 8
      %s572 = scalar_lea.vmem %s8, %s571
      %p573 = scmp.lt.s32.totalorder %s27, 1
      %s574 = scalar_select %p573, %s27, 1
      %s575 = smul.addr %s574, 64
      %s576 = smul.addr %s575, 4
      %s577 = scalar_lea.vmem %s9, %s576
      %p578 = scmp.lt.s32.totalorder %s27, 1
      %s579 = scalar_select %p578, %s27, 1
      %s580 = smul.addr %s579, 2
      %s581 = scalar_lea.vmem %s10, %s580
      %s582 = smul.u32 2, %s26
      %p583 = scmp.lt.s32.totalorder %s582, 3
      %s584 = scalar_select %p583, %s582, 3
      %s585 = smul.addr %s584, 8
      %s586 = smul.addr %s585, 4
      %s587 = scalar_lea.vmem %s11, %s586
      %s588 = smul.u32 2, %s26
      %p590 = scmp.eq.s32.totalorder %s27, 0
      // Predicated region
      $region65: #{_lambda_.3} parent=63 // pred_check
        %p591 = pneg %p590
      $region66: #{_lambda_.3} parent=63 // pred_check_branch
        %593 = sbr.rel (%p591) target = $region68
      $region67: #{_lambda_.3} parent=63 // pred_region
        %v594 = vld [vmem:[%s536] sm:$0xff]
        %v595 = vld [vmem:[%s536 + $0x8] sm:$0xff]
        %v596 = vld [vmem:[%s536 + $0x10] sm:$0xff]
        %v597 = vld [vmem:[%s536 + $0x18] sm:$0xff]
        %v598 = vld [vmem:[%s536 + $0x20] sm:$0xff]
        %v599 = vld [vmem:[%s536 + $0x28] sm:$0xff]
        %v600 = vld [vmem:[%s536 + $0x30] sm:$0xff]
        %v601 = vld [vmem:[%s536 + $0x38] sm:$0xff]
        %v602 = vunpack.c.l.bf16 %v594
        %v603 = vunpack.c.h.bf16 %v594
        %v604 = vunpack.c.l.bf16 %v595
        %v605 = vunpack.c.h.bf16 %v595
        %v606 = vunpack.c.l.bf16 %v596
        %v607 = vunpack.c.h.bf16 %v596
        %v608 = vunpack.c.l.bf16 %v597
        %v609 = vunpack.c.h.bf16 %v597
        %v610 = vunpack.c.l.bf16 %v598
        %v611 = vunpack.c.h.bf16 %v598
        %v612 = vunpack.c.l.bf16 %v599
        %v613 = vunpack.c.h.bf16 %v599
        %v614 = vunpack.c.l.bf16 %v600
        %v615 = vunpack.c.h.bf16 %v600
        %v616 = vunpack.c.l.bf16 %v601
        %v617 = vunpack.c.h.bf16 %v601
        %618 = vst [vmem:[#allocation2] sm:$0xff] %v602
        %619 = vst [vmem:[#allocation2 + $0x8] sm:$0xff] %v603
        %620 = vst [vmem:[#allocation2 + $0x10] sm:$0xff] %v604
        %621 = vst [vmem:[#allocation2 + $0x18] sm:$0xff] %v605
        %622 = vst [vmem:[#allocation2 + $0x20] sm:$0xff] %v606
        %623 = vst [vmem:[#allocation2 + $0x28] sm:$0xff] %v607
        %624 = vst [vmem:[#allocation2 + $0x30] sm:$0xff] %v608
        %625 = vst [vmem:[#allocation2 + $0x38] sm:$0xff] %v609
        %626 = vst [vmem:[#allocation2 + $0x40] sm:$0xff] %v610
        %627 = vst [vmem:[#allocation2 + $0x48] sm:$0xff] %v611
        %628 = vst [vmem:[#allocation2 + $0x50] sm:$0xff] %v612
        %629 = vst [vmem:[#allocation2 + $0x58] sm:$0xff] %v613
        %630 = vst [vmem:[#allocation2 + $0x60] sm:$0xff] %v614
        %631 = vst [vmem:[#allocation2 + $0x68] sm:$0xff] %v615
        %632 = vst [vmem:[#allocation2 + $0x70] sm:$0xff] %v616
        %633 = vst [vmem:[#allocation2 + $0x78] sm:$0xff] %v617
      $region68: #{_lambda_.3} parent=63 // pred_fallthru
        _
      %v634 = vld [vmem:[#allocation2] sm:$0xff]
      %v635 = vld [vmem:[#allocation2 + $0x8] sm:$0xff]
      %v636 = vld [vmem:[#allocation2 + $0x10] sm:$0xff]
      %v637 = vld [vmem:[#allocation2 + $0x18] sm:$0xff]
      %v638 = vld [vmem:[#allocation2 + $0x20] sm:$0xff]
      %v639 = vld [vmem:[#allocation2 + $0x28] sm:$0xff]
      %v640 = vld [vmem:[#allocation2 + $0x30] sm:$0xff]
      %v641 = vld [vmem:[#allocation2 + $0x38] sm:$0xff]
      %v642 = vld [vmem:[#allocation2 + $0x40] sm:$0xff]
      %v643 = vld [vmem:[#allocation2 + $0x48] sm:$0xff]
      %v644 = vld [vmem:[#allocation2 + $0x50] sm:$0xff]
      %v645 = vld [vmem:[#allocation2 + $0x58] sm:$0xff]
      %v646 = vld [vmem:[#allocation2 + $0x60] sm:$0xff]
      %v647 = vld [vmem:[#allocation2 + $0x68] sm:$0xff]
      %v648 = vld [vmem:[#allocation2 + $0x70] sm:$0xff]
      %v649 = vld [vmem:[#allocation2 + $0x78] sm:$0xff]
      %v650 = vld [vmem:[%s541] sm:$0x3]
      %v651 = vld [vmem:[%s545] sm:$0x3]
      %v652 = vadd.f32 %v634, %v635
      %653 = vadd.xlane.f32.xlu0 %v652
      %v654 = vpop.xlane.xlu0 %653
      %v655 = vadd.f32 %v636, %v637
      %656 = vadd.xlane.f32.xlu0 %v655
      %v657 = vpop.xlane.xlu0 %656
      %v658 = vadd.f32 %v638, %v639
      %659 = vadd.xlane.f32.xlu0 %v658
      %v660 = vpop.xlane.xlu0 %659
      %v661 = vadd.f32 %v640, %v641
      %662 = vadd.xlane.f32.xlu0 %v661
      %v663 = vpop.xlane.xlu0 %662
      %v664 = vadd.f32 %v642, %v643
      %665 = vadd.xlane.f32.xlu0 %v664
      %v666 = vpop.xlane.xlu0 %665
      %v667 = vadd.f32 %v644, %v645
      %668 = vadd.xlane.f32.xlu0 %v667
      %v669 = vpop.xlane.xlu0 %668
      %v670 = vadd.f32 %v646, %v647
      %671 = vadd.xlane.f32.xlu0 %v670
      %v672 = vpop.xlane.xlu0 %671
      %v673 = vadd.f32 %v648, %v649
      %674 = vadd.xlane.f32.xlu0 %v673
      %v675 = vpop.xlane.xlu0 %674
      %v676 = vrcp.pop 256.0
      %v677 = vmul.f32 256.0, %v676
      %v678 = vsub.f32 1.0, %v677
      %v679 = vmul.f32 %v676, %v678
      %v680 = vadd.f32 %v676, %v679
      %vm681 = vweird.f32 %v676
      %v682 = vsel %vm681, %v676, %v680
      %v683 = vmul.f32 %v654, %v682
      %v684 = vmul.f32 %v657, %v682
      %v685 = vmul.f32 %v660, %v682
      %v686 = vmul.f32 %v663, %v682
      %v687 = vmul.f32 %v666, %v682
      %v688 = vmul.f32 %v669, %v682
      %v689 = vmul.f32 %v672, %v682
      %v690 = vmul.f32 %v675, %v682
      %v691 = vsub.f32 %v634, %v683
      %v692 = vsub.f32 %v635, %v683
      %v693 = vsub.f32 %v636, %v684
      %v694 = vsub.f32 %v637, %v684
      %v695 = vsub.f32 %v638, %v685
      %v696 = vsub.f32 %v639, %v685
      %v697 = vsub.f32 %v640, %v686
      %v698 = vsub.f32 %v641, %v686
      %v699 = vsub.f32 %v642, %v687
      %v700 = vsub.f32 %v643, %v687
      %v701 = vsub.f32 %v644, %v688
      %v702 = vsub.f32 %v645, %v688
      %v703 = vsub.f32 %v646, %v689
      %v704 = vsub.f32 %v647, %v689
      %v705 = vsub.f32 %v648, %v690
      %v706 = vsub.f32 %v649, %v690
      %v707 = vmul.f32 %v691, %v691
      %v708 = vmul.f32 %v692, %v692
      %v709 = vmul.f32 %v693, %v693
      %v710 = vmul.f32 %v694, %v694
      %v711 = vmul.f32 %v695, %v695
      %v712 = vmul.f32 %v696, %v696
      %v713 = vmul.f32 %v697, %v697
      %v714 = vmul.f32 %v698, %v698
      %v715 = vmul.f32 %v699, %v699
      %v716 = vmul.f32 %v700, %v700
      %v717 = vmul.f32 %v701, %v701
      %v718 = vmul.f32 %v702, %v702
      %v719 = vmul.f32 %v703, %v703
      %v720 = vmul.f32 %v704, %v704
      %v721 = vmul.f32 %v705, %v705
      %v722 = vmul.f32 %v706, %v706
      %v723 = vadd.f32 %v707, %v708
      %724 = vadd.xlane.f32.xlu0 %v723
      %v725 = vpop.xlane.xlu0 %724
      %v726 = vadd.f32 %v709, %v710
      %727 = vadd.xlane.f32.xlu0 %v726
      %v728 = vpop.xlane.xlu0 %727
      %v729 = vadd.f32 %v711, %v712
      %730 = vadd.xlane.f32.xlu0 %v729
      %v731 = vpop.xlane.xlu0 %730
      %v732 = vadd.f32 %v713, %v714
      %733 = vadd.xlane.f32.xlu0 %v732
      %v734 = vpop.xlane.xlu0 %733
      %v735 = vadd.f32 %v715, %v716
      %736 = vadd.xlane.f32.xlu0 %v735
      %v737 = vpop.xlane.xlu0 %736
      %v738 = vadd.f32 %v717, %v718
      %739 = vadd.xlane.f32.xlu0 %v738
      %v740 = vpop.xlane.xlu0 %739
      %v741 = vadd.f32 %v719, %v720
      %742 = vadd.xlane.f32.xlu0 %v741
      %v743 = vpop.xlane.xlu0 %742
      %v744 = vadd.f32 %v721, %v722
      %745 = vadd.xlane.f32.xlu0 %v744
      %v746 = vpop.xlane.xlu0 %745
      %v747 = vmul.f32 %v725, %v682
      %v748 = vmul.f32 %v728, %v682
      %v749 = vmul.f32 %v731, %v682
      %v750 = vmul.f32 %v734, %v682
      %v751 = vmul.f32 %v737, %v682
      %v752 = vmul.f32 %v740, %v682
      %v753 = vmul.f32 %v743, %v682
      %v754 = vmul.f32 %v746, %v682
      %v755 = vadd.f32 %v747, 1e-05
      %v756 = vadd.f32 %v748, 1e-05
      %v757 = vadd.f32 %v749, 1e-05
      %v758 = vadd.f32 %v750, 1e-05
      %v759 = vadd.f32 %v751, 1e-05
      %v760 = vadd.f32 %v752, 1e-05
      %v761 = vadd.f32 %v753, 1e-05
      %v762 = vadd.f32 %v754, 1e-05
      %v763 = vrsqrt.pop %v755
      %v764 = vmul.f32 %v763, %v755
      %v765 = vmul.f32 %v764, %v763
      %v766 = vmul.f32 0.5, %v765
      %v767 = vsub.f32 1.5, %v766
      %v768 = vmul.f32 %v763, %v767
      %vm769 = vweird.f32 %v755
      %vm770 = vweird.f32 %v763
      %vm771 = vmor %vm769, %vm770
      %v772 = vsel %vm771, %v763, %v768
      %v773 = vrsqrt.pop %v756
      %v774 = vmul.f32 %v773, %v756
      %v775 = vmul.f32 %v774, %v773
      %v776 = vmul.f32 0.5, %v775
      %v777 = vsub.f32 1.5, %v776
      %v778 = vmul.f32 %v773, %v777
      %vm779 = vweird.f32 %v756
      %vm780 = vweird.f32 %v773
      %vm781 = vmor %vm779, %vm780
      %v782 = vsel %vm781, %v773, %v778
      %v783 = vrsqrt.pop %v757
      %v784 = vmul.f32 %v783, %v757
      %v785 = vmul.f32 %v784, %v783
      %v786 = vmul.f32 0.5, %v785
      %v787 = vsub.f32 1.5, %v786
      %v788 = vmul.f32 %v783, %v787
      %vm789 = vweird.f32 %v757
      %vm790 = vweird.f32 %v783
      %vm791 = vmor %vm789, %vm790
      %v792 = vsel %vm791, %v783, %v788
      %v793 = vrsqrt.pop %v758
      %v794 = vmul.f32 %v793, %v758
      %v795 = vmul.f32 %v794, %v793
      %v796 = vmul.f32 0.5, %v795
      %v797 = vsub.f32 1.5, %v796
      %v798 = vmul.f32 %v793, %v797
      %vm799 = vweird.f32 %v758
      %vm800 = vweird.f32 %v793
      %vm801 = vmor %vm799, %vm800
      %v802 = vsel %vm801, %v793, %v798
      %v803 = vrsqrt.pop %v759
      %v804 = vmul.f32 %v803, %v759
      %v805 = vmul.f32 %v804, %v803
      %v806 = vmul.f32 0.5, %v805
      %v807 = vsub.f32 1.5, %v806
      %v808 = vmul.f32 %v803, %v807
      %vm809 = vweird.f32 %v759
      %vm810 = vweird.f32 %v803
      %vm811 = vmor %vm809, %vm810
      %v812 = vsel %vm811, %v803, %v808
      %v813 = vrsqrt.pop %v760
      %v814 = vmul.f32 %v813, %v760
      %v815 = vmul.f32 %v814, %v813
      %v816 = vmul.f32 0.5, %v815
      %v817 = vsub.f32 1.5, %v816
      %v818 = vmul.f32 %v813, %v817
      %vm819 = vweird.f32 %v760
      %vm820 = vweird.f32 %v813
      %vm821 = vmor %vm819, %vm820
      %v822 = vsel %vm821, %v813, %v818
      %v823 = vrsqrt.pop %v761
      %v824 = vmul.f32 %v823, %v761
      %v825 = vmul.f32 %v824, %v823
      %v826 = vmul.f32 0.5, %v825
      %v827 = vsub.f32 1.5, %v826
      %v828 = vmul.f32 %v823, %v827
      %vm829 = vweird.f32 %v761
      %vm830 = vweird.f32 %v823
      %vm831 = vmor %vm829, %vm830
      %v832 = vsel %vm831, %v823, %v828
      %v833 = vrsqrt.pop %v762
      %v834 = vmul.f32 %v833, %v762
      %v835 = vmul.f32 %v834, %v833
      %v836 = vmul.f32 0.5, %v835
      %v837 = vsub.f32 1.5, %v836
      %v838 = vmul.f32 %v833, %v837
      %vm839 = vweird.f32 %v762
      %vm840 = vweird.f32 %v833
      %vm841 = vmor %vm839, %vm840
      %v842 = vsel %vm841, %v833, %v838
      %v843 = vmul.f32 %v691, %v772
      %v844 = vmul.f32 %v692, %v772
      %v845 = vmul.f32 %v693, %v782
      %v846 = vmul.f32 %v694, %v782
      %v847 = vmul.f32 %v695, %v792
      %v848 = vmul.f32 %v696, %v792
      %v849 = vmul.f32 %v697, %v802
      %v850 = vmul.f32 %v698, %v802
      %v851 = vmul.f32 %v699, %v812
      %v852 = vmul.f32 %v700, %v812
      %v853 = vmul.f32 %v701, %v822
      %v854 = vmul.f32 %v702, %v822
      %v855 = vmul.f32 %v703, %v832
      %v856 = vmul.f32 %v704, %v832
      %v857 = vmul.f32 %v705, %v842
      %v858 = vmul.f32 %v706, %v842
      %v860 = vperm.slane %v650, 0
      %v861 = vperm.slane %v650, 1
      %v864 = vmul.f32 %v843, %v860
      %v865 = vmul.f32 %v844, %v861
      %v866 = vmul.f32 %v845, %v860
      %v867 = vmul.f32 %v846, %v861
      %v868 = vmul.f32 %v847, %v860
      %v869 = vmul.f32 %v848, %v861
      %v870 = vmul.f32 %v849, %v860
      %v871 = vmul.f32 %v850, %v861
      %v872 = vmul.f32 %v851, %v860
      %v873 = vmul.f32 %v852, %v861
      %v874 = vmul.f32 %v853, %v860
      %v875 = vmul.f32 %v854, %v861
      %v876 = vmul.f32 %v855, %v860
      %v877 = vmul.f32 %v856, %v861
      %v878 = vmul.f32 %v857, %v860
      %v879 = vmul.f32 %v858, %v861
      %v881 = vperm.slane %v651, 0
      %v882 = vperm.slane %v651, 1
      %v885 = vadd.f32 %v864, %v881
      %v886 = vadd.f32 %v865, %v882
      %v887 = vadd.f32 %v866, %v881
      %v888 = vadd.f32 %v867, %v882
      %v889 = vadd.f32 %v868, %v881
      %v890 = vadd.f32 %v869, %v882
      %v891 = vadd.f32 %v870, %v881
      %v892 = vadd.f32 %v871, %v882
      %v893 = vadd.f32 %v872, %v881
      %v894 = vadd.f32 %v873, %v882
      %v895 = vadd.f32 %v874, %v881
      %v896 = vadd.f32 %v875, %v882
      %v897 = vadd.f32 %v876, %v881
      %v898 = vadd.f32 %v877, %v882
      %v899 = vadd.f32 %v878, %v881
      %v900 = vadd.f32 %v879, %v882
      %v901 = vpack.c.bf16 %v887, %v885
      %v902 = vpack.c.bf16 %v888, %v886
      %v903 = vpack.c.bf16 %v891, %v889
      %v904 = vpack.c.bf16 %v892, %v890
      %v905 = vpack.c.bf16 %v895, %v893
      %v906 = vpack.c.bf16 %v896, %v894
      %v907 = vpack.c.bf16 %v899, %v897
      %v908 = vpack.c.bf16 %v900, %v898
      %v909 = vld [vmem:[%s550] sm:$0xff]
      %v910 = vld [vmem:[%s550 + $0x8] sm:$0xff]
      %v911 = vld [vmem:[%s550 + $0x10] sm:$0xff]
      %v912 = vld [vmem:[%s550 + $0x18] sm:$0xff]
      %v913 = vld [vmem:[%s550 + $0x20] sm:$0xff]
      %v914 = vld [vmem:[%s550 + $0x28] sm:$0xff]
      %v915 = vld [vmem:[%s550 + $0x30] sm:$0xff]
      %v916 = vld [vmem:[%s550 + $0x38] sm:$0xff]
      %v917 = vld [vmem:[%s550 + $0x40] sm:$0xff]
      %v918 = vld [vmem:[%s550 + $0x48] sm:$0xff]
      %v919 = vld [vmem:[%s550 + $0x50] sm:$0xff]
      %v920 = vld [vmem:[%s550 + $0x58] sm:$0xff]
      %v921 = vld [vmem:[%s550 + $0x60] sm:$0xff]
      %v922 = vld [vmem:[%s550 + $0x68] sm:$0xff]
      %v923 = vld [vmem:[%s550 + $0x70] sm:$0xff]
      %v924 = vld [vmem:[%s550 + $0x78] sm:$0xff]
      %v925 = vld [vmem:[%s550 + $0x80] sm:$0xff]
      %v926 = vld [vmem:[%s550 + $0x88] sm:$0xff]
      %v927 = vld [vmem:[%s550 + $0x90] sm:$0xff]
      %v928 = vld [vmem:[%s550 + $0x98] sm:$0xff]
      %v929 = vld [vmem:[%s550 + $0xa0] sm:$0xff]
      %v930 = vld [vmem:[%s550 + $0xa8] sm:$0xff]
      %v931 = vld [vmem:[%s550 + $0xb0] sm:$0xff]
      %v932 = vld [vmem:[%s550 + $0xb8] sm:$0xff]
      %v933 = vld [vmem:[%s550 + $0xc0] sm:$0xff]
      %v934 = vld [vmem:[%s550 + $0xc8] sm:$0xff]
      %v935 = vld [vmem:[%s550 + $0xd0] sm:$0xff]
      %v936 = vld [vmem:[%s550 + $0xd8] sm:$0xff]
      %v937 = vld [vmem:[%s550 + $0xe0] sm:$0xff]
      %v938 = vld [vmem:[%s550 + $0xe8] sm:$0xff]
      %v939 = vld [vmem:[%s550 + $0xf0] sm:$0xff]
      %v940 = vld [vmem:[%s550 + $0xf8] sm:$0xff]
      %v941 = vld [vmem:[%s550 + $0x100] sm:$0xff]
      %v942 = vld [vmem:[%s550 + $0x108] sm:$0xff]
      %v943 = vld [vmem:[%s550 + $0x110] sm:$0xff]
      %v944 = vld [vmem:[%s550 + $0x118] sm:$0xff]
      %v945 = vld [vmem:[%s550 + $0x120] sm:$0xff]
      %v946 = vld [vmem:[%s550 + $0x128] sm:$0xff]
      %v947 = vld [vmem:[%s550 + $0x130] sm:$0xff]
      %v948 = vld [vmem:[%s550 + $0x138] sm:$0xff]
      %v949 = vld [vmem:[%s550 + $0x140] sm:$0xff]
      %v950 = vld [vmem:[%s550 + $0x148] sm:$0xff]
      %v951 = vld [vmem:[%s550 + $0x150] sm:$0xff]
      %v952 = vld [vmem:[%s550 + $0x158] sm:$0xff]
      %v953 = vld [vmem:[%s550 + $0x160] sm:$0xff]
      %v954 = vld [vmem:[%s550 + $0x168] sm:$0xff]
      %v955 = vld [vmem:[%s550 + $0x170] sm:$0xff]
      %v956 = vld [vmem:[%s550 + $0x178] sm:$0xff]
      %v957 = vld [vmem:[%s550 + $0x180] sm:$0xff]
      %v958 = vld [vmem:[%s550 + $0x188] sm:$0xff]
      %v959 = vld [vmem:[%s550 + $0x190] sm:$0xff]
      %v960 = vld [vmem:[%s550 + $0x198] sm:$0xff]
      %v961 = vld [vmem:[%s550 + $0x1a0] sm:$0xff]
      %v962 = vld [vmem:[%s550 + $0x1a8] sm:$0xff]
      %v963 = vld [vmem:[%s550 + $0x1b0] sm:$0xff]
      %v964 = vld [vmem:[%s550 + $0x1b8] sm:$0xff]
      %v965 = vld [vmem:[%s550 + $0x1c0] sm:$0xff]
      %v966 = vld [vmem:[%s550 + $0x1c8] sm:$0xff]
      %v967 = vld [vmem:[%s550 + $0x1d0] sm:$0xff]
      %v968 = vld [vmem:[%s550 + $0x1d8] sm:$0xff]
      %v969 = vld [vmem:[%s550 + $0x1e0] sm:$0xff]
      %v970 = vld [vmem:[%s550 + $0x1e8] sm:$0xff]
      %v971 = vld [vmem:[%s550 + $0x1f0] sm:$0xff]
      %v972 = vld [vmem:[%s550 + $0x1f8] sm:$0xff]
      %v973 = vld [vmem:[%s554] sm:$0xf]
      %v975 = vperm.slane %v973, 0
      %v976 = vperm.slane %v973, 1
      %v977 = vperm.slane %v973, 2
      %v978 = vperm.slane %v973, 3
      %v1047 = vunpack.c.l.b16 %v909
      %v1048 = vunpack.c.h.b16 %v909
      %v1049 = vunpack.c.l.b16 %v910
      %v1050 = vunpack.c.h.b16 %v910
      %v1051 = vunpack.c.l.b16 %v911
      %v1052 = vunpack.c.h.b16 %v911
      %v1053 = vunpack.c.l.b16 %v912
      %v1054 = vunpack.c.h.b16 %v912
      %v1055 = vunpack.c.l.b16 %v913
      %v1056 = vunpack.c.h.b16 %v913
      %v1057 = vunpack.c.l.b16 %v914
      %v1058 = vunpack.c.h.b16 %v914
      %v1059 = vunpack.c.l.b16 %v915
      %v1060 = vunpack.c.h.b16 %v915
      %v1061 = vunpack.c.l.b16 %v916
      %v1062 = vunpack.c.h.b16 %v916
      %v1063 = vunpack.c.l.b16 %v917
      %v1064 = vunpack.c.h.b16 %v917
      %v1065 = vunpack.c.l.b16 %v918
      %v1066 = vunpack.c.h.b16 %v918
      %v1067 = vunpack.c.l.b16 %v919
      %v1068 = vunpack.c.h.b16 %v919
      %v1069 = vunpack.c.l.b16 %v920
      %v1070 = vunpack.c.h.b16 %v920
      %v1071 = vunpack.c.l.b16 %v921
      %v1072 = vunpack.c.h.b16 %v921
      %v1073 = vunpack.c.l.b16 %v922
      %v1074 = vunpack.c.h.b16 %v922
      %v1075 = vunpack.c.l.b16 %v923
      %v1076 = vunpack.c.h.b16 %v923
      %v1077 = vunpack.c.l.b16 %v924
      %v1078 = vunpack.c.h.b16 %v924
      %v1079 = vunpack.c.l.b16 %v925
      %v1080 = vunpack.c.h.b16 %v925
      %v1081 = vunpack.c.l.b16 %v926
      %v1082 = vunpack.c.h.b16 %v926
      %v1083 = vunpack.c.l.b16 %v927
      %v1084 = vunpack.c.h.b16 %v927
      %v1085 = vunpack.c.l.b16 %v928
      %v1086 = vunpack.c.h.b16 %v928
      %v1087 = vunpack.c.l.b16 %v929
      %v1088 = vunpack.c.h.b16 %v929
      %v1089 = vunpack.c.l.b16 %v930
      %v1090 = vunpack.c.h.b16 %v930
      %v1091 = vunpack.c.l.b16 %v931
      %v1092 = vunpack.c.h.b16 %v931
      %v1093 = vunpack.c.l.b16 %v932
      %v1094 = vunpack.c.h.b16 %v932
      %v1095 = vunpack.c.l.b16 %v933
      %v1096 = vunpack.c.h.b16 %v933
      %v1097 = vunpack.c.l.b16 %v934
      %v1098 = vunpack.c.h.b16 %v934
      %v1099 = vunpack.c.l.b16 %v935
      %v1100 = vunpack.c.h.b16 %v935
      %v1101 = vunpack.c.l.b16 %v936
      %v1102 = vunpack.c.h.b16 %v936
      %v1103 = vunpack.c.l.b16 %v937
      %v1104 = vunpack.c.h.b16 %v937
      %v1105 = vunpack.c.l.b16 %v938
      %v1106 = vunpack.c.h.b16 %v938
      %v1107 = vunpack.c.l.b16 %v939
      %v1108 = vunpack.c.h.b16 %v939
      %v1109 = vunpack.c.l.b16 %v940
      %v1110 = vunpack.c.h.b16 %v940
      %v1111 = vunpack.c.l.b16 %v941
      %v1112 = vunpack.c.h.b16 %v941
      %v1113 = vunpack.c.l.b16 %v942
      %v1114 = vunpack.c.h.b16 %v942
      %v1115 = vunpack.c.l.b16 %v943
      %v1116 = vunpack.c.h.b16 %v943
      %v1117 = vunpack.c.l.b16 %v944
      %v1118 = vunpack.c.h.b16 %v944
      %v1119 = vunpack.c.l.b16 %v945
      %v1120 = vunpack.c.h.b16 %v945
      %v1121 = vunpack.c.l.b16 %v946
      %v1122 = vunpack.c.h.b16 %v946
      %v1123 = vunpack.c.l.b16 %v947
      %v1124 = vunpack.c.h.b16 %v947
      %v1125 = vunpack.c.l.b16 %v948
      %v1126 = vunpack.c.h.b16 %v948
      %v1127 = vunpack.c.l.b16 %v949
      %v1128 = vunpack.c.h.b16 %v949
      %v1129 = vunpack.c.l.b16 %v950
      %v1130 = vunpack.c.h.b16 %v950
      %v1131 = vunpack.c.l.b16 %v951
      %v1132 = vunpack.c.h.b16 %v951
      %v1133 = vunpack.c.l.b16 %v952
      %v1134 = vunpack.c.h.b16 %v952
      %v1135 = vunpack.c.l.b16 %v953
      %v1136 = vunpack.c.h.b16 %v953
      %v1137 = vunpack.c.l.b16 %v954
      %v1138 = vunpack.c.h.b16 %v954
      %v1139 = vunpack.c.l.b16 %v955
      %v1140 = vunpack.c.h.b16 %v955
      %v1141 = vunpack.c.l.b16 %v956
      %v1142 = vunpack.c.h.b16 %v956
      %v1143 = vunpack.c.l.b16 %v957
      %v1144 = vunpack.c.h.b16 %v957
      %v1145 = vunpack.c.l.b16 %v958
      %v1146 = vunpack.c.h.b16 %v958
      %v1147 = vunpack.c.l.b16 %v959
      %v1148 = vunpack.c.h.b16 %v959
      %v1149 = vunpack.c.l.b16 %v960
      %v1150 = vunpack.c.h.b16 %v960
      %v1151 = vunpack.c.l.b16 %v961
      %v1152 = vunpack.c.h.b16 %v961
      %v1153 = vunpack.c.l.b16 %v962
      %v1154 = vunpack.c.h.b16 %v962
      %v1155 = vunpack.c.l.b16 %v963
      %v1156 = vunpack.c.h.b16 %v963
      %v1157 = vunpack.c.l.b16 %v964
      %v1158 = vunpack.c.h.b16 %v964
      %v1159 = vunpack.c.l.b16 %v965
      %v1160 = vunpack.c.h.b16 %v965
      %v1161 = vunpack.c.l.b16 %v966
      %v1162 = vunpack.c.h.b16 %v966
      %v1163 = vunpack.c.l.b16 %v967
      %v1164 = vunpack.c.h.b16 %v967
      %v1165 = vunpack.c.l.b16 %v968
      %v1166 = vunpack.c.h.b16 %v968
      %v1167 = vunpack.c.l.b16 %v969
      %v1168 = vunpack.c.h.b16 %v969
      %v1169 = vunpack.c.l.b16 %v970
      %v1170 = vunpack.c.h.b16 %v970
      %v1171 = vunpack.c.l.b16 %v971
      %v1172 = vunpack.c.h.b16 %v971
      %v1173 = vunpack.c.l.b16 %v972
      %v1174 = vunpack.c.h.b16 %v972
      %v1175 = vpack.c.b16 %v1051, %v1047
      %v1176 = vpack.c.b16 %v1052, %v1048
      %v1177 = vpack.c.b16 %v1053, %v1049
      %v1178 = vpack.c.b16 %v1054, %v1050
      %v1179 = vpack.c.b16 %v1059, %v1055
      %v1180 = vpack.c.b16 %v1060, %v1056
      %v1181 = vpack.c.b16 %v1061, %v1057
      %v1182 = vpack.c.b16 %v1062, %v1058
      %v1183 = vpack.c.b16 %v1067, %v1063
      %v1184 = vpack.c.b16 %v1068, %v1064
      %v1185 = vpack.c.b16 %v1069, %v1065
      %v1186 = vpack.c.b16 %v1070, %v1066
      %v1187 = vpack.c.b16 %v1075, %v1071
      %v1188 = vpack.c.b16 %v1076, %v1072
      %v1189 = vpack.c.b16 %v1077, %v1073
      %v1190 = vpack.c.b16 %v1078, %v1074
      %v1191 = vpack.c.b16 %v1083, %v1079
      %v1192 = vpack.c.b16 %v1084, %v1080
      %v1193 = vpack.c.b16 %v1085, %v1081
      %v1194 = vpack.c.b16 %v1086, %v1082
      %v1195 = vpack.c.b16 %v1091, %v1087
      %v1196 = vpack.c.b16 %v1092, %v1088
      %v1197 = vpack.c.b16 %v1093, %v1089
      %v1198 = vpack.c.b16 %v1094, %v1090
      %v1199 = vpack.c.b16 %v1099, %v1095
      %v1200 = vpack.c.b16 %v1100, %v1096
      %v1201 = vpack.c.b16 %v1101, %v1097
      %v1202 = vpack.c.b16 %v1102, %v1098
      %v1203 = vpack.c.b16 %v1107, %v1103
      %v1204 = vpack.c.b16 %v1108, %v1104
      %v1205 = vpack.c.b16 %v1109, %v1105
      %v1206 = vpack.c.b16 %v1110, %v1106
      %v1207 = vpack.c.b16 %v1115, %v1111
      %v1208 = vpack.c.b16 %v1116, %v1112
      %v1209 = vpack.c.b16 %v1117, %v1113
      %v1210 = vpack.c.b16 %v1118, %v1114
      %v1211 = vpack.c.b16 %v1123, %v1119
      %v1212 = vpack.c.b16 %v1124, %v1120
      %v1213 = vpack.c.b16 %v1125, %v1121
      %v1214 = vpack.c.b16 %v1126, %v1122
      %v1215 = vpack.c.b16 %v1131, %v1127
      %v1216 = vpack.c.b16 %v1132, %v1128
      %v1217 = vpack.c.b16 %v1133, %v1129
      %v1218 = vpack.c.b16 %v1134, %v1130
      %v1219 = vpack.c.b16 %v1139, %v1135
      %v1220 = vpack.c.b16 %v1140, %v1136
      %v1221 = vpack.c.b16 %v1141, %v1137
      %v1222 = vpack.c.b16 %v1142, %v1138
      %v1223 = vpack.c.b16 %v1147, %v1143
      %v1224 = vpack.c.b16 %v1148, %v1144
      %v1225 = vpack.c.b16 %v1149, %v1145
      %v1226 = vpack.c.b16 %v1150, %v1146
      %v1227 = vpack.c.b16 %v1155, %v1151
      %v1228 = vpack.c.b16 %v1156, %v1152
      %v1229 = vpack.c.b16 %v1157, %v1153
      %v1230 = vpack.c.b16 %v1158, %v1154
      %v1231 = vpack.c.b16 %v1163, %v1159
      %v1232 = vpack.c.b16 %v1164, %v1160
      %v1233 = vpack.c.b16 %v1165, %v1161
      %v1234 = vpack.c.b16 %v1166, %v1162
      %v1235 = vpack.c.b16 %v1171, %v1167
      %v1236 = vpack.c.b16 %v1172, %v1168
      %v1237 = vpack.c.b16 %v1173, %v1169
      %v1238 = vpack.c.b16 %v1174, %v1170
      %1303 = vmatpush.bf16.msra.mxu0 %v1203
      %1304 = vmatpush.bf16.msra.mxu0 %v1199
      %1305 = vmatpush.bf16.msra.mxu0 %v1195
      %1306 = vmatpush.bf16.msra.mxu0 %v1191
      %1307 = vmatpush.bf16.msra.mxu0 %v1187
      %1308 = vmatpush.bf16.msra.mxu0 %v1183
      %1309 = vmatpush.bf16.msra.mxu0 %v1179
      %1310 = vmatpush.bf16.msra.mxu0 %v1175
      %1311 = vmatmul.bf16.gmra.mxu0 %v901
      %v1312 = vpop.f32.mrf.mxu0
      %v1313 = vadd.f32 %v975, %v1312
      %v1314 = vpop.f32.mrf.mxu0
      %v1315 = vadd.f32 %v975, %v1314
      %1316 = vmatmul.bf16.gmra.mxu0 %v903
      %v1317 = vpop.f32.mrf.mxu0
      %v1318 = vadd.f32 %v975, %v1317
      %v1319 = vpop.f32.mrf.mxu0
      %v1320 = vadd.f32 %v975, %v1319
      %1321 = vmatmul.bf16.gmra.mxu0 %v905
      %v1322 = vpop.f32.mrf.mxu0
      %v1323 = vadd.f32 %v975, %v1322
      %v1324 = vpop.f32.mrf.mxu0
      %v1325 = vadd.f32 %v975, %v1324
      %1326 = vmatmul.bf16.gmra.mxu0 %v907
      %v1327 = vpop.f32.mrf.mxu0
      %v1328 = vadd.f32 %v975, %v1327
      %v1329 = vpop.f32.mrf.mxu0
      %v1330 = vadd.f32 %v975, %v1329
      %1331 = vdwg.mxu0
      %1332 = vmatpush.bf16.msra.mxu0 %v1235
      %1333 = vmatpush.bf16.msra.mxu0 %v1231
      %1334 = vmatpush.bf16.msra.mxu0 %v1227
      %1335 = vmatpush.bf16.msra.mxu0 %v1223
      %1336 = vmatpush.bf16.msra.mxu0 %v1219
      %1337 = vmatpush.bf16.msra.mxu0 %v1215
      %1338 = vmatpush.bf16.msra.mxu0 %v1211
      %1339 = vmatpush.bf16.msra.mxu0 %v1207
      %1340 = vmatmul.bf16.gmra.mxu0 %v902
      %v1341 = vpop.f32.mrf.mxu0
      %v1342 = vadd.f32 %v1313, %v1341
      %v1343 = vpop.f32.mrf.mxu0
      %v1344 = vadd.f32 %v1315, %v1343
      %1345 = vmatmul.bf16.gmra.mxu0 %v904
      %v1346 = vpop.f32.mrf.mxu0
      %v1347 = vadd.f32 %v1318, %v1346
      %v1348 = vpop.f32.mrf.mxu0
      %v1349 = vadd.f32 %v1320, %v1348
      %1350 = vmatmul.bf16.gmra.mxu0 %v906
      %v1351 = vpop.f32.mrf.mxu0
      %v1352 = vadd.f32 %v1323, %v1351
      %v1353 = vpop.f32.mrf.mxu0
      %v1354 = vadd.f32 %v1325, %v1353
      %1355 = vmatmul.bf16.gmra.mxu0 %v908
      %v1356 = vpop.f32.mrf.mxu0
      %v1357 = vadd.f32 %v1328, %v1356
      %v1358 = vpop.f32.mrf.mxu0
      %v1359 = vadd.f32 %v1330, %v1358
      %1360 = vdwg.mxu0
      %1361 = vmatpush.bf16.msra.mxu0 %v1204
      %1362 = vmatpush.bf16.msra.mxu0 %v1200
      %1363 = vmatpush.bf16.msra.mxu0 %v1196
      %1364 = vmatpush.bf16.msra.mxu0 %v1192
      %1365 = vmatpush.bf16.msra.mxu0 %v1188
      %1366 = vmatpush.bf16.msra.mxu0 %v1184
      %1367 = vmatpush.bf16.msra.mxu0 %v1180
      %1368 = vmatpush.bf16.msra.mxu0 %v1176
      %1369 = vmatmul.bf16.gmra.mxu0 %v901
      %v1370 = vpop.f32.mrf.mxu0
      %v1371 = vadd.f32 %v976, %v1370
      %v1372 = vpop.f32.mrf.mxu0
      %v1373 = vadd.f32 %v976, %v1372
      %1374 = vmatmul.bf16.gmra.mxu0 %v903
      %v1375 = vpop.f32.mrf.mxu0
      %v1376 = vadd.f32 %v976, %v1375
      %v1377 = vpop.f32.mrf.mxu0
      %v1378 = vadd.f32 %v976, %v1377
      %1379 = vmatmul.bf16.gmra.mxu0 %v905
      %v1380 = vpop.f32.mrf.mxu0
      %v1381 = vadd.f32 %v976, %v1380
      %v1382 = vpop.f32.mrf.mxu0
      %v1383 = vadd.f32 %v976, %v1382
      %1384 = vmatmul.bf16.gmra.mxu0 %v907
      %v1385 = vpop.f32.mrf.mxu0
      %v1386 = vadd.f32 %v976, %v1385
      %v1387 = vpop.f32.mrf.mxu0
      %v1388 = vadd.f32 %v976, %v1387
      %1389 = vdwg.mxu0
      %1390 = vmatpush.bf16.msra.mxu0 %v1236
      %1391 = vmatpush.bf16.msra.mxu0 %v1232
      %1392 = vmatpush.bf16.msra.mxu0 %v1228
      %1393 = vmatpush.bf16.msra.mxu0 %v1224
      %1394 = vmatpush.bf16.msra.mxu0 %v1220
      %1395 = vmatpush.bf16.msra.mxu0 %v1216
      %1396 = vmatpush.bf16.msra.mxu0 %v1212
      %1397 = vmatpush.bf16.msra.mxu0 %v1208
      %1398 = vmatmul.bf16.gmra.mxu0 %v902
      %v1399 = vpop.f32.mrf.mxu0
      %v1400 = vadd.f32 %v1371, %v1399
      %v1401 = vpop.f32.mrf.mxu0
      %v1402 = vadd.f32 %v1373, %v1401
      %1403 = vmatmul.bf16.gmra.mxu0 %v904
      %v1404 = vpop.f32.mrf.mxu0
      %v1405 = vadd.f32 %v1376, %v1404
      %v1406 = vpop.f32.mrf.mxu0
      %v1407 = vadd.f32 %v1378, %v1406
      %1408 = vmatmul.bf16.gmra.mxu0 %v906
      %v1409 = vpop.f32.mrf.mxu0
      %v1410 = vadd.f32 %v1381, %v1409
      %v1411 = vpop.f32.mrf.mxu0
      %v1412 = vadd.f32 %v1383, %v1411
      %1413 = vmatmul.bf16.gmra.mxu0 %v908
      %v1414 = vpop.f32.mrf.mxu0
      %v1415 = vadd.f32 %v1386, %v1414
      %v1416 = vpop.f32.mrf.mxu0
      %v1417 = vadd.f32 %v1388, %v1416
      %1418 = vdwg.mxu0
      %1419 = vmatpush.bf16.msra.mxu0 %v1205
      %1420 = vmatpush.bf16.msra.mxu0 %v1201
      %1421 = vmatpush.bf16.msra.mxu0 %v1197
      %1422 = vmatpush.bf16.msra.mxu0 %v1193
      %1423 = vmatpush.bf16.msra.mxu0 %v1189
      %1424 = vmatpush.bf16.msra.mxu0 %v1185
      %1425 = vmatpush.bf16.msra.mxu0 %v1181
      %1426 = vmatpush.bf16.msra.mxu0 %v1177
      %1427 = vmatmul.bf16.gmra.mxu0 %v901
      %v1428 = vpop.f32.mrf.mxu0
      %v1429 = vadd.f32 %v977, %v1428
      %v1430 = vpop.f32.mrf.mxu0
      %v1431 = vadd.f32 %v977, %v1430
      %1432 = vmatmul.bf16.gmra.mxu0 %v903
      %v1433 = vpop.f32.mrf.mxu0
      %v1434 = vadd.f32 %v977, %v1433
      %v1435 = vpop.f32.mrf.mxu0
      %v1436 = vadd.f32 %v977, %v1435
      %1437 = vmatmul.bf16.gmra.mxu0 %v905
      %v1438 = vpop.f32.mrf.mxu0
      %v1439 = vadd.f32 %v977, %v1438
      %v1440 = vpop.f32.mrf.mxu0
      %v1441 = vadd.f32 %v977, %v1440
      %1442 = vmatmul.bf16.gmra.mxu0 %v907
      %v1443 = vpop.f32.mrf.mxu0
      %v1444 = vadd.f32 %v977, %v1443
      %v1445 = vpop.f32.mrf.mxu0
      %v1446 = vadd.f32 %v977, %v1445
      %1447 = vdwg.mxu0
      %1448 = vmatpush.bf16.msra.mxu0 %v1237
      %1449 = vmatpush.bf16.msra.mxu0 %v1233
      %1450 = vmatpush.bf16.msra.mxu0 %v1229
      %1451 = vmatpush.bf16.msra.mxu0 %v1225
      %1452 = vmatpush.bf16.msra.mxu0 %v1221
      %1453 = vmatpush.bf16.msra.mxu0 %v1217
      %1454 = vmatpush.bf16.msra.mxu0 %v1213
      %1455 = vmatpush.bf16.msra.mxu0 %v1209
      %1456 = vmatmul.bf16.gmra.mxu0 %v902
      %v1457 = vpop.f32.mrf.mxu0
      %v1458 = vadd.f32 %v1429, %v1457
      %v1459 = vpop.f32.mrf.mxu0
      %v1460 = vadd.f32 %v1431, %v1459
      %1461 = vmatmul.bf16.gmra.mxu0 %v904
      %v1462 = vpop.f32.mrf.mxu0
      %v1463 = vadd.f32 %v1434, %v1462
      %v1464 = vpop.f32.mrf.mxu0
      %v1465 = vadd.f32 %v1436, %v1464
      %1466 = vmatmul.bf16.gmra.mxu0 %v906
      %v1467 = vpop.f32.mrf.mxu0
      %v1468 = vadd.f32 %v1439, %v1467
      %v1469 = vpop.f32.mrf.mxu0
      %v1470 = vadd.f32 %v1441, %v1469
      %1471 = vmatmul.bf16.gmra.mxu0 %v908
      %v1472 = vpop.f32.mrf.mxu0
      %v1473 = vadd.f32 %v1444, %v1472
      %v1474 = vpop.f32.mrf.mxu0
      %v1475 = vadd.f32 %v1446, %v1474
      %1476 = vdwg.mxu0
      %1477 = vmatpush.bf16.msra.mxu0 %v1206
      %1478 = vmatpush.bf16.msra.mxu0 %v1202
      %1479 = vmatpush.bf16.msra.mxu0 %v1198
      %1480 = vmatpush.bf16.msra.mxu0 %v1194
      %1481 = vmatpush.bf16.msra.mxu0 %v1190
      %1482 = vmatpush.bf16.msra.mxu0 %v1186
      %1483 = vmatpush.bf16.msra.mxu0 %v1182
      %1484 = vmatpush.bf16.msra.mxu0 %v1178
      %1485 = vmatmul.bf16.gmra.mxu0 %v901
      %v1486 = vpop.f32.mrf.mxu0
      %v1487 = vadd.f32 %v978, %v1486
      %v1488 = vpop.f32.mrf.mxu0
      %v1489 = vadd.f32 %v978, %v1488
      %1490 = vmatmul.bf16.gmra.mxu0 %v903
      %v1491 = vpop.f32.mrf.mxu0
      %v1492 = vadd.f32 %v978, %v1491
      %v1493 = vpop.f32.mrf.mxu0
      %v1494 = vadd.f32 %v978, %v1493
      %1495 = vmatmul.bf16.gmra.mxu0 %v905
      %v1496 = vpop.f32.mrf.mxu0
      %v1497 = vadd.f32 %v978, %v1496
      %v1498 = vpop.f32.mrf.mxu0
      %v1499 = vadd.f32 %v978, %v1498
      %1500 = vmatmul.bf16.gmra.mxu0 %v907
      %v1501 = vpop.f32.mrf.mxu0
      %v1502 = vadd.f32 %v978, %v1501
      %v1503 = vpop.f32.mrf.mxu0
      %v1504 = vadd.f32 %v978, %v1503
      %1505 = vdwg.mxu0
      %1506 = vmatpush.bf16.msra.mxu0 %v1238
      %1507 = vmatpush.bf16.msra.mxu0 %v1234
      %1508 = vmatpush.bf16.msra.mxu0 %v1230
      %1509 = vmatpush.bf16.msra.mxu0 %v1226
      %1510 = vmatpush.bf16.msra.mxu0 %v1222
      %1511 = vmatpush.bf16.msra.mxu0 %v1218
      %1512 = vmatpush.bf16.msra.mxu0 %v1214
      %1513 = vmatpush.bf16.msra.mxu0 %v1210
      %1514 = vmatmul.bf16.gmra.mxu0 %v902
      %v1515 = vpop.f32.mrf.mxu0
      %v1516 = vadd.f32 %v1487, %v1515
      %v1517 = vpop.f32.mrf.mxu0
      %v1518 = vadd.f32 %v1489, %v1517
      %1519 = vmatmul.bf16.gmra.mxu0 %v904
      %v1520 = vpop.f32.mrf.mxu0
      %v1521 = vadd.f32 %v1492, %v1520
      %v1522 = vpop.f32.mrf.mxu0
      %v1523 = vadd.f32 %v1494, %v1522
      %1524 = vmatmul.bf16.gmra.mxu0 %v906
      %v1525 = vpop.f32.mrf.mxu0
      %v1526 = vadd.f32 %v1497, %v1525
      %v1527 = vpop.f32.mrf.mxu0
      %v1528 = vadd.f32 %v1499, %v1527
      %1529 = vmatmul.bf16.gmra.mxu0 %v908
      %v1530 = vpop.f32.mrf.mxu0
      %v1531 = vadd.f32 %v1502, %v1530
      %v1532 = vpop.f32.mrf.mxu0
      %v1533 = vadd.f32 %v1504, %v1532
      %1534 = vdwg.mxu0
      %v1535 = vmul.f32 %v1342, %v1342
      %v1536 = vmul.f32 %v1400, %v1400
      %v1537 = vmul.f32 %v1458, %v1458
      %v1538 = vmul.f32 %v1516, %v1516
      %v1539 = vmul.f32 %v1344, %v1344
      %v1540 = vmul.f32 %v1402, %v1402
      %v1541 = vmul.f32 %v1460, %v1460
      %v1542 = vmul.f32 %v1518, %v1518
      %v1543 = vmul.f32 %v1347, %v1347
      %v1544 = vmul.f32 %v1405, %v1405
      %v1545 = vmul.f32 %v1463, %v1463
      %v1546 = vmul.f32 %v1521, %v1521
      %v1547 = vmul.f32 %v1349, %v1349
      %v1548 = vmul.f32 %v1407, %v1407
      %v1549 = vmul.f32 %v1465, %v1465
      %v1550 = vmul.f32 %v1523, %v1523
      %v1551 = vmul.f32 %v1352, %v1352
      %v1552 = vmul.f32 %v1410, %v1410
      %v1553 = vmul.f32 %v1468, %v1468
      %v1554 = vmul.f32 %v1526, %v1526
      %v1555 = vmul.f32 %v1354, %v1354
      %v1556 = vmul.f32 %v1412, %v1412
      %v1557 = vmul.f32 %v1470, %v1470
      %v1558 = vmul.f32 %v1528, %v1528
      %v1559 = vmul.f32 %v1357, %v1357
      %v1560 = vmul.f32 %v1415, %v1415
      %v1561 = vmul.f32 %v1473, %v1473
      %v1562 = vmul.f32 %v1531, %v1531
      %v1563 = vmul.f32 %v1359, %v1359
      %v1564 = vmul.f32 %v1417, %v1417
      %v1565 = vmul.f32 %v1475, %v1475
      %v1566 = vmul.f32 %v1533, %v1533
      %v1567 = vmul.f32 %v1342, %v1535
      %v1568 = vmul.f32 %v1400, %v1536
      %v1569 = vmul.f32 %v1458, %v1537
      %v1570 = vmul.f32 %v1516, %v1538
      %v1571 = vmul.f32 %v1344, %v1539
      %v1572 = vmul.f32 %v1402, %v1540
      %v1573 = vmul.f32 %v1460, %v1541
      %v1574 = vmul.f32 %v1518, %v1542
      %v1575 = vmul.f32 %v1347, %v1543
      %v1576 = vmul.f32 %v1405, %v1544
      %v1577 = vmul.f32 %v1463, %v1545
      %v1578 = vmul.f32 %v1521, %v1546
      %v1579 = vmul.f32 %v1349, %v1547
      %v1580 = vmul.f32 %v1407, %v1548
      %v1581 = vmul.f32 %v1465, %v1549
      %v1582 = vmul.f32 %v1523, %v1550
      %v1583 = vmul.f32 %v1352, %v1551
      %v1584 = vmul.f32 %v1410, %v1552
      %v1585 = vmul.f32 %v1468, %v1553
      %v1586 = vmul.f32 %v1526, %v1554
      %v1587 = vmul.f32 %v1354, %v1555
      %v1588 = vmul.f32 %v1412, %v1556
      %v1589 = vmul.f32 %v1470, %v1557
      %v1590 = vmul.f32 %v1528, %v1558
      %v1591 = vmul.f32 %v1357, %v1559
      %v1592 = vmul.f32 %v1415, %v1560
      %v1593 = vmul.f32 %v1473, %v1561
      %v1594 = vmul.f32 %v1531, %v1562
      %v1595 = vmul.f32 %v1359, %v1563
      %v1596 = vmul.f32 %v1417, %v1564
      %v1597 = vmul.f32 %v1475, %v1565
      %v1598 = vmul.f32 %v1533, %v1566
      %v1599 = vmul.f32 %v1567, 0.044715
      %v1600 = vmul.f32 %v1568, 0.044715
      %v1601 = vmul.f32 %v1569, 0.044715
      %v1602 = vmul.f32 %v1570, 0.044715
      %v1603 = vmul.f32 %v1571, 0.044715
      %v1604 = vmul.f32 %v1572, 0.044715
      %v1605 = vmul.f32 %v1573, 0.044715
      %v1606 = vmul.f32 %v1574, 0.044715
      %v1607 = vmul.f32 %v1575, 0.044715
      %v1608 = vmul.f32 %v1576, 0.044715
      %v1609 = vmul.f32 %v1577, 0.044715
      %v1610 = vmul.f32 %v1578, 0.044715
      %v1611 = vmul.f32 %v1579, 0.044715
      %v1612 = vmul.f32 %v1580, 0.044715
      %v1613 = vmul.f32 %v1581, 0.044715
      %v1614 = vmul.f32 %v1582, 0.044715
      %v1615 = vmul.f32 %v1583, 0.044715
      %v1616 = vmul.f32 %v1584, 0.044715
      %v1617 = vmul.f32 %v1585, 0.044715
      %v1618 = vmul.f32 %v1586, 0.044715
      %v1619 = vmul.f32 %v1587, 0.044715
      %v1620 = vmul.f32 %v1588, 0.044715
      %v1621 = vmul.f32 %v1589, 0.044715
      %v1622 = vmul.f32 %v1590, 0.044715
      %v1623 = vmul.f32 %v1591, 0.044715
      %v1624 = vmul.f32 %v1592, 0.044715
      %v1625 = vmul.f32 %v1593, 0.044715
      %v1626 = vmul.f32 %v1594, 0.044715
      %v1627 = vmul.f32 %v1595, 0.044715
      %v1628 = vmul.f32 %v1596, 0.044715
      %v1629 = vmul.f32 %v1597, 0.044715
      %v1630 = vmul.f32 %v1598, 0.044715
      %v1631 = vadd.f32 %v1342, %v1599
      %v1632 = vadd.f32 %v1400, %v1600
      %v1633 = vadd.f32 %v1458, %v1601
      %v1634 = vadd.f32 %v1516, %v1602
      %v1635 = vadd.f32 %v1344, %v1603
      %v1636 = vadd.f32 %v1402, %v1604
      %v1637 = vadd.f32 %v1460, %v1605
      %v1638 = vadd.f32 %v1518, %v1606
      %v1639 = vadd.f32 %v1347, %v1607
      %v1640 = vadd.f32 %v1405, %v1608
      %v1641 = vadd.f32 %v1463, %v1609
      %v1642 = vadd.f32 %v1521, %v1610
      %v1643 = vadd.f32 %v1349, %v1611
      %v1644 = vadd.f32 %v1407, %v1612
      %v1645 = vadd.f32 %v1465, %v1613
      %v1646 = vadd.f32 %v1523, %v1614
      %v1647 = vadd.f32 %v1352, %v1615
      %v1648 = vadd.f32 %v1410, %v1616
      %v1649 = vadd.f32 %v1468, %v1617
      %v1650 = vadd.f32 %v1526, %v1618
      %v1651 = vadd.f32 %v1354, %v1619
      %v1652 = vadd.f32 %v1412, %v1620
      %v1653 = vadd.f32 %v1470, %v1621
      %v1654 = vadd.f32 %v1528, %v1622
      %v1655 = vadd.f32 %v1357, %v1623
      %v1656 = vadd.f32 %v1415, %v1624
      %v1657 = vadd.f32 %v1473, %v1625
      %v1658 = vadd.f32 %v1531, %v1626
      %v1659 = vadd.f32 %v1359, %v1627
      %v1660 = vadd.f32 %v1417, %v1628
      %v1661 = vadd.f32 %v1475, %v1629
      %v1662 = vadd.f32 %v1533, %v1630
      %v1663 = vmul.f32 %v1631, 0.7978846
      %v1664 = vmul.f32 %v1632, 0.7978846
      %v1665 = vmul.f32 %v1633, 0.7978846
      %v1666 = vmul.f32 %v1634, 0.7978846
      %v1667 = vmul.f32 %v1635, 0.7978846
      %v1668 = vmul.f32 %v1636, 0.7978846
      %v1669 = vmul.f32 %v1637, 0.7978846
      %v1670 = vmul.f32 %v1638, 0.7978846
      %v1671 = vmul.f32 %v1639, 0.7978846
      %v1672 = vmul.f32 %v1640, 0.7978846
      %v1673 = vmul.f32 %v1641, 0.7978846
      %v1674 = vmul.f32 %v1642, 0.7978846
      %v1675 = vmul.f32 %v1643, 0.7978846
      %v1676 = vmul.f32 %v1644, 0.7978846
      %v1677 = vmul.f32 %v1645, 0.7978846
      %v1678 = vmul.f32 %v1646, 0.7978846
      %v1679 = vmul.f32 %v1647, 0.7978846
      %v1680 = vmul.f32 %v1648, 0.7978846
      %v1681 = vmul.f32 %v1649, 0.7978846
      %v1682 = vmul.f32 %v1650, 0.7978846
      %v1683 = vmul.f32 %v1651, 0.7978846
      %v1684 = vmul.f32 %v1652, 0.7978846
      %v1685 = vmul.f32 %v1653, 0.7978846
      %v1686 = vmul.f32 %v1654, 0.7978846
      %v1687 = vmul.f32 %v1655, 0.7978846
      %v1688 = vmul.f32 %v1656, 0.7978846
      %v1689 = vmul.f32 %v1657, 0.7978846
      %v1690 = vmul.f32 %v1658, 0.7978846
      %v1691 = vmul.f32 %v1659, 0.7978846
      %v1692 = vmul.f32 %v1660, 0.7978846
      %v1693 = vmul.f32 %v1661, 0.7978846
      %v1694 = vmul.f32 %v1662, 0.7978846
      %v1695 = vtanh.pop %v1663
      %v1696 = vtanh.pop %v1664
      %v1697 = vtanh.pop %v1665
      %v1698 = vtanh.pop %v1666
      %v1699 = vtanh.pop %v1667
      %v1700 = vtanh.pop %v1668
      %v1701 = vtanh.pop %v1669
      %v1702 = vtanh.pop %v1670
      %v1703 = vtanh.pop %v1671
      %v1704 = vtanh.pop %v1672
      %v1705 = vtanh.pop %v1673
      %v1706 = vtanh.pop %v1674
      %v1707 = vtanh.pop %v1675
      %v1708 = vtanh.pop %v1676
      %v1709 = vtanh.pop %v1677
      %v1710 = vtanh.pop %v1678
      %v1711 = vtanh.pop %v1679
      %v1712 = vtanh.pop %v1680
      %v1713 = vtanh.pop %v1681
      %v1714 = vtanh.pop %v1682
      %v1715 = vtanh.pop %v1683
      %v1716 = vtanh.pop %v1684
      %v1717 = vtanh.pop %v1685
      %v1718 = vtanh.pop %v1686
      %v1719 = vtanh.pop %v1687
      %v1720 = vtanh.pop %v1688
      %v1721 = vtanh.pop %v1689
      %v1722 = vtanh.pop %v1690
      %v1723 = vtanh.pop %v1691
      %v1724 = vtanh.pop %v1692
      %v1725 = vtanh.pop %v1693
      %v1726 = vtanh.pop %v1694
      %v1727 = vadd.f32 %v1695, 1.0
      %v1728 = vadd.f32 %v1696, 1.0
      %v1729 = vadd.f32 %v1697, 1.0
      %v1730 = vadd.f32 %v1698, 1.0
      %v1731 = vadd.f32 %v1699, 1.0
      %v1732 = vadd.f32 %v1700, 1.0
      %v1733 = vadd.f32 %v1701, 1.0
      %v1734 = vadd.f32 %v1702, 1.0
      %v1735 = vadd.f32 %v1703, 1.0
      %v1736 = vadd.f32 %v1704, 1.0
      %v1737 = vadd.f32 %v1705, 1.0
      %v1738 = vadd.f32 %v1706, 1.0
      %v1739 = vadd.f32 %v1707, 1.0
      %v1740 = vadd.f32 %v1708, 1.0
      %v1741 = vadd.f32 %v1709, 1.0
      %v1742 = vadd.f32 %v1710, 1.0
      %v1743 = vadd.f32 %v1711, 1.0
      %v1744 = vadd.f32 %v1712, 1.0
      %v1745 = vadd.f32 %v1713, 1.0
      %v1746 = vadd.f32 %v1714, 1.0
      %v1747 = vadd.f32 %v1715, 1.0
      %v1748 = vadd.f32 %v1716, 1.0
      %v1749 = vadd.f32 %v1717, 1.0
      %v1750 = vadd.f32 %v1718, 1.0
      %v1751 = vadd.f32 %v1719, 1.0
      %v1752 = vadd.f32 %v1720, 1.0
      %v1753 = vadd.f32 %v1721, 1.0
      %v1754 = vadd.f32 %v1722, 1.0
      %v1755 = vadd.f32 %v1723, 1.0
      %v1756 = vadd.f32 %v1724, 1.0
      %v1757 = vadd.f32 %v1725, 1.0
      %v1758 = vadd.f32 %v1726, 1.0
      %v1759 = vmul.f32 %v1727, 0.5
      %v1760 = vmul.f32 %v1728, 0.5
      %v1761 = vmul.f32 %v1729, 0.5
      %v1762 = vmul.f32 %v1730, 0.5
      %v1763 = vmul.f32 %v1731, 0.5
      %v1764 = vmul.f32 %v1732, 0.5
      %v1765 = vmul.f32 %v1733, 0.5
      %v1766 = vmul.f32 %v1734, 0.5
      %v1767 = vmul.f32 %v1735, 0.5
      %v1768 = vmul.f32 %v1736, 0.5
      %v1769 = vmul.f32 %v1737, 0.5
      %v1770 = vmul.f32 %v1738, 0.5
      %v1771 = vmul.f32 %v1739, 0.5
      %v1772 = vmul.f32 %v1740, 0.5
      %v1773 = vmul.f32 %v1741, 0.5
      %v1774 = vmul.f32 %v1742, 0.5
      %v1775 = vmul.f32 %v1743, 0.5
      %v1776 = vmul.f32 %v1744, 0.5
      %v1777 = vmul.f32 %v1745, 0.5
      %v1778 = vmul.f32 %v1746, 0.5
      %v1779 = vmul.f32 %v1747, 0.5
      %v1780 = vmul.f32 %v1748, 0.5
      %v1781 = vmul.f32 %v1749, 0.5
      %v1782 = vmul.f32 %v1750, 0.5
      %v1783 = vmul.f32 %v1751, 0.5
      %v1784 = vmul.f32 %v1752, 0.5
      %v1785 = vmul.f32 %v1753, 0.5
      %v1786 = vmul.f32 %v1754, 0.5
      %v1787 = vmul.f32 %v1755, 0.5
      %v1788 = vmul.f32 %v1756, 0.5
      %v1789 = vmul.f32 %v1757, 0.5
      %v1790 = vmul.f32 %v1758, 0.5
      %v1791 = vmul.f32 %v1342, %v1759
      %v1792 = vmul.f32 %v1400, %v1760
      %v1793 = vmul.f32 %v1458, %v1761
      %v1794 = vmul.f32 %v1516, %v1762
      %v1795 = vmul.f32 %v1344, %v1763
      %v1796 = vmul.f32 %v1402, %v1764
      %v1797 = vmul.f32 %v1460, %v1765
      %v1798 = vmul.f32 %v1518, %v1766
      %v1799 = vmul.f32 %v1347, %v1767
      %v1800 = vmul.f32 %v1405, %v1768
      %v1801 = vmul.f32 %v1463, %v1769
      %v1802 = vmul.f32 %v1521, %v1770
      %v1803 = vmul.f32 %v1349, %v1771
      %v1804 = vmul.f32 %v1407, %v1772
      %v1805 = vmul.f32 %v1465, %v1773
      %v1806 = vmul.f32 %v1523, %v1774
      %v1807 = vmul.f32 %v1352, %v1775
      %v1808 = vmul.f32 %v1410, %v1776
      %v1809 = vmul.f32 %v1468, %v1777
      %v1810 = vmul.f32 %v1526, %v1778
      %v1811 = vmul.f32 %v1354, %v1779
      %v1812 = vmul.f32 %v1412, %v1780
      %v1813 = vmul.f32 %v1470, %v1781
      %v1814 = vmul.f32 %v1528, %v1782
      %v1815 = vmul.f32 %v1357, %v1783
      %v1816 = vmul.f32 %v1415, %v1784
      %v1817 = vmul.f32 %v1473, %v1785
      %v1818 = vmul.f32 %v1531, %v1786
      %v1819 = vmul.f32 %v1359, %v1787
      %v1820 = vmul.f32 %v1417, %v1788
      %v1821 = vmul.f32 %v1475, %v1789
      %v1822 = vmul.f32 %v1533, %v1790
      %v1823 = vld [vmem:[%s558] sm:$0x3]
      %v1824 = vld [vmem:[%s562] sm:$0x3]
      %v1825 = vadd.f32 %v1793, %v1794
      %1826 = vadd.xlane.f32.xlu0 %v1825
      %v1827 = vpop.xlane.xlu0 %1826
      %v1828 = vadd.f32 %v1797, %v1798
      %1829 = vadd.xlane.f32.xlu0 %v1828
      %v1830 = vpop.xlane.xlu0 %1829
      %v1831 = vadd.f32 %v1801, %v1802
      %1832 = vadd.xlane.f32.xlu0 %v1831
      %v1833 = vpop.xlane.xlu0 %1832
      %v1834 = vadd.f32 %v1805, %v1806
      %1835 = vadd.xlane.f32.xlu0 %v1834
      %v1836 = vpop.xlane.xlu0 %1835
      %v1837 = vadd.f32 %v1809, %v1810
      %1838 = vadd.xlane.f32.xlu0 %v1837
      %v1839 = vpop.xlane.xlu0 %1838
      %v1840 = vadd.f32 %v1813, %v1814
      %1841 = vadd.xlane.f32.xlu0 %v1840
      %v1842 = vpop.xlane.xlu0 %1841
      %v1843 = vadd.f32 %v1817, %v1818
      %1844 = vadd.xlane.f32.xlu0 %v1843
      %v1845 = vpop.xlane.xlu0 %1844
      %v1846 = vadd.f32 %v1821, %v1822
      %1847 = vadd.xlane.f32.xlu0 %v1846
      %v1848 = vpop.xlane.xlu0 %1847
      %v1849 = vmul.f32 %v1827, %v682
      %v1850 = vmul.f32 %v1830, %v682
      %v1851 = vmul.f32 %v1833, %v682
      %v1852 = vmul.f32 %v1836, %v682
      %v1853 = vmul.f32 %v1839, %v682
      %v1854 = vmul.f32 %v1842, %v682
      %v1855 = vmul.f32 %v1845, %v682
      %v1856 = vmul.f32 %v1848, %v682
      %v1857 = vsub.f32 %v1793, %v1849
      %v1858 = vsub.f32 %v1794, %v1849
      %v1859 = vsub.f32 %v1797, %v1850
      %v1860 = vsub.f32 %v1798, %v1850
      %v1861 = vsub.f32 %v1801, %v1851
      %v1862 = vsub.f32 %v1802, %v1851
      %v1863 = vsub.f32 %v1805, %v1852
      %v1864 = vsub.f32 %v1806, %v1852
      %v1865 = vsub.f32 %v1809, %v1853
      %v1866 = vsub.f32 %v1810, %v1853
      %v1867 = vsub.f32 %v1813, %v1854
      %v1868 = vsub.f32 %v1814, %v1854
      %v1869 = vsub.f32 %v1817, %v1855
      %v1870 = vsub.f32 %v1818, %v1855
      %v1871 = vsub.f32 %v1821, %v1856
      %v1872 = vsub.f32 %v1822, %v1856
      %v1873 = vmul.f32 %v1857, %v1857
      %v1874 = vmul.f32 %v1858, %v1858
      %v1875 = vmul.f32 %v1859, %v1859
      %v1876 = vmul.f32 %v1860, %v1860
      %v1877 = vmul.f32 %v1861, %v1861
      %v1878 = vmul.f32 %v1862, %v1862
      %v1879 = vmul.f32 %v1863, %v1863
      %v1880 = vmul.f32 %v1864, %v1864
      %v1881 = vmul.f32 %v1865, %v1865
      %v1882 = vmul.f32 %v1866, %v1866
      %v1883 = vmul.f32 %v1867, %v1867
      %v1884 = vmul.f32 %v1868, %v1868
      %v1885 = vmul.f32 %v1869, %v1869
      %v1886 = vmul.f32 %v1870, %v1870
      %v1887 = vmul.f32 %v1871, %v1871
      %v1888 = vmul.f32 %v1872, %v1872
      %v1889 = vadd.f32 %v1873, %v1874
      %1890 = vadd.xlane.f32.xlu0 %v1889
      %v1891 = vpop.xlane.xlu0 %1890
      %v1892 = vadd.f32 %v1875, %v1876
      %1893 = vadd.xlane.f32.xlu0 %v1892
      %v1894 = vpop.xlane.xlu0 %1893
      %v1895 = vadd.f32 %v1877, %v1878
      %1896 = vadd.xlane.f32.xlu0 %v1895
      %v1897 = vpop.xlane.xlu0 %1896
      %v1898 = vadd.f32 %v1879, %v1880
      %1899 = vadd.xlane.f32.xlu0 %v1898
      %v1900 = vpop.xlane.xlu0 %1899
      %v1901 = vadd.f32 %v1881, %v1882
      %1902 = vadd.xlane.f32.xlu0 %v1901
      %v1903 = vpop.xlane.xlu0 %1902
      %v1904 = vadd.f32 %v1883, %v1884
      %1905 = vadd.xlane.f32.xlu0 %v1904
      %v1906 = vpop.xlane.xlu0 %1905
      %v1907 = vadd.f32 %v1885, %v1886
      %1908 = vadd.xlane.f32.xlu0 %v1907
      %v1909 = vpop.xlane.xlu0 %1908
      %v1910 = vadd.f32 %v1887, %v1888
      %1911 = vadd.xlane.f32.xlu0 %v1910
      %v1912 = vpop.xlane.xlu0 %1911
      %v1913 = vmul.f32 %v1891, %v682
      %v1914 = vmul.f32 %v1894, %v682
      %v1915 = vmul.f32 %v1897, %v682
      %v1916 = vmul.f32 %v1900, %v682
      %v1917 = vmul.f32 %v1903, %v682
      %v1918 = vmul.f32 %v1906, %v682
      %v1919 = vmul.f32 %v1909, %v682
      %v1920 = vmul.f32 %v1912, %v682
      %v1921 = vadd.f32 %v1913, 1e-05
      %v1922 = vadd.f32 %v1914, 1e-05
      %v1923 = vadd.f32 %v1915, 1e-05
      %v1924 = vadd.f32 %v1916, 1e-05
      %v1925 = vadd.f32 %v1917, 1e-05
      %v1926 = vadd.f32 %v1918, 1e-05
      %v1927 = vadd.f32 %v1919, 1e-05
      %v1928 = vadd.f32 %v1920, 1e-05
      %v1929 = vrsqrt.pop %v1921
      %v1930 = vmul.f32 %v1929, %v1921
      %v1931 = vmul.f32 %v1930, %v1929
      %v1932 = vmul.f32 0.5, %v1931
      %v1933 = vsub.f32 1.5, %v1932
      %v1934 = vmul.f32 %v1929, %v1933
      %vm1935 = vweird.f32 %v1921
      %vm1936 = vweird.f32 %v1929
      %vm1937 = vmor %vm1935, %vm1936
      %v1938 = vsel %vm1937, %v1929, %v1934
      %v1939 = vrsqrt.pop %v1922
      %v1940 = vmul.f32 %v1939, %v1922
      %v1941 = vmul.f32 %v1940, %v1939
      %v1942 = vmul.f32 0.5, %v1941
      %v1943 = vsub.f32 1.5, %v1942
      %v1944 = vmul.f32 %v1939, %v1943
      %vm1945 = vweird.f32 %v1922
      %vm1946 = vweird.f32 %v1939
      %vm1947 = vmor %vm1945, %vm1946
      %v1948 = vsel %vm1947, %v1939, %v1944
      %v1949 = vrsqrt.pop %v1923
      %v1950 = vmul.f32 %v1949, %v1923
      %v1951 = vmul.f32 %v1950, %v1949
      %v1952 = vmul.f32 0.5, %v1951
      %v1953 = vsub.f32 1.5, %v1952
      %v1954 = vmul.f32 %v1949, %v1953
      %vm1955 = vweird.f32 %v1923
      %vm1956 = vweird.f32 %v1949
      %vm1957 = vmor %vm1955, %vm1956
      %v1958 = vsel %vm1957, %v1949, %v1954
      %v1959 = vrsqrt.pop %v1924
      %v1960 = vmul.f32 %v1959, %v1924
      %v1961 = vmul.f32 %v1960, %v1959
      %v1962 = vmul.f32 0.5, %v1961
      %v1963 = vsub.f32 1.5, %v1962
      %v1964 = vmul.f32 %v1959, %v1963
      %vm1965 = vweird.f32 %v1924
      %vm1966 = vweird.f32 %v1959
      %vm1967 = vmor %vm1965, %vm1966
      %v1968 = vsel %vm1967, %v1959, %v1964
      %v1969 = vrsqrt.pop %v1925
      %v1970 = vmul.f32 %v1969, %v1925
      %v1971 = vmul.f32 %v1970, %v1969
      %v1972 = vmul.f32 0.5, %v1971
      %v1973 = vsub.f32 1.5, %v1972
      %v1974 = vmul.f32 %v1969, %v1973
      %vm1975 = vweird.f32 %v1925
      %vm1976 = vweird.f32 %v1969
      %vm1977 = vmor %vm1975, %vm1976
      %v1978 = vsel %vm1977, %v1969, %v1974
      %v1979 = vrsqrt.pop %v1926
      %v1980 = vmul.f32 %v1979, %v1926
      %v1981 = vmul.f32 %v1980, %v1979
      %v1982 = vmul.f32 0.5, %v1981
      %v1983 = vsub.f32 1.5, %v1982
      %v1984 = vmul.f32 %v1979, %v1983
      %vm1985 = vweird.f32 %v1926
      %vm1986 = vweird.f32 %v1979
      %vm1987 = vmor %vm1985, %vm1986
      %v1988 = vsel %vm1987, %v1979, %v1984
      %v1989 = vrsqrt.pop %v1927
      %v1990 = vmul.f32 %v1989, %v1927
      %v1991 = vmul.f32 %v1990, %v1989
      %v1992 = vmul.f32 0.5, %v1991
      %v1993 = vsub.f32 1.5, %v1992
      %v1994 = vmul.f32 %v1989, %v1993
      %vm1995 = vweird.f32 %v1927
      %vm1996 = vweird.f32 %v1989
      %vm1997 = vmor %vm1995, %vm1996
      %v1998 = vsel %vm1997, %v1989, %v1994
      %v1999 = vrsqrt.pop %v1928
      %v2000 = vmul.f32 %v1999, %v1928
      %v2001 = vmul.f32 %v2000, %v1999
      %v2002 = vmul.f32 0.5, %v2001
      %v2003 = vsub.f32 1.5, %v2002
      %v2004 = vmul.f32 %v1999, %v2003
      %vm2005 = vweird.f32 %v1928
      %vm2006 = vweird.f32 %v1999
      %vm2007 = vmor %vm2005, %vm2006
      %v2008 = vsel %vm2007, %v1999, %v2004
      %v2009 = vmul.f32 %v1857, %v1938
      %v2010 = vmul.f32 %v1858, %v1938
      %v2011 = vmul.f32 %v1859, %v1948
      %v2012 = vmul.f32 %v1860, %v1948
      %v2013 = vmul.f32 %v1861, %v1958
      %v2014 = vmul.f32 %v1862, %v1958
      %v2015 = vmul.f32 %v1863, %v1968
      %v2016 = vmul.f32 %v1864, %v1968
      %v2017 = vmul.f32 %v1865, %v1978
      %v2018 = vmul.f32 %v1866, %v1978
      %v2019 = vmul.f32 %v1867, %v1988
      %v2020 = vmul.f32 %v1868, %v1988
      %v2021 = vmul.f32 %v1869, %v1998
      %v2022 = vmul.f32 %v1870, %v1998
      %v2023 = vmul.f32 %v1871, %v2008
      %v2024 = vmul.f32 %v1872, %v2008
      %v2026 = vperm.slane %v1823, 0
      %v2027 = vperm.slane %v1823, 1
      %v2030 = vmul.f32 %v2009, %v2026
      %v2031 = vmul.f32 %v2010, %v2027
      %v2032 = vmul.f32 %v2011, %v2026
      %v2033 = vmul.f32 %v2012, %v2027
      %v2034 = vmul.f32 %v2013, %v2026
      %v2035 = vmul.f32 %v2014, %v2027
      %v2036 = vmul.f32 %v2015, %v2026
      %v2037 = vmul.f32 %v2016, %v2027
      %v2038 = vmul.f32 %v2017, %v2026
      %v2039 = vmul.f32 %v2018, %v2027
      %v2040 = vmul.f32 %v2019, %v2026
      %v2041 = vmul.f32 %v2020, %v2027
      %v2042 = vmul.f32 %v2021, %v2026
      %v2043 = vmul.f32 %v2022, %v2027
      %v2044 = vmul.f32 %v2023, %v2026
      %v2045 = vmul.f32 %v2024, %v2027
      %v2047 = vperm.slane %v1824, 0
      %v2048 = vperm.slane %v1824, 1
      %v2051 = vadd.f32 %v2030, %v2047
      %v2052 = vadd.f32 %v2031, %v2048
      %v2053 = vadd.f32 %v2032, %v2047
      %v2054 = vadd.f32 %v2033, %v2048
      %v2055 = vadd.f32 %v2034, %v2047
      %v2056 = vadd.f32 %v2035, %v2048
      %v2057 = vadd.f32 %v2036, %v2047
      %v2058 = vadd.f32 %v2037, %v2048
      %v2059 = vadd.f32 %v2038, %v2047
      %v2060 = vadd.f32 %v2039, %v2048
      %v2061 = vadd.f32 %v2040, %v2047
      %v2062 = vadd.f32 %v2041, %v2048
      %v2063 = vadd.f32 %v2042, %v2047
      %v2064 = vadd.f32 %v2043, %v2048
      %v2065 = vadd.f32 %v2044, %v2047
      %v2066 = vadd.f32 %v2045, %v2048
      %v2067 = vpack.c.bf16 %v2053, %v2051
      %v2068 = vpack.c.bf16 %v2054, %v2052
      %v2069 = vpack.c.bf16 %v2057, %v2055
      %v2070 = vpack.c.bf16 %v2058, %v2056
      %v2071 = vld [vmem:[%s567] sm:$0xf]
      %v2072 = vld [vmem:[%s567 + $0x4] sm:$0xf]
      %v2073 = vld [vmem:[%s567 + $0x8] sm:$0xf]
      %v2074 = vld [vmem:[%s567 + $0xc] sm:$0xf]
      %v2075 = vld [vmem:[%s572] sm:$0xff]
      %v2076 = vld [vmem:[%s572 + $0x8] sm:$0xff]
      %v2077 = vld [vmem:[%s572 + $0x10] sm:$0xff]
      %v2078 = vld [vmem:[%s572 + $0x18] sm:$0xff]
      %2080 = vset.pattern.permute.xlu0 0
      %2081 = vperm.xlu0 %2080, %v2075
      %v2082 = vpop.permute.xlu0 %2081
      %2085 = vset.pattern.permute.xlu0 0
      %2086 = vperm.xlu0 %2085, %v2076
      %v2087 = vpop.permute.xlu0 %2086
      %2090 = vset.pattern.permute.xlu0 0
      %2091 = vperm.xlu0 %2090, %v2077
      %v2092 = vpop.permute.xlu0 %2091
      %2095 = vset.pattern.permute.xlu0 0
      %2096 = vperm.xlu0 %2095, %v2078
      %v2097 = vpop.permute.xlu0 %2096
      %v2103 = vunpack.c.l.b16 %v2071
      %v2104 = vunpack.c.l.b16 %v2072
      %v2105 = vunpack.c.l.b16 %v2073
      %v2106 = vunpack.c.l.b16 %v2074
      %v2107 = vpack.c.b16 %v2104, %v2103
      %v2108 = vpack.c.b16 %v2106, %v2105
      %vm2109 = vcmask 261120
      %v2111 = vsel %vm2109, %v2107, 0
      %v2114 = vsel %vm2109, %v2108, 0
      %2116 = vmatpush.bf16.msra.mxu0 0
      %2117 = vmatpush.bf16.msra.mxu0 0
      %2118 = vmatpush.bf16.msra.mxu0 0
      %2119 = vmatpush.bf16.msra.mxu0 0
      %2120 = vmatpush.bf16.msra.mxu0 0
      %2121 = vmatpush.bf16.msra.mxu0 0
      %2122 = vmatpush.bf16.msra.mxu0 %v2069
      %2123 = vmatpush.bf16.msra.mxu0 %v2067
      %2124 = vmatmul.bf16.gmra.mxu0 %v2111
      %v2125 = vpop.f32.mrf.mxu0
      %v2126 = vadd.f32 %v2082, %v2125
      %v2127 = vpop.f32.mrf.mxu0
      %v2128 = vadd.f32 %v2087, %v2127
      %2129 = vmatmul.bf16.gmra.mxu0 %v2114
      %v2130 = vpop.f32.mrf.mxu0
      %v2131 = vadd.f32 %v2092, %v2130
      %v2132 = vpop.f32.mrf.mxu0
      %v2133 = vadd.f32 %v2097, %v2132
      %2134 = vdwg.mxu0
      %2135 = vmatpush.bf16.msra.mxu0 0
      %2136 = vmatpush.bf16.msra.mxu0 0
      %2137 = vmatpush.bf16.msra.mxu0 0
      %2138 = vmatpush.bf16.msra.mxu0 0
      %2139 = vmatpush.bf16.msra.mxu0 0
      %2140 = vmatpush.bf16.msra.mxu0 0
      %2141 = vmatpush.bf16.msra.mxu0 %v2070
      %2142 = vmatpush.bf16.msra.mxu0 %v2068
      %2143 = vmatmul.bf16.gmra.mxu0 %v2111
      %v2144 = vpop.f32.mrf.mxu0
      %v2145 = vadd.f32 %v2082, %v2144
      %v2146 = vpop.f32.mrf.mxu0
      %v2147 = vadd.f32 %v2087, %v2146
      %2148 = vmatmul.bf16.gmra.mxu0 %v2114
      %v2149 = vpop.f32.mrf.mxu0
      %v2150 = vadd.f32 %v2092, %v2149
      %v2151 = vpop.f32.mrf.mxu0
      %v2152 = vadd.f32 %v2097, %v2151
      %2153 = vdwg.mxu0
      %v2154 = vmul.f32 %v1791, %v2126
      %v2155 = vmul.f32 %v1792, %v2145
      %v2156 = vmul.f32 %v1795, %v2128
      %v2157 = vmul.f32 %v1796, %v2147
      %v2158 = vmul.f32 %v1799, %v2131
      %v2159 = vmul.f32 %v1800, %v2150
      %v2160 = vmul.f32 %v1803, %v2133
      %v2161 = vmul.f32 %v1804, %v2152
      %v2162 = vpack.c.bf16 %v2061, %v2059
      %v2163 = vpack.c.bf16 %v2062, %v2060
      %v2164 = vpack.c.bf16 %v2065, %v2063
      %v2165 = vpack.c.bf16 %v2066, %v2064
      %2166 = vmatpush.bf16.msra.mxu0 0
      %2167 = vmatpush.bf16.msra.mxu0 0
      %2168 = vmatpush.bf16.msra.mxu0 0
      %2169 = vmatpush.bf16.msra.mxu0 0
      %2170 = vmatpush.bf16.msra.mxu0 0
      %2171 = vmatpush.bf16.msra.mxu0 0
      %2172 = vmatpush.bf16.msra.mxu0 %v2164
      %2173 = vmatpush.bf16.msra.mxu0 %v2162
      %2174 = vmatmul.bf16.gmra.mxu0 %v2111
      %v2175 = vpop.f32.mrf.mxu0
      %v2176 = vadd.f32 %v2082, %v2175
      %v2177 = vpop.f32.mrf.mxu0
      %v2178 = vadd.f32 %v2087, %v2177
      %2179 = vmatmul.bf16.gmra.mxu0 %v2114
      %v2180 = vpop.f32.mrf.mxu0
      %v2181 = vadd.f32 %v2092, %v2180
      %v2182 = vpop.f32.mrf.mxu0
      %v2183 = vadd.f32 %v2097, %v2182
      %2184 = vdwg.mxu0
      %2185 = vmatpush.bf16.msra.mxu0 0
      %2186 = vmatpush.bf16.msra.mxu0 0
      %2187 = vmatpush.bf16.msra.mxu0 0
      %2188 = vmatpush.bf16.msra.mxu0 0
      %2189 = vmatpush.bf16.msra.mxu0 0
      %2190 = vmatpush.bf16.msra.mxu0 0
      %2191 = vmatpush.bf16.msra.mxu0 %v2165
      %2192 = vmatpush.bf16.msra.mxu0 %v2163
      %2193 = vmatmul.bf16.gmra.mxu0 %v2111
      %v2194 = vpop.f32.mrf.mxu0
      %v2195 = vadd.f32 %v2082, %v2194
      %v2196 = vpop.f32.mrf.mxu0
      %v2197 = vadd.f32 %v2087, %v2196
      %2198 = vmatmul.bf16.gmra.mxu0 %v2114
      %v2199 = vpop.f32.mrf.mxu0
      %v2200 = vadd.f32 %v2092, %v2199
      %v2201 = vpop.f32.mrf.mxu0
      %v2202 = vadd.f32 %v2097, %v2201
      %2203 = vdwg.mxu0
      %v2204 = vmul.f32 %v1807, %v2176
      %v2205 = vmul.f32 %v1808, %v2195
      %v2206 = vmul.f32 %v1811, %v2178
      %v2207 = vmul.f32 %v1812, %v2197
      %v2208 = vmul.f32 %v1815, %v2181
      %v2209 = vmul.f32 %v1816, %v2200
      %v2210 = vmul.f32 %v1819, %v2183
      %v2211 = vmul.f32 %v1820, %v2202
      %v2212 = vpack.c.bf16 %v2156, %v2154
      %v2213 = vpack.c.bf16 %v2157, %v2155
      %v2214 = vpack.c.bf16 %v2160, %v2158
      %v2215 = vpack.c.bf16 %v2161, %v2159
      %v2216 = vpack.c.bf16 %v2206, %v2204
      %v2217 = vpack.c.bf16 %v2207, %v2205
      %v2218 = vpack.c.bf16 %v2210, %v2208
      %v2219 = vpack.c.bf16 %v2211, %v2209
      %v2220 = vld [vmem:[%s577] sm:$0xff]
      %v2221 = vld [vmem:[%s577 + $0x8] sm:$0xff]
      %v2222 = vld [vmem:[%s577 + $0x10] sm:$0xff]
      %v2223 = vld [vmem:[%s577 + $0x18] sm:$0xff]
      %v2224 = vld [vmem:[%s577 + $0x20] sm:$0xff]
      %v2225 = vld [vmem:[%s577 + $0x28] sm:$0xff]
      %v2226 = vld [vmem:[%s577 + $0x30] sm:$0xff]
      %v2227 = vld [vmem:[%s577 + $0x38] sm:$0xff]
      %v2228 = vld [vmem:[%s577 + $0x40] sm:$0xff]
      %v2229 = vld [vmem:[%s577 + $0x48] sm:$0xff]
      %v2230 = vld [vmem:[%s577 + $0x50] sm:$0xff]
      %v2231 = vld [vmem:[%s577 + $0x58] sm:$0xff]
      %v2232 = vld [vmem:[%s577 + $0x60] sm:$0xff]
      %v2233 = vld [vmem:[%s577 + $0x68] sm:$0xff]
      %v2234 = vld [vmem:[%s577 + $0x70] sm:$0xff]
      %v2235 = vld [vmem:[%s577 + $0x78] sm:$0xff]
      %v2236 = vld [vmem:[%s577 + $0x80] sm:$0xff]
      %v2237 = vld [vmem:[%s577 + $0x88] sm:$0xff]
      %v2238 = vld [vmem:[%s577 + $0x90] sm:$0xff]
      %v2239 = vld [vmem:[%s577 + $0x98] sm:$0xff]
      %v2240 = vld [vmem:[%s577 + $0xa0] sm:$0xff]
      %v2241 = vld [vmem:[%s577 + $0xa8] sm:$0xff]
      %v2242 = vld [vmem:[%s577 + $0xb0] sm:$0xff]
      %v2243 = vld [vmem:[%s577 + $0xb8] sm:$0xff]
      %v2244 = vld [vmem:[%s577 + $0xc0] sm:$0xff]
      %v2245 = vld [vmem:[%s577 + $0xc8] sm:$0xff]
      %v2246 = vld [vmem:[%s577 + $0xd0] sm:$0xff]
      %v2247 = vld [vmem:[%s577 + $0xd8] sm:$0xff]
      %v2248 = vld [vmem:[%s577 + $0xe0] sm:$0xff]
      %v2249 = vld [vmem:[%s577 + $0xe8] sm:$0xff]
      %v2250 = vld [vmem:[%s577 + $0xf0] sm:$0xff]
      %v2251 = vld [vmem:[%s577 + $0xf8] sm:$0xff]
      %v2252 = vld [vmem:[%s581] sm:$0x3]
      %v2254 = vperm.slane %v2252, 0
      %v2255 = vperm.slane %v2252, 1
      %v2290 = vunpack.c.l.b16 %v2220
      %v2291 = vunpack.c.h.b16 %v2220
      %v2292 = vunpack.c.l.b16 %v2221
      %v2293 = vunpack.c.h.b16 %v2221
      %v2294 = vunpack.c.l.b16 %v2222
      %v2295 = vunpack.c.h.b16 %v2222
      %v2296 = vunpack.c.l.b16 %v2223
      %v2297 = vunpack.c.h.b16 %v2223
      %v2298 = vunpack.c.l.b16 %v2224
      %v2299 = vunpack.c.h.b16 %v2224
      %v2300 = vunpack.c.l.b16 %v2225
      %v2301 = vunpack.c.h.b16 %v2225
      %v2302 = vunpack.c.l.b16 %v2226
      %v2303 = vunpack.c.h.b16 %v2226
      %v2304 = vunpack.c.l.b16 %v2227
      %v2305 = vunpack.c.h.b16 %v2227
      %v2306 = vunpack.c.l.b16 %v2228
      %v2307 = vunpack.c.h.b16 %v2228
      %v2308 = vunpack.c.l.b16 %v2229
      %v2309 = vunpack.c.h.b16 %v2229
      %v2310 = vunpack.c.l.b16 %v2230
      %v2311 = vunpack.c.h.b16 %v2230
      %v2312 = vunpack.c.l.b16 %v2231
      %v2313 = vunpack.c.h.b16 %v2231
      %v2314 = vunpack.c.l.b16 %v2232
      %v2315 = vunpack.c.h.b16 %v2232
      %v2316 = vunpack.c.l.b16 %v2233
      %v2317 = vunpack.c.h.b16 %v2233
      %v2318 = vunpack.c.l.b16 %v2234
      %v2319 = vunpack.c.h.b16 %v2234
      %v2320 = vunpack.c.l.b16 %v2235
      %v2321 = vunpack.c.h.b16 %v2235
      %v2322 = vunpack.c.l.b16 %v2236
      %v2323 = vunpack.c.h.b16 %v2236
      %v2324 = vunpack.c.l.b16 %v2237
      %v2325 = vunpack.c.h.b16 %v2237
      %v2326 = vunpack.c.l.b16 %v2238
      %v2327 = vunpack.c.h.b16 %v2238
      %v2328 = vunpack.c.l.b16 %v2239
      %v2329 = vunpack.c.h.b16 %v2239
      %v2330 = vunpack.c.l.b16 %v2240
      %v2331 = vunpack.c.h.b16 %v2240
      %v2332 = vunpack.c.l.b16 %v2241
      %v2333 = vunpack.c.h.b16 %v2241
      %v2334 = vunpack.c.l.b16 %v2242
      %v2335 = vunpack.c.h.b16 %v2242
      %v2336 = vunpack.c.l.b16 %v2243
      %v2337 = vunpack.c.h.b16 %v2243
      %v2338 = vunpack.c.l.b16 %v2244
      %v2339 = vunpack.c.h.b16 %v2244
      %v2340 = vunpack.c.l.b16 %v2245
      %v2341 = vunpack.c.h.b16 %v2245
      %v2342 = vunpack.c.l.b16 %v2246
      %v2343 = vunpack.c.h.b16 %v2246
      %v2344 = vunpack.c.l.b16 %v2247
      %v2345 = vunpack.c.h.b16 %v2247
      %v2346 = vunpack.c.l.b16 %v2248
      %v2347 = vunpack.c.h.b16 %v2248
      %v2348 = vunpack.c.l.b16 %v2249
      %v2349 = vunpack.c.h.b16 %v2249
      %v2350 = vunpack.c.l.b16 %v2250
      %v2351 = vunpack.c.h.b16 %v2250
      %v2352 = vunpack.c.l.b16 %v2251
      %v2353 = vunpack.c.h.b16 %v2251
      %v2354 = vpack.c.b16 %v2292, %v2290
      %v2355 = vpack.c.b16 %v2293, %v2291
      %v2356 = vpack.c.b16 %v2296, %v2294
      %v2357 = vpack.c.b16 %v2297, %v2295
      %v2358 = vpack.c.b16 %v2300, %v2298
      %v2359 = vpack.c.b16 %v2301, %v2299
      %v2360 = vpack.c.b16 %v2304, %v2302
      %v2361 = vpack.c.b16 %v2305, %v2303
      %v2362 = vpack.c.b16 %v2308, %v2306
      %v2363 = vpack.c.b16 %v2309, %v2307
      %v2364 = vpack.c.b16 %v2312, %v2310
      %v2365 = vpack.c.b16 %v2313, %v2311
      %v2366 = vpack.c.b16 %v2316, %v2314
      %v2367 = vpack.c.b16 %v2317, %v2315
      %v2368 = vpack.c.b16 %v2320, %v2318
      %v2369 = vpack.c.b16 %v2321, %v2319
      %v2370 = vpack.c.b16 %v2324, %v2322
      %v2371 = vpack.c.b16 %v2325, %v2323
      %v2372 = vpack.c.b16 %v2328, %v2326
      %v2373 = vpack.c.b16 %v2329, %v2327
      %v2374 = vpack.c.b16 %v2332, %v2330
      %v2375 = vpack.c.b16 %v2333, %v2331
      %v2376 = vpack.c.b16 %v2336, %v2334
      %v2377 = vpack.c.b16 %v2337, %v2335
      %v2378 = vpack.c.b16 %v2340, %v2338
      %v2379 = vpack.c.b16 %v2341, %v2339
      %v2380 = vpack.c.b16 %v2344, %v2342
      %v2381 = vpack.c.b16 %v2345, %v2343
      %v2382 = vpack.c.b16 %v2348, %v2346
      %v2383 = vpack.c.b16 %v2349, %v2347
      %v2384 = vpack.c.b16 %v2352, %v2350
      %v2385 = vpack.c.b16 %v2353, %v2351
      %2418 = vmatpush.bf16.msra.mxu0 %v2368
      %2419 = vmatpush.bf16.msra.mxu0 %v2366
      %2420 = vmatpush.bf16.msra.mxu0 %v2364
      %2421 = vmatpush.bf16.msra.mxu0 %v2362
      %2422 = vmatpush.bf16.msra.mxu0 %v2360
      %2423 = vmatpush.bf16.msra.mxu0 %v2358
      %2424 = vmatpush.bf16.msra.mxu0 %v2356
      %2425 = vmatpush.bf16.msra.mxu0 %v2354
      %2426 = vmatmul.bf16.gmra.mxu0 %v2212
      %v2427 = vpop.f32.mrf.mxu0
      %v2428 = vadd.f32 %v2254, %v2427
      %v2429 = vpop.f32.mrf.mxu0
      %v2430 = vadd.f32 %v2254, %v2429
      %2431 = vmatmul.bf16.gmra.mxu0 %v2214
      %v2432 = vpop.f32.mrf.mxu0
      %v2433 = vadd.f32 %v2254, %v2432
      %v2434 = vpop.f32.mrf.mxu0
      %v2435 = vadd.f32 %v2254, %v2434
      %2436 = vmatmul.bf16.gmra.mxu0 %v2216
      %v2437 = vpop.f32.mrf.mxu0
      %v2438 = vadd.f32 %v2254, %v2437
      %v2439 = vpop.f32.mrf.mxu0
      %v2440 = vadd.f32 %v2254, %v2439
      %2441 = vmatmul.bf16.gmra.mxu0 %v2218
      %v2442 = vpop.f32.mrf.mxu0
      %v2443 = vadd.f32 %v2254, %v2442
      %v2444 = vpop.f32.mrf.mxu0
      %v2445 = vadd.f32 %v2254, %v2444
      %2446 = vdwg.mxu0
      %2447 = vmatpush.bf16.msra.mxu0 %v2384
      %2448 = vmatpush.bf16.msra.mxu0 %v2382
      %2449 = vmatpush.bf16.msra.mxu0 %v2380
      %2450 = vmatpush.bf16.msra.mxu0 %v2378
      %2451 = vmatpush.bf16.msra.mxu0 %v2376
      %2452 = vmatpush.bf16.msra.mxu0 %v2374
      %2453 = vmatpush.bf16.msra.mxu0 %v2372
      %2454 = vmatpush.bf16.msra.mxu0 %v2370
      %2455 = vmatmul.bf16.gmra.mxu0 %v2213
      %v2456 = vpop.f32.mrf.mxu0
      %v2457 = vadd.f32 %v2428, %v2456
      %v2458 = vpop.f32.mrf.mxu0
      %v2459 = vadd.f32 %v2430, %v2458
      %2460 = vmatmul.bf16.gmra.mxu0 %v2215
      %v2461 = vpop.f32.mrf.mxu0
      %v2462 = vadd.f32 %v2433, %v2461
      %v2463 = vpop.f32.mrf.mxu0
      %v2464 = vadd.f32 %v2435, %v2463
      %2465 = vmatmul.bf16.gmra.mxu0 %v2217
      %v2466 = vpop.f32.mrf.mxu0
      %v2467 = vadd.f32 %v2438, %v2466
      %v2468 = vpop.f32.mrf.mxu0
      %v2469 = vadd.f32 %v2440, %v2468
      %2470 = vmatmul.bf16.gmra.mxu0 %v2219
      %v2471 = vpop.f32.mrf.mxu0
      %v2472 = vadd.f32 %v2443, %v2471
      %v2473 = vpop.f32.mrf.mxu0
      %v2474 = vadd.f32 %v2445, %v2473
      %2475 = vdwg.mxu0
      %2476 = vmatpush.bf16.msra.mxu0 %v2369
      %2477 = vmatpush.bf16.msra.mxu0 %v2367
      %2478 = vmatpush.bf16.msra.mxu0 %v2365
      %2479 = vmatpush.bf16.msra.mxu0 %v2363
      %2480 = vmatpush.bf16.msra.mxu0 %v2361
      %2481 = vmatpush.bf16.msra.mxu0 %v2359
      %2482 = vmatpush.bf16.msra.mxu0 %v2357
      %2483 = vmatpush.bf16.msra.mxu0 %v2355
      %2484 = vmatmul.bf16.gmra.mxu0 %v2212
      %v2485 = vpop.f32.mrf.mxu0
      %v2486 = vadd.f32 %v2255, %v2485
      %v2487 = vpop.f32.mrf.mxu0
      %v2488 = vadd.f32 %v2255, %v2487
      %2489 = vmatmul.bf16.gmra.mxu0 %v2214
      %v2490 = vpop.f32.mrf.mxu0
      %v2491 = vadd.f32 %v2255, %v2490
      %v2492 = vpop.f32.mrf.mxu0
      %v2493 = vadd.f32 %v2255, %v2492
      %2494 = vmatmul.bf16.gmra.mxu0 %v2216
      %v2495 = vpop.f32.mrf.mxu0
      %v2496 = vadd.f32 %v2255, %v2495
      %v2497 = vpop.f32.mrf.mxu0
      %v2498 = vadd.f32 %v2255, %v2497
      %2499 = vmatmul.bf16.gmra.mxu0 %v2218
      %v2500 = vpop.f32.mrf.mxu0
      %v2501 = vadd.f32 %v2255, %v2500
      %v2502 = vpop.f32.mrf.mxu0
      %v2503 = vadd.f32 %v2255, %v2502
      %2504 = vdwg.mxu0
      %2505 = vmatpush.bf16.msra.mxu0 %v2385
      %2506 = vmatpush.bf16.msra.mxu0 %v2383
      %2507 = vmatpush.bf16.msra.mxu0 %v2381
      %2508 = vmatpush.bf16.msra.mxu0 %v2379
      %2509 = vmatpush.bf16.msra.mxu0 %v2377
      %2510 = vmatpush.bf16.msra.mxu0 %v2375
      %2511 = vmatpush.bf16.msra.mxu0 %v2373
      %2512 = vmatpush.bf16.msra.mxu0 %v2371
      %2513 = vmatmul.bf16.gmra.mxu0 %v2213
      %v2514 = vpop.f32.mrf.mxu0
      %v2515 = vadd.f32 %v2486, %v2514
      %v2516 = vpop.f32.mrf.mxu0
      %v2517 = vadd.f32 %v2488, %v2516
      %2518 = vmatmul.bf16.gmra.mxu0 %v2215
      %v2519 = vpop.f32.mrf.mxu0
      %v2520 = vadd.f32 %v2491, %v2519
      %v2521 = vpop.f32.mrf.mxu0
      %v2522 = vadd.f32 %v2493, %v2521
      %2523 = vmatmul.bf16.gmra.mxu0 %v2217
      %v2524 = vpop.f32.mrf.mxu0
      %v2525 = vadd.f32 %v2496, %v2524
      %v2526 = vpop.f32.mrf.mxu0
      %v2527 = vadd.f32 %v2498, %v2526
      %2528 = vmatmul.bf16.gmra.mxu0 %v2219
      %v2529 = vpop.f32.mrf.mxu0
      %v2530 = vadd.f32 %v2501, %v2529
      %v2531 = vpop.f32.mrf.mxu0
      %v2532 = vadd.f32 %v2503, %v2531
      %2533 = vdwg.mxu0
      %v2534 = vadd.f32 %v634, %v2457
      %v2535 = vadd.f32 %v635, %v2515
      %v2536 = vadd.f32 %v636, %v2459
      %v2537 = vadd.f32 %v637, %v2517
      %v2538 = vadd.f32 %v638, %v2462
      %v2539 = vadd.f32 %v639, %v2520
      %v2540 = vadd.f32 %v640, %v2464
      %v2541 = vadd.f32 %v641, %v2522
      %v2542 = vadd.f32 %v642, %v2467
      %v2543 = vadd.f32 %v643, %v2525
      %v2544 = vadd.f32 %v644, %v2469
      %v2545 = vadd.f32 %v645, %v2527
      %v2546 = vadd.f32 %v646, %v2472
      %v2547 = vadd.f32 %v647, %v2530
      %v2548 = vadd.f32 %v648, %v2474
      %v2549 = vadd.f32 %v649, %v2532
      %2550 = vst [vmem:[#allocation2] sm:$0xff] %v2534
      %2551 = vst [vmem:[#allocation2 + $0x8] sm:$0xff] %v2535
      %2552 = vst [vmem:[#allocation2 + $0x10] sm:$0xff] %v2536
      %2553 = vst [vmem:[#allocation2 + $0x18] sm:$0xff] %v2537
      %2554 = vst [vmem:[#allocation2 + $0x20] sm:$0xff] %v2538
      %2555 = vst [vmem:[#allocation2 + $0x28] sm:$0xff] %v2539
      %2556 = vst [vmem:[#allocation2 + $0x30] sm:$0xff] %v2540
      %2557 = vst [vmem:[#allocation2 + $0x38] sm:$0xff] %v2541
      %2558 = vst [vmem:[#allocation2 + $0x40] sm:$0xff] %v2542
      %2559 = vst [vmem:[#allocation2 + $0x48] sm:$0xff] %v2543
      %2560 = vst [vmem:[#allocation2 + $0x50] sm:$0xff] %v2544
      %2561 = vst [vmem:[#allocation2 + $0x58] sm:$0xff] %v2545
      %2562 = vst [vmem:[#allocation2 + $0x60] sm:$0xff] %v2546
      %2563 = vst [vmem:[#allocation2 + $0x68] sm:$0xff] %v2547
      %2564 = vst [vmem:[#allocation2 + $0x70] sm:$0xff] %v2548
      %2565 = vst [vmem:[#allocation2 + $0x78] sm:$0xff] %v2549
      %p2566 = scmp.eq.s32.totalorder %s27, 1
      // Predicated region
      $region69: #{_lambda_.3} parent=63 // pred_check
        %p2567 = pneg %p2566
      $region70: #{_lambda_.3} parent=63 // pred_check_branch
        %2569 = sbr.rel (%p2567) target = $region72
      $region71: #{_lambda_.3} parent=63 // pred_region
        %v2570 = vld [vmem:[#allocation2] sm:$0xff]
        %v2571 = vld [vmem:[#allocation2 + $0x8] sm:$0xff]
        %v2572 = vld [vmem:[#allocation2 + $0x10] sm:$0xff]
        %v2573 = vld [vmem:[#allocation2 + $0x18] sm:$0xff]
        %v2574 = vld [vmem:[#allocation2 + $0x20] sm:$0xff]
        %v2575 = vld [vmem:[#allocation2 + $0x28] sm:$0xff]
        %v2576 = vld [vmem:[#allocation2 + $0x30] sm:$0xff]
        %v2577 = vld [vmem:[#allocation2 + $0x38] sm:$0xff]
        %v2578 = vld [vmem:[#allocation2 + $0x40] sm:$0xff]
        %v2579 = vld [vmem:[#allocation2 + $0x48] sm:$0xff]
        %v2580 = vld [vmem:[#allocation2 + $0x50] sm:$0xff]
        %v2581 = vld [vmem:[#allocation2 + $0x58] sm:$0xff]
        %v2582 = vld [vmem:[#allocation2 + $0x60] sm:$0xff]
        %v2583 = vld [vmem:[#allocation2 + $0x68] sm:$0xff]
        %v2584 = vld [vmem:[#allocation2 + $0x70] sm:$0xff]
        %v2585 = vld [vmem:[#allocation2 + $0x78] sm:$0xff]
        %v2586 = vpack.c.bf16 %v2571, %v2570
        %v2587 = vpack.c.bf16 %v2573, %v2572
        %v2588 = vpack.c.bf16 %v2575, %v2574
        %v2589 = vpack.c.bf16 %v2577, %v2576
        %v2590 = vpack.c.bf16 %v2579, %v2578
        %v2591 = vpack.c.bf16 %v2581, %v2580
        %v2592 = vpack.c.bf16 %v2583, %v2582
        %v2593 = vpack.c.bf16 %v2585, %v2584
        %2594 = vst [vmem:[%s587] sm:$0xff] %v2586
        %2595 = vst [vmem:[%s587 + $0x8] sm:$0xff] %v2587
        %2596 = vst [vmem:[%s587 + $0x10] sm:$0xff] %v2588
        %2597 = vst [vmem:[%s587 + $0x18] sm:$0xff] %v2589
        %2598 = vst [vmem:[%s587 + $0x20] sm:$0xff] %v2590
        %2599 = vst [vmem:[%s587 + $0x28] sm:$0xff] %v2591
        %2600 = vst [vmem:[%s587 + $0x30] sm:$0xff] %v2592
        %2601 = vst [vmem:[%s587 + $0x38] sm:$0xff] %v2593
      $region72: #{_lambda_.3} parent=63 // pred_fallthru
        _
      %s2602 = smul.u32 2, %s26
      %p2603 = scmp.lt.s32.totalorder %s2602, 3
      %s2604 = scalar_select %p2603, %s2602, 3
      %s2605 = smul.addr %s2604, 8
      %s2606 = smul.addr %s2605, 4
      %s2607 = scalar_lea.vmem %s11, %s2606
      // Predicated region
      $region73: #{_lambda_.3} parent=63 // pred_check
        %p2608 = pneg %p338
      $region74: #{_lambda_.3} parent=63 // pred_check_branch
        %2610 = sbr.rel (%p2608) target = $region76
      $region75: #{_lambda_.3} parent=63 // pred_region
        %s2611 = smul.u32 2, %s26
      $region76: #{_lambda_.3} parent=63 // pred_fallthru
        _
    $region64: #{_lambda_.3} parent=5 // pred_fallthru
      _
    %p2612 = scmp.le.s32.totalorder 2, %s17
    // Predicated region
    $region77: #{_lambda_.3} parent=5 // pred_check
      %p2613 = pneg %p2612
    $region78: #{_lambda_.3} parent=5 // pred_check_branch
      %2615 = sbr.rel (%p2613) target = $region80
    $region79: #{_lambda_.3} parent=5 // pred_region
      %s2616 = ssub.s32 %s17, 2
      // Predicated region
      $region81: #{_lambda_.3} parent=79 // pred_check
        %p2617 = pneg %p344
      $region82: #{_lambda_.3} parent=79 // pred_check_branch
        %2619 = sbr.rel (%p2617) target = $region84
      $region83: #{_lambda_.3} parent=79 // pred_region
        %s2620 = smul.u32 2, %s28
        %p2621 = scmp.lt.s32.totalorder %s2620, 3
        %s2622 = scalar_select %p2621, %s2620, 3
        %s2623 = smul.addr %s2622, 8
        %s2624 = smul.addr %s2623, 4
        %s2625 = scalar_lea.vmem %s11, %s2624
      $region84: #{_lambda_.3} parent=79 // pred_fallthru
        _
    $region80: #{_lambda_.3} parent=5 // pred_fallthru
      _
  $region6: #{_lambda_.3} parent=0 // loop_footer
    %s21 = sadd.s32 1, %s17
  $region7: #{_lambda_.3} parent=0 // loop_footer_branch
    %16 = sbr.rel target = $region3
  $region8: #{_lambda_.3} parent=0 // loop_exit
    _

</llo_original>
